<compile_context>
chip_gen: v5e
topology: v5e:2x2
jax: 0.10.0
libtpu: 0.0.40
codegen_flags: <defaults>
</compile_context>

<pallas_src>
import functools

import jax
import jax.numpy as jnp
from jax import lax
from jax.experimental import pallas as pl
from jax.experimental.pallas import tpu as pltpu


# ----------------------------- in-kernel helpers ------------------------------

def _lane_col_masks(W, HW):
    """Boolean (1, HW) masks marking the first / last column of each image row."""
    lane = lax.broadcasted_iota(jnp.int32, (1, HW), 1)
    col = lane % W
    return col == 0, col == (W - 1)


def _build_slab(a_f32, is_col0, is_colL, slab_ref, H, W):
    """im2col for a 3x3 'same' conv in the flattened (C, H*W) layout.

    Block k = ky*3 + kx of slab_ref (9*C, H*W) holds the activation shifted by
    (ky-1, kx-1) with zero padding:
      * horizontal padding: mask the SOURCE once per side (kx=0 taps read a copy
        with column W-1 zeroed, kx=2 taps a copy with column 0 zeroed),
      * the flat lane shift itself is a pltpu.roll (XLU),
      * vertical padding: the rolled-around first-row (ky=0) / last-row (ky=2)
        lanes are overwritten with zeros by two tiny stores at the end.
    Stores are issued in (2C, H*W) pairs so bf16 writes are full-tile.
    """
    c, HW = a_f32.shape
    src_kx0 = jnp.where(is_colL, 0.0, a_f32)   # left taps: col W-1 must not leak
    src_kx2 = jnp.where(is_col0, 0.0, a_f32)   # right taps: col 0 must not leak
    srcs = (src_kx0, a_f32, src_kx2)

    blocks = []
    for ky in range(3):
        for kx in range(3):
            d = (ky - 1) * W + (kx - 1)        # block[p] = src[p + d]
            src = srcs[kx]
            if d == 0:
                blocks.append(src)
            else:
                blocks.append(pltpu.roll(src, shift=(-d) % HW, axis=1))

    k = 0
    while k < 9:
        if k + 1 < 9:
            pair = jnp.concatenate([blocks[k], blocks[k + 1]], axis=0)
            slab_ref[k * c:(k + 2) * c, :] = pair.astype(jnp.bfloat16)
            k += 2
        else:
            slab_ref[k * c:(k + 1) * c, :] = blocks[k].astype(jnp.bfloat16)
            k += 1

    # Vertical zero padding (ky=0 taps invalid on the first image row, ky=2 on
    # the last) -- overwrite the rolled-around lanes.
    slab_ref[0:3 * c, 0:W] = jnp.zeros((3 * c, W), jnp.bfloat16)
    slab_ref[6 * c:9 * c, HW - W:] = jnp.zeros((3 * c, W), jnp.bfloat16)


# ------------------------------- Pallas kernels ------------------------------

def _stage1_kernel(x_ref, ut_ref, s1_ref, t1_ref, ss_ref, ts_ref,
                   w1_ref, b1_ref, ws_ref, bs_ref,
                   y1_ref, st_ref, sh_ref, slab_a, slab_b, *, H, W):
    """Fused upsample + double_conv first half (BN1 -> ReLU -> conv1, with BN2
    partial stats) + single_conv shortcut (BN_s -> conv_s) for one image."""
    HW = H * W

    # Fused 2x bilinear upsample (align_corners=True): one f32 MXU matmul
    # against the precomputed interpolation matrix.
    xu = jnp.dot(x_ref[0], ut_ref[...], preferred_element_type=jnp.float32)

    is_col0, is_colL = _lane_col_masks(W, HW)

    # double_conv first half: BN1 -> ReLU -> conv1 (one K=9*Cin matmul).
    a = jnp.maximum(xu * s1_ref[...] + t1_ref[...], 0.0)
    _build_slab(a, is_col0, is_colL, slab_a, H, W)
    y1 = jnp.dot(w1_ref[...], slab_a[...],
                 preferred_element_type=jnp.float32) + b1_ref[...]
    y1_ref[0] = y1.astype(jnp.bfloat16)
    # Per-image BN2 partial statistics (per-channel sum, sum of squares).
    st_ref[0] = jnp.concatenate(
        [jnp.sum(y1, axis=1, keepdims=True),
         jnp.sum(y1 * y1, axis=1, keepdims=True)], axis=1)

    # single_conv shortcut: BN_s (no ReLU) -> conv_s.
    b = xu * ss_ref[...] + ts_ref[...]
    _build_slab(b, is_col0, is_colL, slab_b, H, W)
    sh_ref[0] = jnp.dot(ws_ref[...], slab_b[...],
                        preferred_element_type=jnp.float32) + bs_ref[...]


def _stage2_kernel(y1_ref, shc_ref, s2_ref, t2_ref, w2_ref, b2_ref,
                   o_ref, slab, *, H, W):
    """double_conv second half (BN2 -> ReLU -> conv2) + in-place residual add."""
    HW = H * W
    is_col0, is_colL = _lane_col_masks(W, HW)

    y = y1_ref[0].astype(jnp.float32)                       # (Cmid, HW)
    a = jnp.maximum(y * s2_ref[...] + t2_ref[...], 0.0)
    _build_slab(a, is_col0, is_colL, slab, H, W)

    c2 = jnp.dot(w2_ref[...], slab[...], preferred_element_type=jnp.float32)
    o_ref[0] = c2 + b2_ref[...] + shc_ref[0]


# ---------------------------------- JAX glue ----------------------------------

def _interp_matrix(n_in, n_out):
    """(n_out, n_in) matrix R with (R @ v) = 1-D linear interpolation of v,
    matching align_corners=True."""
    if n_in == 1:
        return jnp.ones((n_out, 1), jnp.float32)
    pos = jnp.arange(n_out, dtype=jnp.float32) * (n_in - 1) / (n_out - 1)
    lo = jnp.clip(jnp.floor(pos).astype(jnp.int32), 0, n_in - 2)
    frac = pos - lo.astype(jnp.float32)
    r = jnp.zeros((n_out, n_in), jnp.float32)
    r = r.at[jnp.arange(n_out), lo].add(1.0 - frac)
    r = r.at[jnp.arange(n_out), lo + 1].add(frac)
    return r


def _conv_weight_matrix(w_hwio):
    """(3, 3, Cin, Cout) HWIO -> (Cout, 9*Cin) bf16, column order (ky, kx, ci)
    to match the im2col slab row order."""
    kh, kw, cin, cout = w_hwio.shape
    return (jnp.transpose(w_hwio, (3, 0, 1, 2))
            .reshape(cout, kh * kw * cin).astype(jnp.bfloat16))


def spectral_normalize(w_hwio, key, n_iter=10):
    """Divide conv weight (HWIO) by the spectral norm of its (Cout, Cin*k*k)
    matrix, estimated by power iteration (emulates torch spectral_norm)."""
    cout = w_hwio.shape[-1]
    wm = jnp.transpose(w_hwio, (3, 2, 0, 1)).reshape(cout, -1)
    u = jax.random.normal(key, (cout,), jnp.float32)
    u = u / (jnp.linalg.norm(u) + 1e-12)
    v = jnp.zeros((wm.shape[1],), jnp.float32)
    for _ in range(n_iter):
        v = wm.T @ u
        v = v / (jnp.linalg.norm(v) + 1e-12)
        u = wm @ v
        u = u / (jnp.linalg.norm(u) + 1e-12)
    sigma = u @ (wm @ v)
    return w_hwio / sigma


# ---------------------------------- forward -----------------------------------

def up_s_forward(x_nchw, p, eps=1e-5):
    """Pallas implementation of Up_S(in_channels, out_channels, bilinear=True)."""
    x = x_nchw.astype(jnp.float32)
    N, Cin, Hin, Win = x.shape
    H, W = 2 * Hin, 2 * Win
    HW = H * W
    PIN = Hin * Win
    Cmid = p["w1"].shape[-1]
    Cout = p["w2"].shape[-1]
    cnt = N * HW

    # Interpolation matrix for the fused bilinear upsample: xu_flat = x_flat @ UT.
    rh = _interp_matrix(Hin, H)                              # (H, Hin)
    rw = _interp_matrix(Win, W)                              # (W, Win)
    ut = jnp.einsum('hi,wj->ijhw', rh, rw).reshape(PIN, HW)  # (PIN, HW)

    x_flat = x.reshape(N, Cin, PIN)

    # Exact train-mode BN1 / BN_s batch statistics of the upsampled image,
    # computed from x (the upsample is a fixed linear map, so both moments are
    # available without materializing xu in HBM).
    colsum = jnp.sum(ut, axis=1)                             # (PIN,)
    gram = ut @ ut.T                                         # (PIN, PIN)
    sum_xu = jnp.einsum('ncp,p->c', x_flat, colsum)
    sumsq_xu = jnp.einsum('ncp,pq,ncq->c', x_flat, gram, x_flat)
    mean_u = sum_xu / cnt
    var_u = sumsq_xu / cnt - mean_u * mean_u

    def fold(gamma, beta, mean, var):
        scale = gamma / jnp.sqrt(var + eps)
        return scale.reshape(-1, 1), (beta - mean * scale).reshape(-1, 1)

    s1, t1 = fold(p["g1"], p["be1"], mean_u, var_u)          # double_conv BN1
    ss, ts = fold(p["gs"], p["bes"], mean_u, var_u)          # single_conv BN

    w1m, b1v = _conv_weight_matrix(p["w1"]), p["b1"].reshape(-1, 1)
    wsm, bsv = _conv_weight_matrix(p["ws"]), p["bs"].reshape(-1, 1)
    w2m, b2v = _conv_weight_matrix(p["w2"]), p["b2"].reshape(-1, 1)

    # --- stage 1: upsample + conv1 branch (+ BN2 partial stats) + shortcut ---
    y1, stats, shortcut = pl.pallas_call(
        functools.partial(_stage1_kernel, H=H, W=W),
        out_shape=(jax.ShapeDtypeStruct((N, Cmid, HW), jnp.bfloat16),
                   jax.ShapeDtypeStruct((N, Cmid, 2), jnp.float32),
                   jax.ShapeDtypeStruct((N, Cout, HW), jnp.float32)),
        grid=(N,),
        in_specs=[
            pl.BlockSpec((1, Cin, PIN), lambda n: (n, 0, 0)),
            pl.BlockSpec((PIN, HW), lambda n: (0, 0)),
            pl.BlockSpec((Cin, 1), lambda n: (0, 0)),
            pl.BlockSpec((Cin, 1), lambda n: (0, 0)),
            pl.BlockSpec((Cin, 1), lambda n: (0, 0)),
            pl.BlockSpec((Cin, 1), lambda n: (0, 0)),
            pl.BlockSpec((Cmid, 9 * Cin), lambda n: (0, 0)),
            pl.BlockSpec((Cmid, 1), lambda n: (0, 0)),
            pl.BlockSpec((Cout, 9 * Cin), lambda n: (0, 0)),
            pl.BlockSpec((Cout, 1), lambda n: (0, 0)),
        ],
        out_specs=(pl.BlockSpec((1, Cmid, HW), lambda n: (n, 0, 0)),
                   pl.BlockSpec((1, Cmid, 2), lambda n: (n, 0, 0)),
                   pl.BlockSpec((1, Cout, HW), lambda n: (n, 0, 0))),
        scratch_shapes=[pltpu.VMEM((9 * Cin, HW), jnp.bfloat16),
                        pltpu.VMEM((9 * Cin, HW), jnp.bfloat16)],
        compiler_params=pltpu.CompilerParams(
            dimension_semantics=("parallel",),
            vmem_limit_bytes=32 * 1024 * 1024),
    )(x_flat, ut, s1, t1, ss, ts, w1m, b1v, wsm, bsv)

    # BN2 train-mode statistics from the in-kernel partial sums (no y1 re-read).
    sum2 = jnp.sum(stats[:, :, 0], axis=0)
    sumsq2 = jnp.sum(stats[:, :, 1], axis=0)
    mean2 = sum2 / cnt
    var2 = sumsq2 / cnt - mean2 * mean2
    s2, t2 = fold(p["g2"], p["be2"], mean2, var2)

    # --- stage 2: BN2 -> ReLU -> conv2, residual accumulated in place into the
    # shortcut buffer (aliased to the output) ---
    out = pl.pallas_call(
        functools.partial(_stage2_kernel, H=H, W=W),
        out_shape=jax.ShapeDtypeStruct((N, Cout, HW), jnp.float32),
        grid=(N,),
        in_specs=[
            pl.BlockSpec((1, Cmid, HW), lambda n: (n, 0, 0)),
            pl.BlockSpec((1, Cout, HW), lambda n: (n, 0, 0)),
            pl.BlockSpec((Cmid, 1), lambda n: (0, 0)),
            pl.BlockSpec((Cmid, 1), lambda n: (0, 0)),
            pl.BlockSpec((Cout, 9 * Cmid), lambda n: (0, 0)),
            pl.BlockSpec((Cout, 1), lambda n: (0, 0)),
        ],
        out_specs=pl.BlockSpec((1, Cout, HW), lambda n: (n, 0, 0)),
        scratch_shapes=[pltpu.VMEM((9 * Cmid, HW), jnp.bfloat16)],
        input_output_aliases={1: 0},
        compiler_params=pltpu.CompilerParams(
            dimension_semantics=("parallel",),
            vmem_limit_bytes=32 * 1024 * 1024),
    )(y1, shortcut, s2, t2, w2m, b2v)

    return out.reshape(N, Cout, H, W)                        # NCHW


# ------------------------------ pure-JAX reference -----------------------------

def up_s_reference(x_nchw, p, eps=1e-5):
    """f32 reference matching the PyTorch forward (train-mode BatchNorm)."""
    x = x_nchw.astype(jnp.float32)
    _, _, Hin, Win = x.shape
    rh = _interp_matrix(Hin, 2 * Hin)
    rw = _interp_matrix(Win, 2 * Win)
    xu = jnp.einsum('hi,ncij,wj->nchw', rh, x, rw)

    def bn(v, g, b):
        m = v.mean(axis=(0, 2, 3), keepdims=True)
        var = v.var(axis=(0, 2, 3), keepdims=True)
        return ((v - m) / jnp.sqrt(var + eps)) * g.reshape(1, -1, 1, 1) \
            + b.reshape(1, -1, 1, 1)

    def conv(v, w_hwio, b):
        out = lax.conv_general_dilated(
            v, w_hwio, window_strides=(1, 1), padding='SAME',
            dimension_numbers=('NCHW', 'HWIO', 'NCHW'))
        return out + b.reshape(1, -1, 1, 1)

    shortcut = conv(bn(xu, p["gs"], p["bes"]), p["ws"], p["bs"])
    t = conv(jax.nn.relu(bn(xu, p["g1"], p["be1"])), p["w1"], p["b1"])
    t = conv(jax.nn.relu(bn(t, p["g2"], p["be2"])), p["w2"], p["b2"])
    return t + shortcut


# --------------------------------- parameters ---------------------------------

def init_params(key, in_channels, out_channels):
    mid = in_channels            # Up_S bilinear branch: mid_channels = in_channels
    ks = jax.random.split(key, 16)

    def conv_w(k, cin, cout):    # HWIO
        return 0.1 * jax.random.normal(k, (3, 3, cin, cout), jnp.float32)

    return {
        # double_conv: BN1(Cin) -> ReLU -> conv1(Cin->mid) -> BN2(mid) -> ReLU
        #              -> conv2(mid->Cout)
        "g1": 1.0 + 0.1 * jax.random.normal(ks[0], (in_channels,), jnp.float32),
        "be1": 0.1 * jax.random.normal(ks[1], (in_channels,), jnp.float32),
        "w1": spectral_normalize(conv_w(ks[2], in_channels, mid), ks[3]),
        "b1": 0.1 * jax.random.normal(ks[4], (mid,), jnp.float32),
        "g2": 1.0 + 0.1 * jax.random.normal(ks[5], (mid,), jnp.float32),
        "be2": 0.1 * jax.random.normal(ks[6], (mid,), jnp.float32),
        "w2": spectral_normalize(conv_w(ks[7], mid, out_channels), ks[8]),
        "b2": 0.1 * jax.random.normal(ks[9], (out_channels,), jnp.float32),
        # single_conv: BN_s(Cin) -> conv_s(Cin->Cout)
        "gs": 1.0 + 0.1 * jax.random.normal(ks[10], (in_channels,), jnp.float32),
        "bes": 0.1 * jax.random.normal(ks[11], (in_channels,), jnp.float32),
        "ws": spectral_normalize(conv_w(ks[12], in_channels, out_channels), ks[13]),
        "bs": 0.1 * jax.random.normal(ks[14], (out_channels,), jnp.float32),
    }


if __name__ == "__main__":
    in_channels, out_channels = 8, 8     # Up_S(8, 8, bilinear=True)
    N, H_in, W_in = 2, 16, 16            # input spatial; output is 32x32

    key = jax.random.PRNGKey(0)
    k_p, k_x = jax.random.split(key)
    params = init_params(k_p, in_channels, out_channels)

    # PyTorch-convention NCHW input
    x = jax.random.normal(k_x, (N, in_channels, H_in, W_in), jnp.float32)

    out = jax.jit(up_s_forward)(x, params)
    jax.block_until_ready(out)
    assert out.shape == (N, out_channels, 2 * H_in, 2 * W_in)

    # Loose check against a pure-f32 reference (conv/im2col operands run in
    # bf16 on the MXU, so exact equality is not expected).
    ref = up_s_reference(x, params)
    rel_err = float(jnp.max(jnp.abs(out - ref)) / (jnp.max(jnp.abs(ref)) + 1e-6))
    assert rel_err < 0.1, f"relative error too large: {rel_err}"
    print("KERNEL_OK")
</pallas_src>

<mosaic_0001>
module attributes {stable_mosaic.version = 11 : i64} {
  func.func @_stage1_kernel(%arg0: i32, %arg1: memref<1x8x256xf32, #tpu.memory_space<vmem>>, %arg2: memref<256x1024xf32, #tpu.memory_space<vmem>>, %arg3: memref<8x1xf32, #tpu.memory_space<vmem>>, %arg4: memref<8x1xf32, #tpu.memory_space<vmem>>, %arg5: memref<8x1xf32, #tpu.memory_space<vmem>>, %arg6: memref<8x1xf32, #tpu.memory_space<vmem>>, %arg7: memref<8x72xbf16, #tpu.memory_space<vmem>>, %arg8: memref<8x1xf32, #tpu.memory_space<vmem>>, %arg9: memref<8x72xbf16, #tpu.memory_space<vmem>>, %arg10: memref<8x1xf32, #tpu.memory_space<vmem>>, %arg11: memref<1x8x1024xbf16, #tpu.memory_space<vmem>>, %arg12: memref<1x8x2xf32, #tpu.memory_space<vmem>>, %arg13: memref<1x8x1024xf32, #tpu.memory_space<vmem>>, %arg14: memref<72x1024xbf16, #tpu.memory_space<vmem>>, %arg15: memref<72x1024xbf16, #tpu.memory_space<vmem>>) attributes {dimension_semantics = [#tpu.dimension_semantics<parallel>], iteration_bounds = array<i64: 2>, scalar_prefetch = 0 : i64, scratch_operands = 2 : i64, tpu.core_type = #tpu.core_type<tc>, window_params = [{transform_indices = @transform_0, window_bounds = array<i64: 1, 8, 256>}, {pipeline_mode = #tpu.pipeline_mode<synchronous>, transform_indices = @transform_1, window_bounds = array<i64: 256, 1024>}, {pipeline_mode = #tpu.pipeline_mode<synchronous>, transform_indices = @transform_2, window_bounds = array<i64: 8, 1>}, {pipeline_mode = #tpu.pipeline_mode<synchronous>, transform_indices = @transform_3, window_bounds = array<i64: 8, 1>}, {pipeline_mode = #tpu.pipeline_mode<synchronous>, transform_indices = @transform_4, window_bounds = array<i64: 8, 1>}, {pipeline_mode = #tpu.pipeline_mode<synchronous>, transform_indices = @transform_5, window_bounds = array<i64: 8, 1>}, {pipeline_mode = #tpu.pipeline_mode<synchronous>, transform_indices = @transform_6, window_bounds = array<i64: 8, 72>}, {pipeline_mode = #tpu.pipeline_mode<synchronous>, transform_indices = @transform_7, window_bounds = array<i64: 8, 1>}, {pipeline_mode = #tpu.pipeline_mode<synchronous>, transform_indices = @transform_8, window_bounds = array<i64: 8, 72>}, {pipeline_mode = #tpu.pipeline_mode<synchronous>, transform_indices = @transform_9, window_bounds = array<i64: 8, 1>}, {transform_indices = @transform_10, window_bounds = array<i64: 1, 8, 1024>}, {transform_indices = @transform_11, window_bounds = array<i64: 1, 8, 2>}, {transform_indices = @transform_12, window_bounds = array<i64: 1, 8, 1024>}]} {
    %c0 = arith.constant 0 : index
    %c0_0 = arith.constant 0 : index
    %c0_1 = arith.constant 0 : index
    %0 = vector.load %arg1[%c0, %c0_0, %c0_1] : memref<1x8x256xf32, #tpu.memory_space<vmem>>, vector<1x8x256xf32>
    %1 = vector.shape_cast %0 : vector<1x8x256xf32> to vector<8x256xf32>
    %c0_2 = arith.constant 0 : index
    %c0_3 = arith.constant 0 : index
    %2 = vector.load %arg2[%c0_2, %c0_3] : memref<256x1024xf32, #tpu.memory_space<vmem>>, vector<256x1024xf32>
    %cst = arith.constant dense<0.000000e+00> : vector<8x1024xf32>
    %3 = tpu.matmul %1, %2, %cst {dimension_numbers = #tpu.dot_dimension_numbers<[1], [0], [0], [1], [0, 0, 1, 1], [], []>} : vector<8x256xf32>, vector<256x1024xf32>, vector<8x1024xf32> -> vector<8x1024xf32>
    %4 = tpu.iota {dimensions = array<i32: 1>} : vector<1x1024xi32>
    %c32_i32 = arith.constant 32 : i32
    %c0_i32 = arith.constant 0 : i32
    %5 = arith.cmpi eq, %c32_i32, %c0_i32 : i32
    %c1_i32 = arith.constant 1 : i32
    %6 = arith.select %5, %c1_i32, %c32_i32 : i32
    %7 = vector.broadcast %6 : i32 to vector<1x1024xi32>
    %8 = arith.remsi %4, %7 : vector<1x1024xi32>
    %c0_i32_4 = arith.constant 0 : i32
    %9 = vector.broadcast %c0_i32_4 : i32 to vector<1x1024xi32>
    %10 = arith.cmpi ne, %8, %9 : vector<1x1024xi32>
    %c0_i32_5 = arith.constant 0 : i32
    %11 = vector.broadcast %c0_i32_5 : i32 to vector<1x1024xi32>
    %12 = arith.cmpi slt, %8, %11 : vector<1x1024xi32>
    %c0_i32_6 = arith.constant 0 : i32
    %13 = arith.cmpi slt, %6, %c0_i32_6 : i32
    %14 = vector.broadcast %13 : i1 to vector<1x1024xi1>
    %15 = vector.broadcast %14 : vector<1x1024xi1> to vector<1x1024xi1>
    %16 = arith.xori %12, %15 : vector<1x1024xi1>
    %17 = arith.andi %16, %10 : vector<1x1024xi1>
    %18 = vector.broadcast %6 : i32 to vector<1x1024xi32>
    %19 = arith.addi %8, %18 : vector<1x1024xi32>
    %20 = arith.select %17, %19, %8 : vector<1x1024xi1>, vector<1x1024xi32>
    %c0_i32_7 = arith.constant 0 : i32
    %21 = vector.broadcast %c0_i32_7 : i32 to vector<1x1024xi32>
    %22 = arith.cmpi eq, %20, %21 : vector<1x1024xi32>
    %c31_i32 = arith.constant 31 : i32
    %23 = vector.broadcast %c31_i32 : i32 to vector<1x1024xi32>
    %24 = arith.cmpi eq, %20, %23 : vector<1x1024xi32>
    %c0_8 = arith.constant 0 : index
    %c0_9 = arith.constant 0 : index
    %25 = vector.load %arg3[%c0_8, %c0_9] : memref<8x1xf32, #tpu.memory_space<vmem>>, vector<8x1xf32>
    %26 = vector.broadcast %25 : vector<8x1xf32> to vector<8x1024xf32>
    %27 = arith.mulf %3, %26 : vector<8x1024xf32>
    %c0_10 = arith.constant 0 : index
    %c0_11 = arith.constant 0 : index
    %28 = vector.load %arg4[%c0_10, %c0_11] : memref<8x1xf32, #tpu.memory_space<vmem>>, vector<8x1xf32>
    %29 = vector.broadcast %28 : vector<8x1xf32> to vector<8x1024xf32>
    %30 = arith.addf %27, %29 : vector<8x1024xf32>
    %cst_12 = arith.constant 0.000000e+00 : f32
    %31 = vector.broadcast %cst_12 : f32 to vector<8x1024xf32>
    %32 = arith.maximumf %30, %31 : vector<8x1024xf32>
    %cst_13 = arith.constant 0.000000e+00 : f32
    %33 = vector.shape_cast %24 : vector<1x1024xi1> to vector<1x1024xi1>
    %34 = vector.broadcast %33 : vector<1x1024xi1> to vector<8x1024xi1>
    %35 = vector.broadcast %cst_13 : f32 to vector<8x1024xf32>
    %36 = arith.select %34, %35, %32 : vector<8x1024xi1>, vector<8x1024xf32>
    %cst_14 = arith.constant 0.000000e+00 : f32
    %37 = vector.shape_cast %22 : vector<1x1024xi1> to vector<1x1024xi1>
    %38 = vector.broadcast %37 : vector<1x1024xi1> to vector<8x1024xi1>
    %39 = vector.broadcast %cst_14 : f32 to vector<8x1024xf32>
    %40 = arith.select %38, %39, %32 : vector<8x1024xi1>, vector<8x1024xf32>
    %c33_i32 = arith.constant 33 : i32
    %41 = tpu.dynamic_rotate %36 by %c33_i32 dim 1 : vector<8x1024xf32>, i32 -> vector<8x1024xf32>
    %c32_i32_15 = arith.constant 32 : i32
    %42 = tpu.dynamic_rotate %32 by %c32_i32_15 dim 1 : vector<8x1024xf32>, i32 -> vector<8x1024xf32>
    %c31_i32_16 = arith.constant 31 : i32
    %43 = tpu.dynamic_rotate %40 by %c31_i32_16 dim 1 : vector<8x1024xf32>, i32 -> vector<8x1024xf32>
    %c1_i32_17 = arith.constant 1 : i32
    %44 = tpu.dynamic_rotate %36 by %c1_i32_17 dim 1 : vector<8x1024xf32>, i32 -> vector<8x1024xf32>
    %c1023_i32 = arith.constant 1023 : i32
    %45 = tpu.dynamic_rotate %40 by %c1023_i32 dim 1 : vector<8x1024xf32>, i32 -> vector<8x1024xf32>
    %c993_i32 = arith.constant 993 : i32
    %46 = tpu.dynamic_rotate %36 by %c993_i32 dim 1 : vector<8x1024xf32>, i32 -> vector<8x1024xf32>
    %c992_i32 = arith.constant 992 : i32
    %47 = tpu.dynamic_rotate %32 by %c992_i32 dim 1 : vector<8x1024xf32>, i32 -> vector<8x1024xf32>
    %c991_i32 = arith.constant 991 : i32
    %48 = tpu.dynamic_rotate %40 by %c991_i32 dim 1 : vector<8x1024xf32>, i32 -> vector<8x1024xf32>
    %49 = tpu.concatenate %41, %42 in 0 : vector<8x1024xf32>, vector<8x1024xf32> -> vector<16x1024xf32>
    %50 = arith.truncf %49 : vector<16x1024xf32> to vector<16x1024xbf16>
    %c0_18 = arith.constant 0 : index
    %c0_19 = arith.constant 0 : index
    %51 = vector.load %arg14[%c0_18, %c0_19] : memref<72x1024xbf16, #tpu.memory_space<vmem>>, vector<16x1024xbf16>
    tpu.vector_store %arg14[%c0_18, %c0_19], %50 {strides = array<i32>} : memref<72x1024xbf16, #tpu.memory_space<vmem>>, vector<16x1024xbf16>,
    %52 = tpu.concatenate %43, %44 in 0 : vector<8x1024xf32>, vector<8x1024xf32> -> vector<16x1024xf32>
    %53 = arith.truncf %52 : vector<16x1024xf32> to vector<16x1024xbf16>
    %c16 = arith.constant 16 : index
    %c0_20 = arith.constant 0 : index
    %54 = vector.load %arg14[%c16, %c0_20] : memref<72x1024xbf16, #tpu.memory_space<vmem>>, vector<16x1024xbf16>
    tpu.vector_store %arg14[%c16, %c0_20], %53 {strides = array<i32>} : memref<72x1024xbf16, #tpu.memory_space<vmem>>, vector<16x1024xbf16>,
    %55 = tpu.concatenate %32, %45 in 0 : vector<8x1024xf32>, vector<8x1024xf32> -> vector<16x1024xf32>
    %56 = arith.truncf %55 : vector<16x1024xf32> to vector<16x1024xbf16>
    %c32 = arith.constant 32 : index
    %c0_21 = arith.constant 0 : index
    %57 = vector.load %arg14[%c32, %c0_21] : memref<72x1024xbf16, #tpu.memory_space<vmem>>, vector<16x1024xbf16>
    tpu.vector_store %arg14[%c32, %c0_21], %56 {strides = array<i32>} : memref<72x1024xbf16, #tpu.memory_space<vmem>>, vector<16x1024xbf16>,
    %58 = tpu.concatenate %46, %47 in 0 : vector<8x1024xf32>, vector<8x1024xf32> -> vector<16x1024xf32>
    %59 = arith.truncf %58 : vector<16x1024xf32> to vector<16x1024xbf16>
    %c48 = arith.constant 48 : index
    %c0_22 = arith.constant 0 : index
    %60 = vector.load %arg14[%c48, %c0_22] : memref<72x1024xbf16, #tpu.memory_space<vmem>>, vector<16x1024xbf16>
    tpu.vector_store %arg14[%c48, %c0_22], %59 {strides = array<i32>} : memref<72x1024xbf16, #tpu.memory_space<vmem>>, vector<16x1024xbf16>,
    %61 = arith.truncf %48 : vector<8x1024xf32> to vector<8x1024xbf16>
    %c64 = arith.constant 64 : index
    %c0_23 = arith.constant 0 : index
    %62 = vector.load %arg14[%c64, %c0_23] : memref<72x1024xbf16, #tpu.memory_space<vmem>>, vector<8x1024xbf16>
    tpu.vector_store %arg14[%c64, %c0_23], %61 {strides = array<i32>} : memref<72x1024xbf16, #tpu.memory_space<vmem>>, vector<8x1024xbf16>,
    %cst_24 = arith.constant 0.000000e+00 : bf16
    %63 = vector.broadcast %cst_24 : bf16 to vector<24x32xbf16>
    %c0_25 = arith.constant 0 : index
    %c0_26 = arith.constant 0 : index
    %64 = vector.load %arg14[%c0_25, %c0_26] : memref<72x1024xbf16, #tpu.memory_space<vmem>>, vector<24x32xbf16>
    tpu.vector_store %arg14[%c0_25, %c0_26], %63 {strides = array<i32>} : memref<72x1024xbf16, #tpu.memory_space<vmem>>, vector<24x32xbf16>,
    %cst_27 = arith.constant 0.000000e+00 : bf16
    %65 = vector.broadcast %cst_27 : bf16 to vector<24x32xbf16>
    %c48_28 = arith.constant 48 : index
    %c992 = arith.constant 992 : index
    %66 = vector.load %arg14[%c48_28, %c992] : memref<72x1024xbf16, #tpu.memory_space<vmem>>, vector<24x32xbf16>
    tpu.vector_store %arg14[%c48_28, %c992], %65 {strides = array<i32>} : memref<72x1024xbf16, #tpu.memory_space<vmem>>, vector<24x32xbf16>,
    %c0_29 = arith.constant 0 : index
    %c0_30 = arith.constant 0 : index
    %67 = vector.load %arg7[%c0_29, %c0_30] : memref<8x72xbf16, #tpu.memory_space<vmem>>, vector<8x72xbf16>
    %c0_31 = arith.constant 0 : index
    %c0_32 = arith.constant 0 : index
    %68 = vector.load %arg14[%c0_31, %c0_32] : memref<72x1024xbf16, #tpu.memory_space<vmem>>, vector<72x1024xbf16>
    %cst_33 = arith.constant dense<0.000000e+00> : vector<8x1024xf32>
    %69 = tpu.matmul %67, %68, %cst_33 {dimension_numbers = #tpu.dot_dimension_numbers<[1], [0], [0], [1], [0, 0, 1, 1], [], []>} : vector<8x72xbf16>, vector<72x1024xbf16>, vector<8x1024xf32> -> vector<8x1024xf32>
    %c0_34 = arith.constant 0 : index
    %c0_35 = arith.constant 0 : index
    %70 = vector.load %arg8[%c0_34, %c0_35] : memref<8x1xf32, #tpu.memory_space<vmem>>, vector<8x1xf32>
    %71 = vector.broadcast %70 : vector<8x1xf32> to vector<8x1024xf32>
    %72 = arith.addf %69, %71 : vector<8x1024xf32>
    %73 = arith.truncf %72 : vector<8x1024xf32> to vector<8x1024xbf16>
    %c0_36 = arith.constant 0 : index
    %c0_37 = arith.constant 0 : index
    %c0_38 = arith.constant 0 : index
    %74 = vector.load %arg11[%c0_36, %c0_37, %c0_38] : memref<1x8x1024xbf16, #tpu.memory_space<vmem>>, vector<1x8x1024xbf16>
    %75 = vector.shape_cast %74 : vector<1x8x1024xbf16> to vector<8x1024xbf16>
    %76 = vector.shape_cast %73 : vector<8x1024xbf16> to vector<1x8x1024xbf16>
    tpu.vector_store %arg11[%c0_36, %c0_37, %c0_38], %76 {strides = array<i32>} : memref<1x8x1024xbf16, #tpu.memory_space<vmem>>, vector<1x8x1024xbf16>,
    %cst_39 = arith.constant dense<0.000000e+00> : vector<8xf32>
    %77 = vector.multi_reduction <add>, %72, %cst_39 [1] : vector<8x1024xf32> to vector<8xf32>
    %78 = vector.shape_cast %77 : vector<8xf32> to vector<8x1xf32>
    %79 = arith.mulf %72, %72 : vector<8x1024xf32>
    %cst_40 = arith.constant dense<0.000000e+00> : vector<8xf32>
    %80 = vector.multi_reduction <add>, %79, %cst_40 [1] : vector<8x1024xf32> to vector<8xf32>
    %81 = vector.shape_cast %80 : vector<8xf32> to vector<8x1xf32>
    %82 = tpu.concatenate %78, %81 in 1 : vector<8x1xf32>, vector<8x1xf32> -> vector<8x2xf32>
    %c0_41 = arith.constant 0 : index
    %c0_42 = arith.constant 0 : index
    %c0_43 = arith.constant 0 : index
    %83 = vector.load %arg12[%c0_41, %c0_42, %c0_43] : memref<1x8x2xf32, #tpu.memory_space<vmem>>, vector<1x8x2xf32>
    %84 = vector.shape_cast %83 : vector<1x8x2xf32> to vector<8x2xf32>
    %85 = vector.shape_cast %82 : vector<8x2xf32> to vector<1x8x2xf32>
    tpu.vector_store %arg12[%c0_41, %c0_42, %c0_43], %85 {strides = array<i32>} : memref<1x8x2xf32, #tpu.memory_space<vmem>>, vector<1x8x2xf32>,
    %c0_44 = arith.constant 0 : index
    %c0_45 = arith.constant 0 : index
    %86 = vector.load %arg5[%c0_44, %c0_45] : memref<8x1xf32, #tpu.memory_space<vmem>>, vector<8x1xf32>
    %87 = vector.broadcast %86 : vector<8x1xf32> to vector<8x1024xf32>
    %88 = arith.mulf %3, %87 : vector<8x1024xf32>
    %c0_46 = arith.constant 0 : index
    %c0_47 = arith.constant 0 : index
    %89 = vector.load %arg6[%c0_46, %c0_47] : memref<8x1xf32, #tpu.memory_space<vmem>>, vector<8x1xf32>
    %90 = vector.broadcast %89 : vector<8x1xf32> to vector<8x1024xf32>
    %91 = arith.addf %88, %90 : vector<8x1024xf32>
    %cst_48 = arith.constant 0.000000e+00 : f32
    %92 = vector.shape_cast %24 : vector<1x1024xi1> to vector<1x1024xi1>
    %93 = vector.broadcast %92 : vector<1x1024xi1> to vector<8x1024xi1>
    %94 = vector.broadcast %cst_48 : f32 to vector<8x1024xf32>
    %95 = arith.select %93, %94, %91 : vector<8x1024xi1>, vector<8x1024xf32>
    %cst_49 = arith.constant 0.000000e+00 : f32
    %96 = vector.shape_cast %22 : vector<1x1024xi1> to vector<1x1024xi1>
    %97 = vector.broadcast %96 : vector<1x1024xi1> to vector<8x1024xi1>
    %98 = vector.broadcast %cst_49 : f32 to vector<8x1024xf32>
    %99 = arith.select %97, %98, %91 : vector<8x1024xi1>, vector<8x1024xf32>
    %c33_i32_50 = arith.constant 33 : i32
    %100 = tpu.dynamic_rotate %95 by %c33_i32_50 dim 1 : vector<8x1024xf32>, i32 -> vector<8x1024xf32>
    %c32_i32_51 = arith.constant 32 : i32
    %101 = tpu.dynamic_rotate %91 by %c32_i32_51 dim 1 : vector<8x1024xf32>, i32 -> vector<8x1024xf32>
    %c31_i32_52 = arith.constant 31 : i32
    %102 = tpu.dynamic_rotate %99 by %c31_i32_52 dim 1 : vector<8x1024xf32>, i32 -> vector<8x1024xf32>
    %c1_i32_53 = arith.constant 1 : i32
    %103 = tpu.dynamic_rotate %95 by %c1_i32_53 dim 1 : vector<8x1024xf32>, i32 -> vector<8x1024xf32>
    %c1023_i32_54 = arith.constant 1023 : i32
    %104 = tpu.dynamic_rotate %99 by %c1023_i32_54 dim 1 : vector<8x1024xf32>, i32 -> vector<8x1024xf32>
    %c993_i32_55 = arith.constant 993 : i32
    %105 = tpu.dynamic_rotate %95 by %c993_i32_55 dim 1 : vector<8x1024xf32>, i32 -> vector<8x1024xf32>
    %c992_i32_56 = arith.constant 992 : i32
    %106 = tpu.dynamic_rotate %91 by %c992_i32_56 dim 1 : vector<8x1024xf32>, i32 -> vector<8x1024xf32>
    %c991_i32_57 = arith.constant 991 : i32
    %107 = tpu.dynamic_rotate %99 by %c991_i32_57 dim 1 : vector<8x1024xf32>, i32 -> vector<8x1024xf32>
    %108 = tpu.concatenate %100, %101 in 0 : vector<8x1024xf32>, vector<8x1024xf32> -> vector<16x1024xf32>
    %109 = arith.truncf %108 : vector<16x1024xf32> to vector<16x1024xbf16>
    %c0_58 = arith.constant 0 : index
    %c0_59 = arith.constant 0 : index
    %110 = vector.load %arg15[%c0_58, %c0_59] : memref<72x1024xbf16, #tpu.memory_space<vmem>>, vector<16x1024xbf16>
    tpu.vector_store %arg15[%c0_58, %c0_59], %109 {strides = array<i32>} : memref<72x1024xbf16, #tpu.memory_space<vmem>>, vector<16x1024xbf16>,
    %111 = tpu.concatenate %102, %103 in 0 : vector<8x1024xf32>, vector<8x1024xf32> -> vector<16x1024xf32>
    %112 = arith.truncf %111 : vector<16x1024xf32> to vector<16x1024xbf16>
    %c16_60 = arith.constant 16 : index
    %c0_61 = arith.constant 0 : index
    %113 = vector.load %arg15[%c16_60, %c0_61] : memref<72x1024xbf16, #tpu.memory_space<vmem>>, vector<16x1024xbf16>
    tpu.vector_store %arg15[%c16_60, %c0_61], %112 {strides = array<i32>} : memref<72x1024xbf16, #tpu.memory_space<vmem>>, vector<16x1024xbf16>,
    %114 = tpu.concatenate %91, %104 in 0 : vector<8x1024xf32>, vector<8x1024xf32> -> vector<16x1024xf32>
    %115 = arith.truncf %114 : vector<16x1024xf32> to vector<16x1024xbf16>
    %c32_62 = arith.constant 32 : index
    %c0_63 = arith.constant 0 : index
    %116 = vector.load %arg15[%c32_62, %c0_63] : memref<72x1024xbf16, #tpu.memory_space<vmem>>, vector<16x1024xbf16>
    tpu.vector_store %arg15[%c32_62, %c0_63], %115 {strides = array<i32>} : memref<72x1024xbf16, #tpu.memory_space<vmem>>, vector<16x1024xbf16>,
    %117 = tpu.concatenate %105, %106 in 0 : vector<8x1024xf32>, vector<8x1024xf32> -> vector<16x1024xf32>
    %118 = arith.truncf %117 : vector<16x1024xf32> to vector<16x1024xbf16>
    %c48_64 = arith.constant 48 : index
    %c0_65 = arith.constant 0 : index
    %119 = vector.load %arg15[%c48_64, %c0_65] : memref<72x1024xbf16, #tpu.memory_space<vmem>>, vector<16x1024xbf16>
    tpu.vector_store %arg15[%c48_64, %c0_65], %118 {strides = array<i32>} : memref<72x1024xbf16, #tpu.memory_space<vmem>>, vector<16x1024xbf16>,
    %120 = arith.truncf %107 : vector<8x1024xf32> to vector<8x1024xbf16>
    %c64_66 = arith.constant 64 : index
    %c0_67 = arith.constant 0 : index
    %121 = vector.load %arg15[%c64_66, %c0_67] : memref<72x1024xbf16, #tpu.memory_space<vmem>>, vector<8x1024xbf16>
    tpu.vector_store %arg15[%c64_66, %c0_67], %120 {strides = array<i32>} : memref<72x1024xbf16, #tpu.memory_space<vmem>>, vector<8x1024xbf16>,
    %cst_68 = arith.constant 0.000000e+00 : bf16
    %122 = vector.broadcast %cst_68 : bf16 to vector<24x32xbf16>
    %c0_69 = arith.constant 0 : index
    %c0_70 = arith.constant 0 : index
    %123 = vector.load %arg15[%c0_69, %c0_70] : memref<72x1024xbf16, #tpu.memory_space<vmem>>, vector<24x32xbf16>
    tpu.vector_store %arg15[%c0_69, %c0_70], %122 {strides = array<i32>} : memref<72x1024xbf16, #tpu.memory_space<vmem>>, vector<24x32xbf16>,
    %cst_71 = arith.constant 0.000000e+00 : bf16
    %124 = vector.broadcast %cst_71 : bf16 to vector<24x32xbf16>
    %c48_72 = arith.constant 48 : index
    %c992_73 = arith.constant 992 : index
    %125 = vector.load %arg15[%c48_72, %c992_73] : memref<72x1024xbf16, #tpu.memory_space<vmem>>, vector<24x32xbf16>
    tpu.vector_store %arg15[%c48_72, %c992_73], %124 {strides = array<i32>} : memref<72x1024xbf16, #tpu.memory_space<vmem>>, vector<24x32xbf16>,
    %c0_74 = arith.constant 0 : index
    %c0_75 = arith.constant 0 : index
    %126 = vector.load %arg9[%c0_74, %c0_75] : memref<8x72xbf16, #tpu.memory_space<vmem>>, vector<8x72xbf16>
    %c0_76 = arith.constant 0 : index
    %c0_77 = arith.constant 0 : index
    %127 = vector.load %arg15[%c0_76, %c0_77] : memref<72x1024xbf16, #tpu.memory_space<vmem>>, vector<72x1024xbf16>
    %cst_78 = arith.constant dense<0.000000e+00> : vector<8x1024xf32>
    %128 = tpu.matmul %126, %127, %cst_78 {dimension_numbers = #tpu.dot_dimension_numbers<[1], [0], [0], [1], [0, 0, 1, 1], [], []>} : vector<8x72xbf16>, vector<72x1024xbf16>, vector<8x1024xf32> -> vector<8x1024xf32>
    %c0_79 = arith.constant 0 : index
    %c0_80 = arith.constant 0 : index
    %129 = vector.load %arg10[%c0_79, %c0_80] : memref<8x1xf32, #tpu.memory_space<vmem>>, vector<8x1xf32>
    %130 = vector.broadcast %129 : vector<8x1xf32> to vector<8x1024xf32>
    %131 = arith.addf %128, %130 : vector<8x1024xf32>
    %c0_81 = arith.constant 0 : index
    %c0_82 = arith.constant 0 : index
    %c0_83 = arith.constant 0 : index
    %132 = vector.load %arg13[%c0_81, %c0_82, %c0_83] : memref<1x8x1024xf32, #tpu.memory_space<vmem>>, vector<1x8x1024xf32>
    %133 = vector.shape_cast %132 : vector<1x8x1024xf32> to vector<8x1024xf32>
    %134 = vector.shape_cast %131 : vector<8x1024xf32> to vector<1x8x1024xf32>
    tpu.vector_store %arg13[%c0_81, %c0_82, %c0_83], %134 {strides = array<i32>} : memref<1x8x1024xf32, #tpu.memory_space<vmem>>, vector<1x8x1024xf32>,
    return
  }
  func.func @transform_0(%arg0: i32) -> (i32, i32, i32) {
    %c0_i32 = arith.constant 0 : i32
    %c0_i32_0 = arith.constant 0 : i32
    %c0_i32_1 = arith.constant 0 : i32
    return %arg0, %c0_i32, %c0_i32_0 : i32, i32, i32
  }
  func.func @transform_1(%arg0: i32) -> (i32, i32) {
    %c0_i32 = arith.constant 0 : i32
    %c0_i32_0 = arith.constant 0 : i32
    %c0_i32_1 = arith.constant 0 : i32
    return %c0_i32, %c0_i32_0 : i32, i32
  }
  func.func @transform_2(%arg0: i32) -> (i32, i32) {
    %c0_i32 = arith.constant 0 : i32
    %c0_i32_0 = arith.constant 0 : i32
    %c0_i32_1 = arith.constant 0 : i32
    return %c0_i32, %c0_i32_0 : i32, i32
  }
  func.func @transform_3(%arg0: i32) -> (i32, i32) {
    %c0_i32 = arith.constant 0 : i32
    %c0_i32_0 = arith.constant 0 : i32
    %c0_i32_1 = arith.constant 0 : i32
    return %c0_i32, %c0_i32_0 : i32, i32
  }
  func.func @transform_4(%arg0: i32) -> (i32, i32) {
    %c0_i32 = arith.constant 0 : i32
    %c0_i32_0 = arith.constant 0 : i32
    %c0_i32_1 = arith.constant 0 : i32
    return %c0_i32, %c0_i32_0 : i32, i32
  }
  func.func @transform_5(%arg0: i32) -> (i32, i32) {
    %c0_i32 = arith.constant 0 : i32
    %c0_i32_0 = arith.constant 0 : i32
    %c0_i32_1 = arith.constant 0 : i32
    return %c0_i32, %c0_i32_0 : i32, i32
  }
  func.func @transform_6(%arg0: i32) -> (i32, i32) {
    %c0_i32 = arith.constant 0 : i32
    %c0_i32_0 = arith.constant 0 : i32
    %c0_i32_1 = arith.constant 0 : i32
    return %c0_i32, %c0_i32_0 : i32, i32
  }
  func.func @transform_7(%arg0: i32) -> (i32, i32) {
    %c0_i32 = arith.constant 0 : i32
    %c0_i32_0 = arith.constant 0 : i32
    %c0_i32_1 = arith.constant 0 : i32
    return %c0_i32, %c0_i32_0 : i32, i32
  }
  func.func @transform_8(%arg0: i32) -> (i32, i32) {
    %c0_i32 = arith.constant 0 : i32
    %c0_i32_0 = arith.constant 0 : i32
    %c0_i32_1 = arith.constant 0 : i32
    return %c0_i32, %c0_i32_0 : i32, i32
  }
  func.func @transform_9(%arg0: i32) -> (i32, i32) {
    %c0_i32 = arith.constant 0 : i32
    %c0_i32_0 = arith.constant 0 : i32
    %c0_i32_1 = arith.constant 0 : i32
    return %c0_i32, %c0_i32_0 : i32, i32
  }
  func.func @transform_10(%arg0: i32) -> (i32, i32, i32) {
    %c0_i32 = arith.constant 0 : i32
    %c0_i32_0 = arith.constant 0 : i32
    %c0_i32_1 = arith.constant 0 : i32
    return %arg0, %c0_i32, %c0_i32_0 : i32, i32, i32
  }
  func.func @transform_11(%arg0: i32) -> (i32, i32, i32) {
    %c0_i32 = arith.constant 0 : i32
    %c0_i32_0 = arith.constant 0 : i32
    %c0_i32_1 = arith.constant 0 : i32
    return %arg0, %c0_i32, %c0_i32_0 : i32, i32, i32
  }
  func.func @transform_12(%arg0: i32) -> (i32, i32, i32) {
    %c0_i32 = arith.constant 0 : i32
    %c0_i32_0 = arith.constant 0 : i32
    %c0_i32_1 = arith.constant 0 : i32
    return %arg0, %c0_i32, %c0_i32_0 : i32, i32, i32
  }
}

module attributes {stable_mosaic.version = 11 : i64} {
  func.func @_stage2_kernel(%arg0: i32, %arg1: memref<1x8x1024xbf16, #tpu.memory_space<vmem>>, %arg2: memref<1x8x1024xf32, #tpu.memory_space<vmem>>, %arg3: memref<8x1xf32, #tpu.memory_space<vmem>>, %arg4: memref<8x1xf32, #tpu.memory_space<vmem>>, %arg5: memref<8x72xbf16, #tpu.memory_space<vmem>>, %arg6: memref<8x1xf32, #tpu.memory_space<vmem>>, %arg7: memref<1x8x1024xf32, #tpu.memory_space<vmem>>, %arg8: memref<72x1024xbf16, #tpu.memory_space<vmem>>) attributes {dimension_semantics = [#tpu.dimension_semantics<parallel>], iteration_bounds = array<i64: 2>, scalar_prefetch = 0 : i64, scratch_operands = 1 : i64, tpu.core_type = #tpu.core_type<tc>, window_params = [{transform_indices = @transform_0, window_bounds = array<i64: 1, 8, 1024>}, {transform_indices = @transform_1, window_bounds = array<i64: 1, 8, 1024>}, {pipeline_mode = #tpu.pipeline_mode<synchronous>, transform_indices = @transform_2, window_bounds = array<i64: 8, 1>}, {pipeline_mode = #tpu.pipeline_mode<synchronous>, transform_indices = @transform_3, window_bounds = array<i64: 8, 1>}, {pipeline_mode = #tpu.pipeline_mode<synchronous>, transform_indices = @transform_4, window_bounds = array<i64: 8, 72>}, {pipeline_mode = #tpu.pipeline_mode<synchronous>, transform_indices = @transform_5, window_bounds = array<i64: 8, 1>}, {transform_indices = @transform_6, window_bounds = array<i64: 1, 8, 1024>}]} {
    %0 = tpu.iota {dimensions = array<i32: 1>} : vector<1x1024xi32>
    %c32_i32 = arith.constant 32 : i32
    %c0_i32 = arith.constant 0 : i32
    %1 = arith.cmpi eq, %c32_i32, %c0_i32 : i32
    %c1_i32 = arith.constant 1 : i32
    %2 = arith.select %1, %c1_i32, %c32_i32 : i32
    %3 = vector.broadcast %2 : i32 to vector<1x1024xi32>
    %4 = arith.remsi %0, %3 : vector<1x1024xi32>
    %c0_i32_0 = arith.constant 0 : i32
    %5 = vector.broadcast %c0_i32_0 : i32 to vector<1x1024xi32>
    %6 = arith.cmpi ne, %4, %5 : vector<1x1024xi32>
    %c0_i32_1 = arith.constant 0 : i32
    %7 = vector.broadcast %c0_i32_1 : i32 to vector<1x1024xi32>
    %8 = arith.cmpi slt, %4, %7 : vector<1x1024xi32>
    %c0_i32_2 = arith.constant 0 : i32
    %9 = arith.cmpi slt, %2, %c0_i32_2 : i32
    %10 = vector.broadcast %9 : i1 to vector<1x1024xi1>
    %11 = vector.broadcast %10 : vector<1x1024xi1> to vector<1x1024xi1>
    %12 = arith.xori %8, %11 : vector<1x1024xi1>
    %13 = arith.andi %12, %6 : vector<1x1024xi1>
    %14 = vector.broadcast %2 : i32 to vector<1x1024xi32>
    %15 = arith.addi %4, %14 : vector<1x1024xi32>
    %16 = arith.select %13, %15, %4 : vector<1x1024xi1>, vector<1x1024xi32>
    %c0_i32_3 = arith.constant 0 : i32
    %17 = vector.broadcast %c0_i32_3 : i32 to vector<1x1024xi32>
    %18 = arith.cmpi eq, %16, %17 : vector<1x1024xi32>
    %c31_i32 = arith.constant 31 : i32
    %19 = vector.broadcast %c31_i32 : i32 to vector<1x1024xi32>
    %20 = arith.cmpi eq, %16, %19 : vector<1x1024xi32>
    %c0 = arith.constant 0 : index
    %c0_4 = arith.constant 0 : index
    %c0_5 = arith.constant 0 : index
    %21 = vector.load %arg1[%c0, %c0_4, %c0_5] : memref<1x8x1024xbf16, #tpu.memory_space<vmem>>, vector<1x8x1024xbf16>
    %22 = vector.shape_cast %21 : vector<1x8x1024xbf16> to vector<8x1024xbf16>
    %23 = arith.extf %22 : vector<8x1024xbf16> to vector<8x1024xf32>
    %c0_6 = arith.constant 0 : index
    %c0_7 = arith.constant 0 : index
    %24 = vector.load %arg3[%c0_6, %c0_7] : memref<8x1xf32, #tpu.memory_space<vmem>>, vector<8x1xf32>
    %25 = vector.broadcast %24 : vector<8x1xf32> to vector<8x1024xf32>
    %26 = arith.mulf %23, %25 : vector<8x1024xf32>
    %c0_8 = arith.constant 0 : index
    %c0_9 = arith.constant 0 : index
    %27 = vector.load %arg4[%c0_8, %c0_9] : memref<8x1xf32, #tpu.memory_space<vmem>>, vector<8x1xf32>
    %28 = vector.broadcast %27 : vector<8x1xf32> to vector<8x1024xf32>
    %29 = arith.addf %26, %28 : vector<8x1024xf32>
    %cst = arith.constant 0.000000e+00 : f32
    %30 = vector.broadcast %cst : f32 to vector<8x1024xf32>
    %31 = arith.maximumf %29, %30 : vector<8x1024xf32>
    %cst_10 = arith.constant 0.000000e+00 : f32
    %32 = vector.shape_cast %20 : vector<1x1024xi1> to vector<1x1024xi1>
    %33 = vector.broadcast %32 : vector<1x1024xi1> to vector<8x1024xi1>
    %34 = vector.broadcast %cst_10 : f32 to vector<8x1024xf32>
    %35 = arith.select %33, %34, %31 : vector<8x1024xi1>, vector<8x1024xf32>
    %cst_11 = arith.constant 0.000000e+00 : f32
    %36 = vector.shape_cast %18 : vector<1x1024xi1> to vector<1x1024xi1>
    %37 = vector.broadcast %36 : vector<1x1024xi1> to vector<8x1024xi1>
    %38 = vector.broadcast %cst_11 : f32 to vector<8x1024xf32>
    %39 = arith.select %37, %38, %31 : vector<8x1024xi1>, vector<8x1024xf32>
    %c33_i32 = arith.constant 33 : i32
    %40 = tpu.dynamic_rotate %35 by %c33_i32 dim 1 : vector<8x1024xf32>, i32 -> vector<8x1024xf32>
    %c32_i32_12 = arith.constant 32 : i32
    %41 = tpu.dynamic_rotate %31 by %c32_i32_12 dim 1 : vector<8x1024xf32>, i32 -> vector<8x1024xf32>
    %c31_i32_13 = arith.constant 31 : i32
    %42 = tpu.dynamic_rotate %39 by %c31_i32_13 dim 1 : vector<8x1024xf32>, i32 -> vector<8x1024xf32>
    %c1_i32_14 = arith.constant 1 : i32
    %43 = tpu.dynamic_rotate %35 by %c1_i32_14 dim 1 : vector<8x1024xf32>, i32 -> vector<8x1024xf32>
    %c1023_i32 = arith.constant 1023 : i32
    %44 = tpu.dynamic_rotate %39 by %c1023_i32 dim 1 : vector<8x1024xf32>, i32 -> vector<8x1024xf32>
    %c993_i32 = arith.constant 993 : i32
    %45 = tpu.dynamic_rotate %35 by %c993_i32 dim 1 : vector<8x1024xf32>, i32 -> vector<8x1024xf32>
    %c992_i32 = arith.constant 992 : i32
    %46 = tpu.dynamic_rotate %31 by %c992_i32 dim 1 : vector<8x1024xf32>, i32 -> vector<8x1024xf32>
    %c991_i32 = arith.constant 991 : i32
    %47 = tpu.dynamic_rotate %39 by %c991_i32 dim 1 : vector<8x1024xf32>, i32 -> vector<8x1024xf32>
    %48 = tpu.concatenate %40, %41 in 0 : vector<8x1024xf32>, vector<8x1024xf32> -> vector<16x1024xf32>
    %49 = arith.truncf %48 : vector<16x1024xf32> to vector<16x1024xbf16>
    %c0_15 = arith.constant 0 : index
    %c0_16 = arith.constant 0 : index
    %50 = vector.load %arg8[%c0_15, %c0_16] : memref<72x1024xbf16, #tpu.memory_space<vmem>>, vector<16x1024xbf16>
    tpu.vector_store %arg8[%c0_15, %c0_16], %49 {strides = array<i32>} : memref<72x1024xbf16, #tpu.memory_space<vmem>>, vector<16x1024xbf16>,
    %51 = tpu.concatenate %42, %43 in 0 : vector<8x1024xf32>, vector<8x1024xf32> -> vector<16x1024xf32>
    %52 = arith.truncf %51 : vector<16x1024xf32> to vector<16x1024xbf16>
    %c16 = arith.constant 16 : index
    %c0_17 = arith.constant 0 : index
    %53 = vector.load %arg8[%c16, %c0_17] : memref<72x1024xbf16, #tpu.memory_space<vmem>>, vector<16x1024xbf16>
    tpu.vector_store %arg8[%c16, %c0_17], %52 {strides = array<i32>} : memref<72x1024xbf16, #tpu.memory_space<vmem>>, vector<16x1024xbf16>,
    %54 = tpu.concatenate %31, %44 in 0 : vector<8x1024xf32>, vector<8x1024xf32> -> vector<16x1024xf32>
    %55 = arith.truncf %54 : vector<16x1024xf32> to vector<16x1024xbf16>
    %c32 = arith.constant 32 : index
    %c0_18 = arith.constant 0 : index
    %56 = vector.load %arg8[%c32, %c0_18] : memref<72x1024xbf16, #tpu.memory_space<vmem>>, vector<16x1024xbf16>
    tpu.vector_store %arg8[%c32, %c0_18], %55 {strides = array<i32>} : memref<72x1024xbf16, #tpu.memory_space<vmem>>, vector<16x1024xbf16>,
    %57 = tpu.concatenate %45, %46 in 0 : vector<8x1024xf32>, vector<8x1024xf32> -> vector<16x1024xf32>
    %58 = arith.truncf %57 : vector<16x1024xf32> to vector<16x1024xbf16>
    %c48 = arith.constant 48 : index
    %c0_19 = arith.constant 0 : index
    %59 = vector.load %arg8[%c48, %c0_19] : memref<72x1024xbf16, #tpu.memory_space<vmem>>, vector<16x1024xbf16>
    tpu.vector_store %arg8[%c48, %c0_19], %58 {strides = array<i32>} : memref<72x1024xbf16, #tpu.memory_space<vmem>>, vector<16x1024xbf16>,
    %60 = arith.truncf %47 : vector<8x1024xf32> to vector<8x1024xbf16>
    %c64 = arith.constant 64 : index
    %c0_20 = arith.constant 0 : index
    %61 = vector.load %arg8[%c64, %c0_20] : memref<72x1024xbf16, #tpu.memory_space<vmem>>, vector<8x1024xbf16>
    tpu.vector_store %arg8[%c64, %c0_20], %60 {strides = array<i32>} : memref<72x1024xbf16, #tpu.memory_space<vmem>>, vector<8x1024xbf16>,
    %cst_21 = arith.constant 0.000000e+00 : bf16
    %62 = vector.broadcast %cst_21 : bf16 to vector<24x32xbf16>
    %c0_22 = arith.constant 0 : index
    %c0_23 = arith.constant 0 : index
    %63 = vector.load %arg8[%c0_22, %c0_23] : memref<72x1024xbf16, #tpu.memory_space<vmem>>, vector<24x32xbf16>
    tpu.vector_store %arg8[%c0_22, %c0_23], %62 {strides = array<i32>} : memref<72x1024xbf16, #tpu.memory_space<vmem>>, vector<24x32xbf16>,
    %cst_24 = arith.constant 0.000000e+00 : bf16
    %64 = vector.broadcast %cst_24 : bf16 to vector<24x32xbf16>
    %c48_25 = arith.constant 48 : index
    %c992 = arith.constant 992 : index
    %65 = vector.load %arg8[%c48_25, %c992] : memref<72x1024xbf16, #tpu.memory_space<vmem>>, vector<24x32xbf16>
    tpu.vector_store %arg8[%c48_25, %c992], %64 {strides = array<i32>} : memref<72x1024xbf16, #tpu.memory_space<vmem>>, vector<24x32xbf16>,
    %c0_26 = arith.constant 0 : index
    %c0_27 = arith.constant 0 : index
    %66 = vector.load %arg5[%c0_26, %c0_27] : memref<8x72xbf16, #tpu.memory_space<vmem>>, vector<8x72xbf16>
    %c0_28 = arith.constant 0 : index
    %c0_29 = arith.constant 0 : index
    %67 = vector.load %arg8[%c0_28, %c0_29] : memref<72x1024xbf16, #tpu.memory_space<vmem>>, vector<72x1024xbf16>
    %cst_30 = arith.constant dense<0.000000e+00> : vector<8x1024xf32>
    %68 = tpu.matmul %66, %67, %cst_30 {dimension_numbers = #tpu.dot_dimension_numbers<[1], [0], [0], [1], [0, 0, 1, 1], [], []>} : vector<8x72xbf16>, vector<72x1024xbf16>, vector<8x1024xf32> -> vector<8x1024xf32>
    %c0_31 = arith.constant 0 : index
    %c0_32 = arith.constant 0 : index
    %69 = vector.load %arg6[%c0_31, %c0_32] : memref<8x1xf32, #tpu.memory_space<vmem>>, vector<8x1xf32>
    %70 = vector.broadcast %69 : vector<8x1xf32> to vector<8x1024xf32>
    %71 = arith.addf %68, %70 : vector<8x1024xf32>
    %c0_33 = arith.constant 0 : index
    %c0_34 = arith.constant 0 : index
    %c0_35 = arith.constant 0 : index
    %72 = vector.load %arg2[%c0_33, %c0_34, %c0_35] : memref<1x8x1024xf32, #tpu.memory_space<vmem>>, vector<1x8x1024xf32>
    %73 = vector.shape_cast %72 : vector<1x8x1024xf32> to vector<8x1024xf32>
    %74 = arith.addf %71, %73 : vector<8x1024xf32>
    %c0_36 = arith.constant 0 : index
    %c0_37 = arith.constant 0 : index
    %c0_38 = arith.constant 0 : index
    %75 = vector.load %arg7[%c0_36, %c0_37, %c0_38] : memref<1x8x1024xf32, #tpu.memory_space<vmem>>, vector<1x8x1024xf32>
    %76 = vector.shape_cast %75 : vector<1x8x1024xf32> to vector<8x1024xf32>
    %77 = vector.shape_cast %74 : vector<8x1024xf32> to vector<1x8x1024xf32>
    tpu.vector_store %arg7[%c0_36, %c0_37, %c0_38], %77 {strides = array<i32>} : memref<1x8x1024xf32, #tpu.memory_space<vmem>>, vector<1x8x1024xf32>,
    return
  }
  func.func @transform_0(%arg0: i32) -> (i32, i32, i32) {
    %c0_i32 = arith.constant 0 : i32
    %c0_i32_0 = arith.constant 0 : i32
    %c0_i32_1 = arith.constant 0 : i32
    return %arg0, %c0_i32, %c0_i32_0 : i32, i32, i32
  }
  func.func @transform_1(%arg0: i32) -> (i32, i32, i32) {
    %c0_i32 = arith.constant 0 : i32
    %c0_i32_0 = arith.constant 0 : i32
    %c0_i32_1 = arith.constant 0 : i32
    return %arg0, %c0_i32, %c0_i32_0 : i32, i32, i32
  }
  func.func @transform_2(%arg0: i32) -> (i32, i32) {
    %c0_i32 = arith.constant 0 : i32
    %c0_i32_0 = arith.constant 0 : i32
    %c0_i32_1 = arith.constant 0 : i32
    return %c0_i32, %c0_i32_0 : i32, i32
  }
  func.func @transform_3(%arg0: i32) -> (i32, i32) {
    %c0_i32 = arith.constant 0 : i32
    %c0_i32_0 = arith.constant 0 : i32
    %c0_i32_1 = arith.constant 0 : i32
    return %c0_i32, %c0_i32_0 : i32, i32
  }
  func.func @transform_4(%arg0: i32) -> (i32, i32) {
    %c0_i32 = arith.constant 0 : i32
    %c0_i32_0 = arith.constant 0 : i32
    %c0_i32_1 = arith.constant 0 : i32
    return %c0_i32, %c0_i32_0 : i32, i32
  }
  func.func @transform_5(%arg0: i32) -> (i32, i32) {
    %c0_i32 = arith.constant 0 : i32
    %c0_i32_0 = arith.constant 0 : i32
    %c0_i32_1 = arith.constant 0 : i32
    return %c0_i32, %c0_i32_0 : i32, i32
  }
  func.func @transform_6(%arg0: i32) -> (i32, i32, i32) {
    %c0_i32 = arith.constant 0 : i32
    %c0_i32_0 = arith.constant 0 : i32
    %c0_i32_1 = arith.constant 0 : i32
    return %arg0, %c0_i32, %c0_i32_0 : i32, i32, i32
  }
}

</mosaic_0001>

<llo_original>
// kernel: up_s_forward.3
$region0: #{up_s_forward.3}
  #allocation0 [shape = 'u32[]', space=smem, size = 0x4, offset = 0x4, fixed_abs, tag = 'smem constant byte address 0x4 - core index']
  #allocation1 [shape = 'u32[72,128]{1,0:T(1,128)}', space=vmem, size = 0x9000, scoped, tag = 'internal scratch']
  #allocation2 [shape = 'bf16[72,1024]{1,0:T(8,128)(2,1)}', space=vmem, size = 0x24000, scoped, tag = 'scratch operand']
  %s0 = inlined_call_operand.vmem [shape: bf16[2,8,1024], index: 0, kind: input, shape index: {}]
  %s1 = inlined_call_operand.vmem [shape: f32[2,8,1024], index: 1, kind: input, shape index: {}, may-alias: {1,6}]
  %s2 = inlined_call_operand.vmem [shape: f32[8,1], index: 2, kind: input, shape index: {}]
  %s3 = inlined_call_operand.vmem [shape: f32[8,1], index: 3, kind: input, shape index: {}]
  %s4 = inlined_call_operand.vmem [shape: bf16[8,72], index: 4, kind: input, shape index: {}]
  %s5 = inlined_call_operand.vmem [shape: f32[8,1], index: 5, kind: input, shape index: {}]
  %s6 = inlined_call_operand.vmem [shape: f32[2,8,1024], index: 6, kind: output, shape index: {}, may-alias: {1,6}]
  %s7 = sld [smem:[#allocation0]]
  $region57: #{up_s_forward.3} parent=0
    _
  %s9 = ssub.s32 1, %s7
  %s10 = scalar_select 0, %s9, %s7
  loop: start=0, step=1, limit=4
  $region2: #{up_s_forward.3} parent=0 // loop_pre_header
    _
  $region3: #{up_s_forward.3} parent=0 // loop_header
    %s12 = sphi 0, %s16
    %p13 = scmp.ge.s32.totalorder %s12, 4
    %s22 = sphi 0, %s24
    %s25 = sphi 0, %s22
    %s26 = sphi 0, %s25
    %s42 = sphi 0, %s26
    %s48 = sphi 0, %s50
    %s51 = sphi 0, %s48
    %s52 = sphi 0, %s51
    %s68 = sphi 0, %s52
    %s72 = sphi 0, %s72
    %s74 = sphi 0, %s72
    %s75 = sphi 0, %s74
    %s89 = sphi 0, %s75
    %s93 = sphi 0, %s93
    %s95 = sphi 0, %s93
    %s96 = sphi 0, %s95
    %s110 = sphi 0, %s96
    %s114 = sphi 0, %s114
    %s116 = sphi 0, %s114
    %s117 = sphi 0, %s116
    %s131 = sphi 0, %s117
    %s135 = sphi 0, %s135
    %s137 = sphi 0, %s135
    %s138 = sphi 0, %s137
    %s152 = sphi 0, %s138
    %s158 = sphi 0, %s160
    %s161 = sphi 0, %s158
    %s162 = sphi 0, %s161
    %s178 = sphi 0, %s162
  $region4: #{up_s_forward.3} parent=0 // loop_header_branch
    %15 = sbr.rel (%p13) target = $region8
  $region5: #{up_s_forward.3} parent=0 // loop_body
    %s17 = ssub.s32 %s12, 1
    %s18 = ssub.s32 %s12, 2
    %s19 = sadd.s32 %s12, 1
    %s20 = ssub.s32 %s12, %s19
    %p21 = scmp.eq.s32.totalorder %s20, 0
    %s23 = sadd.s32 %s22, 1
    %s24 = scalar_select %p21, %s22, %s23
    %p27 = pneg %p21
    %p28 = scmp.eq.s32.totalorder %s12, 1
    %p29 = por %p27, %p28
    %p30 = scmp.ne.s32.totalorder %s22, %s25
    %p31 = scmp.eq.s32.totalorder %s12, 0
    %p32 = por %p30, %p31
    %p33 = scmp.ne.s32.totalorder %s22, %s25
    %p34 = scmp.eq.s32.totalorder %s17, 1
    %p35 = por %p33, %p34
    %p36 = scmp.ne.s32.totalorder %s25, %s26
    %p37 = scmp.eq.s32.totalorder %s17, 0
    %p38 = por %p36, %p37
    %p39 = scmp.ne.s32.totalorder %s25, %s26
    %p40 = scmp.eq.s32.totalorder %s18, 1
    %p41 = por %p39, %p40
    %p43 = scmp.ne.s32.totalorder %s26, %s42
    %p44 = scmp.eq.s32.totalorder %s18, 0
    %p45 = por %p43, %p44
    %s46 = ssub.s32 %s12, %s19
    %p47 = scmp.eq.s32.totalorder %s46, 0
    %s49 = sadd.s32 %s48, 1
    %s50 = scalar_select %p47, %s48, %s49
    %p53 = pneg %p47
    %p54 = scmp.eq.s32.totalorder %s12, 1
    %p55 = por %p53, %p54
    %p56 = scmp.ne.s32.totalorder %s48, %s51
    %p57 = scmp.eq.s32.totalorder %s12, 0
    %p58 = por %p56, %p57
    %p59 = scmp.ne.s32.totalorder %s48, %s51
    %p60 = scmp.eq.s32.totalorder %s17, 1
    %p61 = por %p59, %p60
    %p62 = scmp.ne.s32.totalorder %s51, %s52
    %p63 = scmp.eq.s32.totalorder %s17, 0
    %p64 = por %p62, %p63
    %p65 = scmp.ne.s32.totalorder %s51, %s52
    %p66 = scmp.eq.s32.totalorder %s18, 1
    %p67 = por %p65, %p66
    %p69 = scmp.ne.s32.totalorder %s52, %s68
    %p70 = scmp.eq.s32.totalorder %s18, 0
    %p71 = por %p69, %p70
    %s73 = sadd.s32 %s72, 1
    %p76 = scmp.eq.s32.totalorder %s12, 1
    %p77 = scmp.ne.s32.totalorder %s72, %s74
    %p78 = scmp.eq.s32.totalorder %s12, 0
    %p79 = por %p77, %p78
    %p80 = scmp.ne.s32.totalorder %s72, %s74
    %p81 = scmp.eq.s32.totalorder %s17, 1
    %p82 = por %p80, %p81
    %p83 = scmp.ne.s32.totalorder %s74, %s75
    %p84 = scmp.eq.s32.totalorder %s17, 0
    %p85 = por %p83, %p84
    %p86 = scmp.ne.s32.totalorder %s74, %s75
    %p87 = scmp.eq.s32.totalorder %s18, 1
    %p88 = por %p86, %p87
    %p90 = scmp.ne.s32.totalorder %s75, %s89
    %p91 = scmp.eq.s32.totalorder %s18, 0
    %p92 = por %p90, %p91
    %s94 = sadd.s32 %s93, 1
    %p97 = scmp.eq.s32.totalorder %s12, 1
    %p98 = scmp.ne.s32.totalorder %s93, %s95
    %p99 = scmp.eq.s32.totalorder %s12, 0
    %p100 = por %p98, %p99
    %p101 = scmp.ne.s32.totalorder %s93, %s95
    %p102 = scmp.eq.s32.totalorder %s17, 1
    %p103 = por %p101, %p102
    %p104 = scmp.ne.s32.totalorder %s95, %s96
    %p105 = scmp.eq.s32.totalorder %s17, 0
    %p106 = por %p104, %p105
    %p107 = scmp.ne.s32.totalorder %s95, %s96
    %p108 = scmp.eq.s32.totalorder %s18, 1
    %p109 = por %p107, %p108
    %p111 = scmp.ne.s32.totalorder %s96, %s110
    %p112 = scmp.eq.s32.totalorder %s18, 0
    %p113 = por %p111, %p112
    %s115 = sadd.s32 %s114, 1
    %p118 = scmp.eq.s32.totalorder %s12, 1
    %p119 = scmp.ne.s32.totalorder %s114, %s116
    %p120 = scmp.eq.s32.totalorder %s12, 0
    %p121 = por %p119, %p120
    %p122 = scmp.ne.s32.totalorder %s114, %s116
    %p123 = scmp.eq.s32.totalorder %s17, 1
    %p124 = por %p122, %p123
    %p125 = scmp.ne.s32.totalorder %s116, %s117
    %p126 = scmp.eq.s32.totalorder %s17, 0
    %p127 = por %p125, %p126
    %p128 = scmp.ne.s32.totalorder %s116, %s117
    %p129 = scmp.eq.s32.totalorder %s18, 1
    %p130 = por %p128, %p129
    %p132 = scmp.ne.s32.totalorder %s117, %s131
    %p133 = scmp.eq.s32.totalorder %s18, 0
    %p134 = por %p132, %p133
    %s136 = sadd.s32 %s135, 1
    %p139 = scmp.eq.s32.totalorder %s12, 1
    %p140 = scmp.ne.s32.totalorder %s135, %s137
    %p141 = scmp.eq.s32.totalorder %s12, 0
    %p142 = por %p140, %p141
    %p143 = scmp.ne.s32.totalorder %s135, %s137
    %p144 = scmp.eq.s32.totalorder %s17, 1
    %p145 = por %p143, %p144
    %p146 = scmp.ne.s32.totalorder %s137, %s138
    %p147 = scmp.eq.s32.totalorder %s17, 0
    %p148 = por %p146, %p147
    %p149 = scmp.ne.s32.totalorder %s137, %s138
    %p150 = scmp.eq.s32.totalorder %s18, 1
    %p151 = por %p149, %p150
    %p153 = scmp.ne.s32.totalorder %s138, %s152
    %p154 = scmp.eq.s32.totalorder %s18, 0
    %p155 = por %p153, %p154
    %s156 = ssub.s32 %s12, %s19
    %p157 = scmp.eq.s32.totalorder %s156, 0
    %s159 = sadd.s32 %s158, 1
    %s160 = scalar_select %p157, %s158, %s159
    %p163 = pneg %p157
    %p164 = scmp.eq.s32.totalorder %s12, 1
    %p165 = por %p163, %p164
    %p166 = scmp.ne.s32.totalorder %s158, %s161
    %p167 = scmp.eq.s32.totalorder %s12, 0
    %p168 = por %p166, %p167
    %p169 = scmp.ne.s32.totalorder %s158, %s161
    %p170 = scmp.eq.s32.totalorder %s17, 1
    %p171 = por %p169, %p170
    %p172 = scmp.ne.s32.totalorder %s161, %s162
    %p173 = scmp.eq.s32.totalorder %s17, 0
    %p174 = por %p172, %p173
    %p175 = scmp.ne.s32.totalorder %s161, %s162
    %p176 = scmp.eq.s32.totalorder %s18, 1
    %p177 = por %p175, %p176
    %p179 = scmp.ne.s32.totalorder %s162, %s178
    %p180 = scmp.eq.s32.totalorder %s18, 0
    %p181 = por %p179, %p180
    %p182 = scmp.le.s32.totalorder 1, %s12
    %p183 = scmp.lt.s32.totalorder %s12, 3
    %p184 = pnand %p182, %p183
    %p185 = pneg %p184
    // Predicated region
    $region9: #{up_s_forward.3} parent=5 // pred_check
      _
    $region10: #{up_s_forward.3} parent=5 // pred_check_branch
      %187 = sbr.rel (%p184) target = $region12
    $region11: #{up_s_forward.3} parent=5 // pred_region
      %s188 = ssub.s32 %s12, 1
      // Predicated region
      $region13: #{up_s_forward.3} parent=11 // pred_check
        %p189 = pneg %p85
      $region14: #{up_s_forward.3} parent=11 // pred_check_branch
        %191 = sbr.rel (%p189) target = $region16
      $region15: #{up_s_forward.3} parent=11 // pred_region
        _
      $region16: #{up_s_forward.3} parent=11 // pred_fallthru
        _
      // Predicated region
      $region17: #{up_s_forward.3} parent=11 // pred_check
        %p192 = pneg %p106
      $region18: #{up_s_forward.3} parent=11 // pred_check_branch
        %194 = sbr.rel (%p192) target = $region20
      $region19: #{up_s_forward.3} parent=11 // pred_region
        _
      $region20: #{up_s_forward.3} parent=11 // pred_fallthru
        _
      // Predicated region
      $region21: #{up_s_forward.3} parent=11 // pred_check
        %p195 = pneg %p127
      $region22: #{up_s_forward.3} parent=11 // pred_check_branch
        %197 = sbr.rel (%p195) target = $region24
      $region23: #{up_s_forward.3} parent=11 // pred_region
        _
      $region24: #{up_s_forward.3} parent=11 // pred_fallthru
        _
      // Predicated region
      $region25: #{up_s_forward.3} parent=11 // pred_check
        %p198 = pneg %p148
      $region26: #{up_s_forward.3} parent=11 // pred_check_branch
        %200 = sbr.rel (%p198) target = $region28
      $region27: #{up_s_forward.3} parent=11 // pred_region
        _
      $region28: #{up_s_forward.3} parent=11 // pred_fallthru
        _
    $region12: #{up_s_forward.3} parent=5 // pred_fallthru
      _
    %p201 = scmp.lt.s32.totalorder %s12, 2
    // Predicated region
    $region29: #{up_s_forward.3} parent=5 // pred_check
      %p202 = pneg %p201
    $region30: #{up_s_forward.3} parent=5 // pred_check_branch
      %204 = sbr.rel (%p202) target = $region32
    $region31: #{up_s_forward.3} parent=5 // pred_region
      // Predicated region
      $region33: #{up_s_forward.3} parent=31 // pred_check
        %p205 = pneg %p32
      $region34: #{up_s_forward.3} parent=31 // pred_check_branch
        %207 = sbr.rel (%p205) target = $region36
      $region35: #{up_s_forward.3} parent=31 // pred_region
        %p208 = scmp.lt.s32.totalorder %s12, 1
        %s209 = scalar_select %p208, %s12, 1
        %s210 = smul.addr %s209, 8
        %s211 = smul.addr %s210, 4
        %s212 = scalar_lea.vmem %s0, %s211
      $region36: #{up_s_forward.3} parent=31 // pred_fallthru
        _
      // Predicated region
      $region37: #{up_s_forward.3} parent=31 // pred_check
        %p213 = pneg %p58
      $region38: #{up_s_forward.3} parent=31 // pred_check_branch
        %215 = sbr.rel (%p213) target = $region40
      $region39: #{up_s_forward.3} parent=31 // pred_region
        %p216 = scmp.lt.s32.totalorder %s12, 1
        %s217 = scalar_select %p216, %s12, 1
        %s218 = smul.addr %s217, 8
        %s219 = smul.addr %s218, 8
        %s220 = scalar_lea.vmem %s1, %s219
      $region40: #{up_s_forward.3} parent=31 // pred_fallthru
        _
    $region32: #{up_s_forward.3} parent=5 // pred_fallthru
      _
    %p221 = scmp.le.s32.totalorder 1, %s12
    %p222 = scmp.lt.s32.totalorder %s12, 3
    %p223 = pnand %p221, %p222
    %p224 = pneg %p223
    // Predicated region
    $region41: #{up_s_forward.3} parent=5 // pred_check
      _
    $region42: #{up_s_forward.3} parent=5 // pred_check_branch
      %226 = sbr.rel (%p223) target = $region44
    $region43: #{up_s_forward.3} parent=5 // pred_region
      %s227 = ssub.s32 %s12, 1
      %p228 = scmp.lt.s32.totalorder %s17, 1
      %s229 = scalar_select %p228, %s17, 1
      %s230 = smul.addr %s229, 8
      %s231 = smul.addr %s230, 4
      %s232 = scalar_lea.vmem %s0, %s231
      %p233 = pneg %p38
      %p234 = pneg %p35
      %p235 = scmp.lt.s32.totalorder %s17, 1
      %s236 = scalar_select %p235, %s17, 1
      %s237 = smul.addr %s236, 8
      %s238 = smul.addr %s237, 8
      %s239 = scalar_lea.vmem %s1, %s238
      %p240 = pneg %p64
      %p241 = pneg %p61
      %p242 = pneg %p85
      %p243 = pneg %p82
      %p244 = pneg %p106
      %p245 = pneg %p103
      %p246 = pneg %p127
      %p247 = pneg %p124
      %p248 = pneg %p148
      %p249 = pneg %p145
      %p250 = pneg %p174
      %p251 = pneg %p171
      %p252 = scmp.lt.s32.totalorder %s17, 1
      %s253 = scalar_select %p252, %s17, 1
      %s254 = smul.addr %s253, 8
      %s255 = smul.addr %s254, 8
      %s256 = scalar_lea.vmem %s6, %s255
      %p257 = scmp.lt.s32.totalorder %s17, 1
      %s258 = scalar_select %p257, %s17, 1
      %s259 = smul.addr %s258, 8
      %s260 = smul.addr %s259, 4
      %s261 = scalar_lea.vmem %s0, %s260
      %p262 = scmp.lt.s32.totalorder %s17, 1
      %s263 = scalar_select %p262, %s17, 1
      %s264 = smul.addr %s263, 8
      %s265 = smul.addr %s264, 8
      %s266 = scalar_lea.vmem %s1, %s265
      %p267 = scmp.lt.s32.totalorder %s17, 1
      %s268 = scalar_select %p267, %s17, 1
      %s269 = smul.addr %s268, 8
      %s270 = smul.addr %s269, 8
      %s271 = scalar_lea.vmem %s6, %s270
      %v273 = vlaneseq
      %v274 = vand.u32 %v273, 127
      %v275 = vadd.s32 %v274, 128
      %v276 = vadd.s32 %v274, 256
      %v277 = vadd.s32 %v274, 384
      %v278 = vadd.s32 %v274, 512
      %v279 = vadd.s32 %v274, 640
      %v280 = vadd.s32 %v274, 768
      %v281 = vadd.s32 %v274, 896
      %vm282 = vcmp.lt.s32.totalorder %v274, 0
      %v283 = vsub.s32 0, %v274
      %v284 = vsel %vm282, %v283, %v274
      %v285 = vshrl.u32 %v284, 5
      %v286 = vand.u32 %v284, 31
      %v287 = vsub.s32 0, %v286
      %v288 = vsel %vm282, %v287, %v286
      %vm289 = vcmp.lt.s32.totalorder %v275, 0
      %v290 = vsub.s32 0, %v275
      %v291 = vsel %vm289, %v290, %v275
      %v292 = vshrl.u32 %v291, 5
      %v293 = vand.u32 %v291, 31
      %v294 = vsub.s32 0, %v293
      %v295 = vsel %vm289, %v294, %v293
      %vm296 = vcmp.lt.s32.totalorder %v276, 0
      %v297 = vsub.s32 0, %v276
      %v298 = vsel %vm296, %v297, %v276
      %v299 = vshrl.u32 %v298, 5
      %v300 = vand.u32 %v298, 31
      %v301 = vsub.s32 0, %v300
      %v302 = vsel %vm296, %v301, %v300
      %vm303 = vcmp.lt.s32.totalorder %v277, 0
      %v304 = vsub.s32 0, %v277
      %v305 = vsel %vm303, %v304, %v277
      %v306 = vshrl.u32 %v305, 5
      %v307 = vand.u32 %v305, 31
      %v308 = vsub.s32 0, %v307
      %v309 = vsel %vm303, %v308, %v307
      %vm310 = vcmp.lt.s32.totalorder %v278, 0
      %v311 = vsub.s32 0, %v278
      %v312 = vsel %vm310, %v311, %v278
      %v313 = vshrl.u32 %v312, 5
      %v314 = vand.u32 %v312, 31
      %v315 = vsub.s32 0, %v314
      %v316 = vsel %vm310, %v315, %v314
      %vm317 = vcmp.lt.s32.totalorder %v279, 0
      %v318 = vsub.s32 0, %v279
      %v319 = vsel %vm317, %v318, %v279
      %v320 = vshrl.u32 %v319, 5
      %v321 = vand.u32 %v319, 31
      %v322 = vsub.s32 0, %v321
      %v323 = vsel %vm317, %v322, %v321
      %vm324 = vcmp.lt.s32.totalorder %v280, 0
      %v325 = vsub.s32 0, %v280
      %v326 = vsel %vm324, %v325, %v280
      %v327 = vshrl.u32 %v326, 5
      %v328 = vand.u32 %v326, 31
      %v329 = vsub.s32 0, %v328
      %v330 = vsel %vm324, %v329, %v328
      %vm331 = vcmp.lt.s32.totalorder %v281, 0
      %v332 = vsub.s32 0, %v281
      %v333 = vsel %vm331, %v332, %v281
      %v334 = vshrl.u32 %v333, 5
      %v335 = vand.u32 %v333, 31
      %v336 = vsub.s32 0, %v335
      %v337 = vsel %vm331, %v336, %v335
      %vm338 = vcmp.ne.s32.totalorder %v288, 0
      %vm339 = vcmp.ne.s32.totalorder %v295, 0
      %vm340 = vcmp.ne.s32.totalorder %v302, 0
      %vm341 = vcmp.ne.s32.totalorder %v309, 0
      %vm342 = vcmp.ne.s32.totalorder %v316, 0
      %vm343 = vcmp.ne.s32.totalorder %v323, 0
      %vm344 = vcmp.ne.s32.totalorder %v330, 0
      %vm345 = vcmp.ne.s32.totalorder %v337, 0
      %vm346 = vcmp.lt.s32.totalorder %v288, 0
      %vm347 = vcmp.lt.s32.totalorder %v295, 0
      %vm348 = vcmp.lt.s32.totalorder %v302, 0
      %vm349 = vcmp.lt.s32.totalorder %v309, 0
      %vm350 = vcmp.lt.s32.totalorder %v316, 0
      %vm351 = vcmp.lt.s32.totalorder %v323, 0
      %vm352 = vcmp.lt.s32.totalorder %v330, 0
      %vm353 = vcmp.lt.s32.totalorder %v337, 0
      %vm354 = vmand %vm346, %vm338
      %vm355 = vmand %vm347, %vm339
      %vm356 = vmand %vm348, %vm340
      %vm357 = vmand %vm349, %vm341
      %vm358 = vmand %vm350, %vm342
      %vm359 = vmand %vm351, %vm343
      %vm360 = vmand %vm352, %vm344
      %vm361 = vmand %vm353, %vm345
      %v362 = vadd.s32 %v288, 32
      %v363 = vadd.s32 %v295, 32
      %v364 = vadd.s32 %v302, 32
      %v365 = vadd.s32 %v309, 32
      %v366 = vadd.s32 %v316, 32
      %v367 = vadd.s32 %v323, 32
      %v368 = vadd.s32 %v330, 32
      %v369 = vadd.s32 %v337, 32
      %v370 = vsel %vm354, %v362, %v288
      %v371 = vsel %vm355, %v363, %v295
      %v372 = vsel %vm356, %v364, %v302
      %v373 = vsel %vm357, %v365, %v309
      %v374 = vsel %vm358, %v366, %v316
      %v375 = vsel %vm359, %v367, %v323
      %v376 = vsel %vm360, %v368, %v330
      %v377 = vsel %vm361, %v369, %v337
      %vm378 = vcmp.eq.s32.totalorder %v370, 0
      %vm379 = vcmp.eq.s32.totalorder %v371, 0
      %vm380 = vcmp.eq.s32.totalorder %v372, 0
      %vm381 = vcmp.eq.s32.totalorder %v373, 0
      %vm382 = vcmp.eq.s32.totalorder %v374, 0
      %vm383 = vcmp.eq.s32.totalorder %v375, 0
      %vm384 = vcmp.eq.s32.totalorder %v376, 0
      %vm385 = vcmp.eq.s32.totalorder %v377, 0
      %vm386 = vcmp.eq.s32.totalorder %v370, 31
      %vm387 = vcmp.eq.s32.totalorder %v371, 31
      %vm388 = vcmp.eq.s32.totalorder %v372, 31
      %vm389 = vcmp.eq.s32.totalorder %v373, 31
      %vm390 = vcmp.eq.s32.totalorder %v374, 31
      %vm391 = vcmp.eq.s32.totalorder %v375, 31
      %vm392 = vcmp.eq.s32.totalorder %v376, 31
      %vm393 = vcmp.eq.s32.totalorder %v377, 31
      %v394 = vld [vmem:[%s261] sm:$0xff]
      %v395 = vld [vmem:[%s261 + $0x8] sm:$0xff]
      %v396 = vld [vmem:[%s261 + $0x10] sm:$0xff]
      %v397 = vld [vmem:[%s261 + $0x18] sm:$0xff]
      %v398 = vunpack.c.l.bf16 %v394
      %v399 = vunpack.c.h.bf16 %v394
      %v400 = vunpack.c.l.bf16 %v395
      %v401 = vunpack.c.h.bf16 %v395
      %v402 = vunpack.c.l.bf16 %v396
      %v403 = vunpack.c.h.bf16 %v396
      %v404 = vunpack.c.l.bf16 %v397
      %v405 = vunpack.c.h.bf16 %v397
      %v406 = vld [vmem:[%s2] sm:$0xff]
      %408 = vset.pattern.permute.xlu0 0
      %409 = vperm.xlu0 %408, %v406
      %v410 = vpop.permute.xlu0 %409
      %v412 = vmul.f32 %v398, %v410
      %v413 = vmul.f32 %v399, %v410
      %v414 = vmul.f32 %v400, %v410
      %v415 = vmul.f32 %v401, %v410
      %v416 = vmul.f32 %v402, %v410
      %v417 = vmul.f32 %v403, %v410
      %v418 = vmul.f32 %v404, %v410
      %v419 = vmul.f32 %v405, %v410
      %v420 = vld [vmem:[%s3] sm:$0xff]
      %422 = vset.pattern.permute.xlu0 0
      %423 = vperm.xlu0 %422, %v420
      %v424 = vpop.permute.xlu0 %423
      %v426 = vadd.f32 %v412, %v424
      %v427 = vadd.f32 %v413, %v424
      %v428 = vadd.f32 %v414, %v424
      %v429 = vadd.f32 %v415, %v424
      %v430 = vadd.f32 %v416, %v424
      %v431 = vadd.f32 %v417, %v424
      %v432 = vadd.f32 %v418, %v424
      %v433 = vadd.f32 %v419, %v424
      %v434 = vmax.f32 %v426, 0.0
      %v435 = vmax.f32 %v427, 0.0
      %v436 = vmax.f32 %v428, 0.0
      %v437 = vmax.f32 %v429, 0.0
      %v438 = vmax.f32 %v430, 0.0
      %v439 = vmax.f32 %v431, 0.0
      %v440 = vmax.f32 %v432, 0.0
      %v441 = vmax.f32 %v433, 0.0
      %v442 = vsel %vm386, 1, 0
      %v443 = vsel %vm387, 1, 0
      %v444 = vsel %vm388, 1, 0
      %v445 = vsel %vm389, 1, 0
      %v446 = vsel %vm390, 1, 0
      %v447 = vsel %vm391, 1, 0
      %v448 = vsel %vm392, 1, 0
      %v449 = vsel %vm393, 1, 0
      %vm450 = vcmp.eq.s32.totalorder %v442, 1
      %vm451 = vcmp.eq.s32.totalorder %v443, 1
      %vm452 = vcmp.eq.s32.totalorder %v444, 1
      %vm453 = vcmp.eq.s32.totalorder %v445, 1
      %vm454 = vcmp.eq.s32.totalorder %v446, 1
      %vm455 = vcmp.eq.s32.totalorder %v447, 1
      %vm456 = vcmp.eq.s32.totalorder %v448, 1
      %vm457 = vcmp.eq.s32.totalorder %v449, 1
      %v458 = vsel %vm450, 0.0, %v434
      %v459 = vsel %vm451, 0.0, %v435
      %v460 = vsel %vm452, 0.0, %v436
      %v461 = vsel %vm453, 0.0, %v437
      %v462 = vsel %vm454, 0.0, %v438
      %v463 = vsel %vm455, 0.0, %v439
      %v464 = vsel %vm456, 0.0, %v440
      %v465 = vsel %vm457, 0.0, %v441
      %v466 = vsel %vm378, 1, 0
      %v467 = vsel %vm379, 1, 0
      %v468 = vsel %vm380, 1, 0
      %v469 = vsel %vm381, 1, 0
      %v470 = vsel %vm382, 1, 0
      %v471 = vsel %vm383, 1, 0
      %v472 = vsel %vm384, 1, 0
      %v473 = vsel %vm385, 1, 0
      %vm474 = vcmp.eq.s32.totalorder %v466, 1
      %vm475 = vcmp.eq.s32.totalorder %v467, 1
      %vm476 = vcmp.eq.s32.totalorder %v468, 1
      %vm477 = vcmp.eq.s32.totalorder %v469, 1
      %vm478 = vcmp.eq.s32.totalorder %v470, 1
      %vm479 = vcmp.eq.s32.totalorder %v471, 1
      %vm480 = vcmp.eq.s32.totalorder %v472, 1
      %vm481 = vcmp.eq.s32.totalorder %v473, 1
      %v482 = vsel %vm474, 0.0, %v434
      %v483 = vsel %vm475, 0.0, %v435
      %v484 = vsel %vm476, 0.0, %v436
      %v485 = vsel %vm477, 0.0, %v437
      %v486 = vsel %vm478, 0.0, %v438
      %v487 = vsel %vm479, 0.0, %v439
      %v488 = vsel %vm480, 0.0, %v440
      %v489 = vsel %vm481, 0.0, %v441
      %490 = vrot.lane.b32.xlu0 %v458, 33
      %v491 = vpop.permute.xlu0 %490
      %492 = vrot.lane.b32.xlu0 %v459, 33
      %v493 = vpop.permute.xlu0 %492
      %494 = vrot.lane.b32.xlu0 %v460, 33
      %v495 = vpop.permute.xlu0 %494
      %496 = vrot.lane.b32.xlu0 %v461, 33
      %v497 = vpop.permute.xlu0 %496
      %498 = vrot.lane.b32.xlu0 %v462, 33
      %v499 = vpop.permute.xlu0 %498
      %500 = vrot.lane.b32.xlu0 %v463, 33
      %v501 = vpop.permute.xlu0 %500
      %502 = vrot.lane.b32.xlu0 %v464, 33
      %v503 = vpop.permute.xlu0 %502
      %504 = vrot.lane.b32.xlu0 %v465, 33
      %v505 = vpop.permute.xlu0 %504
      %vm506 = vcmp.lt.s32.totalorder %v274, 33
      %v507 = vsel %vm506, %v503, %v505
      %v508 = vsel %vm506, %v501, %v503
      %v509 = vsel %vm506, %v499, %v501
      %v510 = vsel %vm506, %v497, %v499
      %v511 = vsel %vm506, %v495, %v497
      %v512 = vsel %vm506, %v493, %v495
      %v513 = vsel %vm506, %v491, %v493
      %v514 = vsel %vm506, %v505, %v491
      %515 = vrot.lane.b32.xlu0 %v434, 32
      %v516 = vpop.permute.xlu0 %515
      %517 = vrot.lane.b32.xlu0 %v435, 32
      %v518 = vpop.permute.xlu0 %517
      %519 = vrot.lane.b32.xlu0 %v436, 32
      %v520 = vpop.permute.xlu0 %519
      %521 = vrot.lane.b32.xlu0 %v437, 32
      %v522 = vpop.permute.xlu0 %521
      %523 = vrot.lane.b32.xlu0 %v438, 32
      %v524 = vpop.permute.xlu0 %523
      %525 = vrot.lane.b32.xlu0 %v439, 32
      %v526 = vpop.permute.xlu0 %525
      %527 = vrot.lane.b32.xlu0 %v440, 32
      %v528 = vpop.permute.xlu0 %527
      %529 = vrot.lane.b32.xlu0 %v441, 32
      %v530 = vpop.permute.xlu0 %529
      %vm531 = vcmp.lt.s32.totalorder %v274, 32
      %v532 = vsel %vm531, %v528, %v530
      %v533 = vsel %vm531, %v526, %v528
      %v534 = vsel %vm531, %v524, %v526
      %v535 = vsel %vm531, %v522, %v524
      %v536 = vsel %vm531, %v520, %v522
      %v537 = vsel %vm531, %v518, %v520
      %v538 = vsel %vm531, %v516, %v518
      %v539 = vsel %vm531, %v530, %v516
      %540 = vrot.lane.b32.xlu0 %v482, 31
      %v541 = vpop.permute.xlu0 %540
      %542 = vrot.lane.b32.xlu0 %v483, 31
      %v543 = vpop.permute.xlu0 %542
      %544 = vrot.lane.b32.xlu0 %v484, 31
      %v545 = vpop.permute.xlu0 %544
      %546 = vrot.lane.b32.xlu0 %v485, 31
      %v547 = vpop.permute.xlu0 %546
      %548 = vrot.lane.b32.xlu0 %v486, 31
      %v549 = vpop.permute.xlu0 %548
      %550 = vrot.lane.b32.xlu0 %v487, 31
      %v551 = vpop.permute.xlu0 %550
      %552 = vrot.lane.b32.xlu0 %v488, 31
      %v553 = vpop.permute.xlu0 %552
      %554 = vrot.lane.b32.xlu0 %v489, 31
      %v555 = vpop.permute.xlu0 %554
      %vm556 = vcmp.lt.s32.totalorder %v274, 31
      %v557 = vsel %vm556, %v553, %v555
      %v558 = vsel %vm556, %v551, %v553
      %v559 = vsel %vm556, %v549, %v551
      %v560 = vsel %vm556, %v547, %v549
      %v561 = vsel %vm556, %v545, %v547
      %v562 = vsel %vm556, %v543, %v545
      %v563 = vsel %vm556, %v541, %v543
      %v564 = vsel %vm556, %v555, %v541
      %565 = vrot.lane.b32.xlu0 %v458, 1
      %v566 = vpop.permute.xlu0 %565
      %567 = vrot.lane.b32.xlu0 %v459, 1
      %v568 = vpop.permute.xlu0 %567
      %569 = vrot.lane.b32.xlu0 %v460, 1
      %v570 = vpop.permute.xlu0 %569
      %571 = vrot.lane.b32.xlu0 %v461, 1
      %v572 = vpop.permute.xlu0 %571
      %573 = vrot.lane.b32.xlu0 %v462, 1
      %v574 = vpop.permute.xlu0 %573
      %575 = vrot.lane.b32.xlu0 %v463, 1
      %v576 = vpop.permute.xlu0 %575
      %577 = vrot.lane.b32.xlu0 %v464, 1
      %v578 = vpop.permute.xlu0 %577
      %579 = vrot.lane.b32.xlu0 %v465, 1
      %v580 = vpop.permute.xlu0 %579
      %vm581 = vcmp.lt.s32.totalorder %v274, 1
      %v582 = vsel %vm581, %v578, %v580
      %v583 = vsel %vm581, %v576, %v578
      %v584 = vsel %vm581, %v574, %v576
      %v585 = vsel %vm581, %v572, %v574
      %v586 = vsel %vm581, %v570, %v572
      %v587 = vsel %vm581, %v568, %v570
      %v588 = vsel %vm581, %v566, %v568
      %v589 = vsel %vm581, %v580, %v566
      %590 = vrot.lane.b32.xlu0 %v482, 127
      %v591 = vpop.permute.xlu0 %590
      %592 = vrot.lane.b32.xlu0 %v483, 127
      %v593 = vpop.permute.xlu0 %592
      %594 = vrot.lane.b32.xlu0 %v484, 127
      %v595 = vpop.permute.xlu0 %594
      %596 = vrot.lane.b32.xlu0 %v485, 127
      %v597 = vpop.permute.xlu0 %596
      %598 = vrot.lane.b32.xlu0 %v486, 127
      %v599 = vpop.permute.xlu0 %598
      %600 = vrot.lane.b32.xlu0 %v487, 127
      %v601 = vpop.permute.xlu0 %600
      %602 = vrot.lane.b32.xlu0 %v488, 127
      %v603 = vpop.permute.xlu0 %602
      %604 = vrot.lane.b32.xlu0 %v489, 127
      %v605 = vpop.permute.xlu0 %604
      %vm606 = vcmp.lt.s32.totalorder %v274, 127
      %v607 = vsel %vm606, %v603, %v605
      %v608 = vsel %vm606, %v601, %v603
      %v609 = vsel %vm606, %v599, %v601
      %v610 = vsel %vm606, %v597, %v599
      %v611 = vsel %vm606, %v595, %v597
      %v612 = vsel %vm606, %v593, %v595
      %v613 = vsel %vm606, %v591, %v593
      %v614 = vsel %vm606, %v605, %v591
      %615 = vrot.lane.b32.xlu0 %v458, 97
      %v616 = vpop.permute.xlu0 %615
      %617 = vrot.lane.b32.xlu0 %v459, 97
      %v618 = vpop.permute.xlu0 %617
      %619 = vrot.lane.b32.xlu0 %v460, 97
      %v620 = vpop.permute.xlu0 %619
      %621 = vrot.lane.b32.xlu0 %v461, 97
      %v622 = vpop.permute.xlu0 %621
      %623 = vrot.lane.b32.xlu0 %v462, 97
      %v624 = vpop.permute.xlu0 %623
      %625 = vrot.lane.b32.xlu0 %v463, 97
      %v626 = vpop.permute.xlu0 %625
      %627 = vrot.lane.b32.xlu0 %v464, 97
      %v628 = vpop.permute.xlu0 %627
      %629 = vrot.lane.b32.xlu0 %v465, 97
      %v630 = vpop.permute.xlu0 %629
      %vm631 = vcmp.lt.s32.totalorder %v274, 97
      %v632 = vsel %vm631, %v628, %v630
      %v633 = vsel %vm631, %v626, %v628
      %v634 = vsel %vm631, %v624, %v626
      %v635 = vsel %vm631, %v622, %v624
      %v636 = vsel %vm631, %v620, %v622
      %v637 = vsel %vm631, %v618, %v620
      %v638 = vsel %vm631, %v616, %v618
      %v639 = vsel %vm631, %v630, %v616
      %640 = vrot.lane.b32.xlu0 %v434, 96
      %v641 = vpop.permute.xlu0 %640
      %642 = vrot.lane.b32.xlu0 %v435, 96
      %v643 = vpop.permute.xlu0 %642
      %644 = vrot.lane.b32.xlu0 %v436, 96
      %v645 = vpop.permute.xlu0 %644
      %646 = vrot.lane.b32.xlu0 %v437, 96
      %v647 = vpop.permute.xlu0 %646
      %648 = vrot.lane.b32.xlu0 %v438, 96
      %v649 = vpop.permute.xlu0 %648
      %650 = vrot.lane.b32.xlu0 %v439, 96
      %v651 = vpop.permute.xlu0 %650
      %652 = vrot.lane.b32.xlu0 %v440, 96
      %v653 = vpop.permute.xlu0 %652
      %654 = vrot.lane.b32.xlu0 %v441, 96
      %v655 = vpop.permute.xlu0 %654
      %vm656 = vcmp.lt.s32.totalorder %v274, 96
      %v657 = vsel %vm656, %v653, %v655
      %v658 = vsel %vm656, %v651, %v653
      %v659 = vsel %vm656, %v649, %v651
      %v660 = vsel %vm656, %v647, %v649
      %v661 = vsel %vm656, %v645, %v647
      %v662 = vsel %vm656, %v643, %v645
      %v663 = vsel %vm656, %v641, %v643
      %v664 = vsel %vm656, %v655, %v641
      %665 = vrot.lane.b32.xlu0 %v482, 95
      %v666 = vpop.permute.xlu0 %665
      %667 = vrot.lane.b32.xlu0 %v483, 95
      %v668 = vpop.permute.xlu0 %667
      %669 = vrot.lane.b32.xlu0 %v484, 95
      %v670 = vpop.permute.xlu0 %669
      %671 = vrot.lane.b32.xlu0 %v485, 95
      %v672 = vpop.permute.xlu0 %671
      %673 = vrot.lane.b32.xlu0 %v486, 95
      %v674 = vpop.permute.xlu0 %673
      %675 = vrot.lane.b32.xlu0 %v487, 95
      %v676 = vpop.permute.xlu0 %675
      %677 = vrot.lane.b32.xlu0 %v488, 95
      %v678 = vpop.permute.xlu0 %677
      %679 = vrot.lane.b32.xlu0 %v489, 95
      %v680 = vpop.permute.xlu0 %679
      %vm681 = vcmp.lt.s32.totalorder %v274, 95
      %v682 = vsel %vm681, %v678, %v680
      %v683 = vsel %vm681, %v676, %v678
      %v684 = vsel %vm681, %v674, %v676
      %v685 = vsel %vm681, %v672, %v674
      %v686 = vsel %vm681, %v670, %v672
      %v687 = vsel %vm681, %v668, %v670
      %v688 = vsel %vm681, %v666, %v668
      %v689 = vsel %vm681, %v680, %v666
      %v690 = vpack.c.bf16 %v513, %v514
      %v691 = vpack.c.bf16 %v511, %v512
      %v692 = vpack.c.bf16 %v509, %v510
      %v693 = vpack.c.bf16 %v507, %v508
      %v694 = vpack.c.bf16 %v538, %v539
      %v695 = vpack.c.bf16 %v536, %v537
      %v696 = vpack.c.bf16 %v534, %v535
      %v697 = vpack.c.bf16 %v532, %v533
      %698 = vst [vmem:[#allocation2] sm:$0xff] %v690
      %699 = vst [vmem:[#allocation2 + $0x8] sm:$0xff] %v691
      %700 = vst [vmem:[#allocation2 + $0x10] sm:$0xff] %v692
      %701 = vst [vmem:[#allocation2 + $0x18] sm:$0xff] %v693
      %702 = vst [vmem:[#allocation2 + $0x20] sm:$0xff] %v694
      %703 = vst [vmem:[#allocation2 + $0x28] sm:$0xff] %v695
      %704 = vst [vmem:[#allocation2 + $0x30] sm:$0xff] %v696
      %705 = vst [vmem:[#allocation2 + $0x38] sm:$0xff] %v697
      %v706 = vpack.c.bf16 %v563, %v564
      %v707 = vpack.c.bf16 %v561, %v562
      %v708 = vpack.c.bf16 %v559, %v560
      %v709 = vpack.c.bf16 %v557, %v558
      %v710 = vpack.c.bf16 %v588, %v589
      %v711 = vpack.c.bf16 %v586, %v587
      %v712 = vpack.c.bf16 %v584, %v585
      %v713 = vpack.c.bf16 %v582, %v583
      %714 = vst [vmem:[#allocation2 + $0x40] sm:$0xff] %v706
      %715 = vst [vmem:[#allocation2 + $0x48] sm:$0xff] %v707
      %716 = vst [vmem:[#allocation2 + $0x50] sm:$0xff] %v708
      %717 = vst [vmem:[#allocation2 + $0x58] sm:$0xff] %v709
      %718 = vst [vmem:[#allocation2 + $0x60] sm:$0xff] %v710
      %719 = vst [vmem:[#allocation2 + $0x68] sm:$0xff] %v711
      %720 = vst [vmem:[#allocation2 + $0x70] sm:$0xff] %v712
      %721 = vst [vmem:[#allocation2 + $0x78] sm:$0xff] %v713
      %v722 = vpack.c.bf16 %v435, %v434
      %v723 = vpack.c.bf16 %v437, %v436
      %v724 = vpack.c.bf16 %v439, %v438
      %v725 = vpack.c.bf16 %v441, %v440
      %v726 = vpack.c.bf16 %v612, %v613
      %v727 = vpack.c.bf16 %v610, %v611
      %v728 = vpack.c.bf16 %v608, %v609
      %v729 = vpack.c.bf16 %v614, %v607
      %730 = vst [vmem:[#allocation2 + $0x80] sm:$0xff] %v722
      %731 = vst [vmem:[#allocation2 + $0x88] sm:$0xff] %v723
      %732 = vst [vmem:[#allocation2 + $0x90] sm:$0xff] %v724
      %733 = vst [vmem:[#allocation2 + $0x98] sm:$0xff] %v725
      %734 = vst [vmem:[#allocation2 + $0xa0] sm:$0xff] %v726
      %735 = vst [vmem:[#allocation2 + $0xa8] sm:$0xff] %v727
      %736 = vst [vmem:[#allocation2 + $0xb0] sm:$0xff] %v728
      %737 = vst [vmem:[#allocation2 + $0xb8] sm:$0xff] %v729
      %v738 = vpack.c.bf16 %v637, %v638
      %v739 = vpack.c.bf16 %v635, %v636
      %v740 = vpack.c.bf16 %v633, %v634
      %v741 = vpack.c.bf16 %v639, %v632
      %v742 = vpack.c.bf16 %v662, %v663
      %v743 = vpack.c.bf16 %v660, %v661
      %v744 = vpack.c.bf16 %v658, %v659
      %v745 = vpack.c.bf16 %v664, %v657
      %746 = vst [vmem:[#allocation2 + $0xc0] sm:$0xff] %v738
      %747 = vst [vmem:[#allocation2 + $0xc8] sm:$0xff] %v739
      %748 = vst [vmem:[#allocation2 + $0xd0] sm:$0xff] %v740
      %749 = vst [vmem:[#allocation2 + $0xd8] sm:$0xff] %v741
      %750 = vst [vmem:[#allocation2 + $0xe0] sm:$0xff] %v742
      %751 = vst [vmem:[#allocation2 + $0xe8] sm:$0xff] %v743
      %752 = vst [vmem:[#allocation2 + $0xf0] sm:$0xff] %v744
      %753 = vst [vmem:[#allocation2 + $0xf8] sm:$0xff] %v745
      %v754 = vpack.c.bf16 %v687, %v688
      %v755 = vpack.c.bf16 %v685, %v686
      %v756 = vpack.c.bf16 %v683, %v684
      %v757 = vpack.c.bf16 %v689, %v682
      %758 = vst [vmem:[#allocation2 + $0x100] sm:$0xff] %v754
      %759 = vst [vmem:[#allocation2 + $0x108] sm:$0xff] %v755
      %760 = vst [vmem:[#allocation2 + $0x110] sm:$0xff] %v756
      %761 = vst [vmem:[#allocation2 + $0x118] sm:$0xff] %v757
      %vm762 = vcmask 257024
      %763 = vst.msk [vmem:[#allocation2] sm:$0xf] %vm762, 0
      %764 = vst.msk [vmem:[#allocation2 + $0x20] sm:$0xf] %vm762, 0
      %765 = vst.msk [vmem:[#allocation2 + $0x40] sm:$0xf] %vm762, 0
      %vm766 = vcmask 1044224
      %767 = vst.msk [vmem:[#allocation2 + $0xdc] sm:$0xf] %vm766, 0
      %768 = vst.msk [vmem:[#allocation2 + $0xfc] sm:$0xf] %vm766, 0
      %769 = vst.msk [vmem:[#allocation2 + $0x11c] sm:$0xf] %vm766, 0
      %v770 = vld [vmem:[%s4] sm:$0xf]
      %v771 = vld [vmem:[#allocation2] sm:$0xff]
      %v772 = vld [vmem:[#allocation2 + $0x8] sm:$0xff]
      %v773 = vld [vmem:[#allocation2 + $0x10] sm:$0xff]
      %v774 = vld [vmem:[#allocation2 + $0x18] sm:$0xff]
      %v775 = vld [vmem:[#allocation2 + $0x20] sm:$0xff]
      %v776 = vld [vmem:[#allocation2 + $0x28] sm:$0xff]
      %v777 = vld [vmem:[#allocation2 + $0x30] sm:$0xff]
      %v778 = vld [vmem:[#allocation2 + $0x38] sm:$0xff]
      %v779 = vld [vmem:[#allocation2 + $0x40] sm:$0xff]
      %v780 = vld [vmem:[#allocation2 + $0x48] sm:$0xff]
      %v781 = vld [vmem:[#allocation2 + $0x50] sm:$0xff]
      %v782 = vld [vmem:[#allocation2 + $0x58] sm:$0xff]
      %v783 = vld [vmem:[#allocation2 + $0x60] sm:$0xff]
      %v784 = vld [vmem:[#allocation2 + $0x68] sm:$0xff]
      %v785 = vld [vmem:[#allocation2 + $0x70] sm:$0xff]
      %v786 = vld [vmem:[#allocation2 + $0x78] sm:$0xff]
      %v787 = vld [vmem:[#allocation2 + $0x80] sm:$0xff]
      %v788 = vld [vmem:[#allocation2 + $0x88] sm:$0xff]
      %v789 = vld [vmem:[#allocation2 + $0x90] sm:$0xff]
      %v790 = vld [vmem:[#allocation2 + $0x98] sm:$0xff]
      %v791 = vld [vmem:[#allocation2 + $0xa0] sm:$0xff]
      %v792 = vld [vmem:[#allocation2 + $0xa8] sm:$0xff]
      %v793 = vld [vmem:[#allocation2 + $0xb0] sm:$0xff]
      %v794 = vld [vmem:[#allocation2 + $0xb8] sm:$0xff]
      %v795 = vld [vmem:[#allocation2 + $0xc0] sm:$0xff]
      %v796 = vld [vmem:[#allocation2 + $0xc8] sm:$0xff]
      %v797 = vld [vmem:[#allocation2 + $0xd0] sm:$0xff]
      %v798 = vld [vmem:[#allocation2 + $0xd8] sm:$0xff]
      %v799 = vld [vmem:[#allocation2 + $0xe0] sm:$0xff]
      %v800 = vld [vmem:[#allocation2 + $0xe8] sm:$0xff]
      %v801 = vld [vmem:[#allocation2 + $0xf0] sm:$0xff]
      %v802 = vld [vmem:[#allocation2 + $0xf8] sm:$0xff]
      %v803 = vld [vmem:[#allocation2 + $0x100] sm:$0xff]
      %v804 = vld [vmem:[#allocation2 + $0x108] sm:$0xff]
      %v805 = vld [vmem:[#allocation2 + $0x110] sm:$0xff]
      %v806 = vld [vmem:[#allocation2 + $0x118] sm:$0xff]
      %v807 = vld [vmem:[%s5] sm:$0xff]
      %809 = vset.pattern.permute.xlu0 0
      %810 = vperm.xlu0 %809, %v807
      %v811 = vpop.permute.xlu0 %810
      %v849 = vunpack.c.l.b16 %v771
      %v850 = vunpack.c.h.b16 %v771
      %v851 = vunpack.c.l.b16 %v772
      %v852 = vunpack.c.h.b16 %v772
      %v853 = vunpack.c.l.b16 %v773
      %v854 = vunpack.c.h.b16 %v773
      %v855 = vunpack.c.l.b16 %v774
      %v856 = vunpack.c.h.b16 %v774
      %v857 = vunpack.c.l.b16 %v775
      %v858 = vunpack.c.h.b16 %v775
      %v859 = vunpack.c.l.b16 %v776
      %v860 = vunpack.c.h.b16 %v776
      %v861 = vunpack.c.l.b16 %v777
      %v862 = vunpack.c.h.b16 %v777
      %v863 = vunpack.c.l.b16 %v778
      %v864 = vunpack.c.h.b16 %v778
      %v865 = vunpack.c.l.b16 %v779
      %v866 = vunpack.c.h.b16 %v779
      %v867 = vunpack.c.l.b16 %v780
      %v868 = vunpack.c.h.b16 %v780
      %v869 = vunpack.c.l.b16 %v781
      %v870 = vunpack.c.h.b16 %v781
      %v871 = vunpack.c.l.b16 %v782
      %v872 = vunpack.c.h.b16 %v782
      %v873 = vunpack.c.l.b16 %v783
      %v874 = vunpack.c.h.b16 %v783
      %v875 = vunpack.c.l.b16 %v784
      %v876 = vunpack.c.h.b16 %v784
      %v877 = vunpack.c.l.b16 %v785
      %v878 = vunpack.c.h.b16 %v785
      %v879 = vunpack.c.l.b16 %v786
      %v880 = vunpack.c.h.b16 %v786
      %v881 = vunpack.c.l.b16 %v787
      %v882 = vunpack.c.h.b16 %v787
      %v883 = vunpack.c.l.b16 %v788
      %v884 = vunpack.c.h.b16 %v788
      %v885 = vunpack.c.l.b16 %v789
      %v886 = vunpack.c.h.b16 %v789
      %v887 = vunpack.c.l.b16 %v790
      %v888 = vunpack.c.h.b16 %v790
      %v889 = vunpack.c.l.b16 %v791
      %v890 = vunpack.c.h.b16 %v791
      %v891 = vunpack.c.l.b16 %v792
      %v892 = vunpack.c.h.b16 %v792
      %v893 = vunpack.c.l.b16 %v793
      %v894 = vunpack.c.h.b16 %v793
      %v895 = vunpack.c.l.b16 %v794
      %v896 = vunpack.c.h.b16 %v794
      %v897 = vunpack.c.l.b16 %v795
      %v898 = vunpack.c.h.b16 %v795
      %v899 = vunpack.c.l.b16 %v796
      %v900 = vunpack.c.h.b16 %v796
      %v901 = vunpack.c.l.b16 %v797
      %v902 = vunpack.c.h.b16 %v797
      %v903 = vunpack.c.l.b16 %v798
      %v904 = vunpack.c.h.b16 %v798
      %v905 = vunpack.c.l.b16 %v799
      %v906 = vunpack.c.h.b16 %v799
      %v907 = vunpack.c.l.b16 %v800
      %v908 = vunpack.c.h.b16 %v800
      %v909 = vunpack.c.l.b16 %v801
      %v910 = vunpack.c.h.b16 %v801
      %v911 = vunpack.c.l.b16 %v802
      %v912 = vunpack.c.h.b16 %v802
      %v913 = vunpack.c.l.b16 %v803
      %v914 = vunpack.c.h.b16 %v803
      %v915 = vunpack.c.l.b16 %v804
      %v916 = vunpack.c.h.b16 %v804
      %v917 = vunpack.c.l.b16 %v805
      %v918 = vunpack.c.h.b16 %v805
      %v919 = vunpack.c.l.b16 %v806
      %v920 = vunpack.c.h.b16 %v806
      %v921 = vpack.c.b16 %v857, %v849
      %v922 = vpack.c.b16 %v858, %v850
      %v923 = vpack.c.b16 %v859, %v851
      %v924 = vpack.c.b16 %v860, %v852
      %v925 = vpack.c.b16 %v861, %v853
      %v926 = vpack.c.b16 %v862, %v854
      %v927 = vpack.c.b16 %v863, %v855
      %v928 = vpack.c.b16 %v864, %v856
      %v929 = vpack.c.b16 %v873, %v865
      %v930 = vpack.c.b16 %v874, %v866
      %v931 = vpack.c.b16 %v875, %v867
      %v932 = vpack.c.b16 %v876, %v868
      %v933 = vpack.c.b16 %v877, %v869
      %v934 = vpack.c.b16 %v878, %v870
      %v935 = vpack.c.b16 %v879, %v871
      %v936 = vpack.c.b16 %v880, %v872
      %v937 = vpack.c.b16 %v889, %v881
      %v938 = vpack.c.b16 %v890, %v882
      %v939 = vpack.c.b16 %v891, %v883
      %v940 = vpack.c.b16 %v892, %v884
      %v941 = vpack.c.b16 %v893, %v885
      %v942 = vpack.c.b16 %v894, %v886
      %v943 = vpack.c.b16 %v895, %v887
      %v944 = vpack.c.b16 %v896, %v888
      %v945 = vpack.c.b16 %v905, %v897
      %v946 = vpack.c.b16 %v906, %v898
      %v947 = vpack.c.b16 %v907, %v899
      %v948 = vpack.c.b16 %v908, %v900
      %v949 = vpack.c.b16 %v909, %v901
      %v950 = vpack.c.b16 %v910, %v902
      %v951 = vpack.c.b16 %v911, %v903
      %v952 = vpack.c.b16 %v912, %v904
      %v953 = vpack.c.b16 %v913, %v913
      %v954 = vpack.c.b16 %v914, %v914
      %v955 = vpack.c.b16 %v915, %v915
      %v956 = vpack.c.b16 %v916, %v916
      %v957 = vpack.c.b16 %v917, %v917
      %v958 = vpack.c.b16 %v918, %v918
      %v959 = vpack.c.b16 %v919, %v919
      %v960 = vpack.c.b16 %v920, %v920
      %vm993 = vcmask 588800
      %v995 = vsel %vm993, %v770, 0
      %vm997 = vcmask 1043456
      %v999 = vsel %vm997, %v953, 0
      %v1002 = vsel %vm997, %v954, 0
      %v1005 = vsel %vm997, %v955, 0
      %v1008 = vsel %vm997, %v956, 0
      %v1011 = vsel %vm997, %v957, 0
      %v1014 = vsel %vm997, %v958, 0
      %v1017 = vsel %vm997, %v959, 0
      %v1020 = vsel %vm997, %v960, 0
      %1022 = vmatpush.bf16.msra.mxu0 0
      %1023 = vmatpush.bf16.msra.mxu0 0
      %1024 = vmatpush.bf16.msra.mxu0 0
      %1025 = vmatpush.bf16.msra.mxu0 %v999
      %1026 = vmatpush.bf16.msra.mxu0 %v945
      %1027 = vmatpush.bf16.msra.mxu0 %v937
      %1028 = vmatpush.bf16.msra.mxu0 %v929
      %1029 = vmatpush.bf16.msra.mxu0 %v921
      %1030 = vmatmul.bf16.gmra.mxu0 %v995
      %v1031 = vpop.f32.mrf.mxu0
      %v1032 = vadd.f32 %v811, %v1031
      %v1033 = vpop.f32.mrf.mxu0
      %1034 = vdwg.mxu0
      %1035 = vmatpush.bf16.msra.mxu0 0
      %1036 = vmatpush.bf16.msra.mxu0 0
      %1037 = vmatpush.bf16.msra.mxu0 0
      %1038 = vmatpush.bf16.msra.mxu0 %v1002
      %1039 = vmatpush.bf16.msra.mxu0 %v946
      %1040 = vmatpush.bf16.msra.mxu0 %v938
      %1041 = vmatpush.bf16.msra.mxu0 %v930
      %1042 = vmatpush.bf16.msra.mxu0 %v922
      %1043 = vmatmul.bf16.gmra.mxu0 %v995
      %v1044 = vpop.f32.mrf.mxu0
      %v1045 = vadd.f32 %v811, %v1044
      %v1046 = vpop.f32.mrf.mxu0
      %1047 = vdwg.mxu0
      %1048 = vmatpush.bf16.msra.mxu0 0
      %1049 = vmatpush.bf16.msra.mxu0 0
      %1050 = vmatpush.bf16.msra.mxu0 0
      %1051 = vmatpush.bf16.msra.mxu0 %v1005
      %1052 = vmatpush.bf16.msra.mxu0 %v947
      %1053 = vmatpush.bf16.msra.mxu0 %v939
      %1054 = vmatpush.bf16.msra.mxu0 %v931
      %1055 = vmatpush.bf16.msra.mxu0 %v923
      %1056 = vmatmul.bf16.gmra.mxu0 %v995
      %v1057 = vpop.f32.mrf.mxu0
      %v1058 = vadd.f32 %v811, %v1057
      %v1059 = vpop.f32.mrf.mxu0
      %1060 = vdwg.mxu0
      %1061 = vmatpush.bf16.msra.mxu0 0
      %1062 = vmatpush.bf16.msra.mxu0 0
      %1063 = vmatpush.bf16.msra.mxu0 0
      %1064 = vmatpush.bf16.msra.mxu0 %v1008
      %1065 = vmatpush.bf16.msra.mxu0 %v948
      %1066 = vmatpush.bf16.msra.mxu0 %v940
      %1067 = vmatpush.bf16.msra.mxu0 %v932
      %1068 = vmatpush.bf16.msra.mxu0 %v924
      %1069 = vmatmul.bf16.gmra.mxu0 %v995
      %v1070 = vpop.f32.mrf.mxu0
      %v1071 = vadd.f32 %v811, %v1070
      %v1072 = vpop.f32.mrf.mxu0
      %1073 = vdwg.mxu0
      %1074 = vmatpush.bf16.msra.mxu0 0
      %1075 = vmatpush.bf16.msra.mxu0 0
      %1076 = vmatpush.bf16.msra.mxu0 0
      %1077 = vmatpush.bf16.msra.mxu0 %v1011
      %1078 = vmatpush.bf16.msra.mxu0 %v949
      %1079 = vmatpush.bf16.msra.mxu0 %v941
      %1080 = vmatpush.bf16.msra.mxu0 %v933
      %1081 = vmatpush.bf16.msra.mxu0 %v925
      %1082 = vmatmul.bf16.gmra.mxu0 %v995
      %v1083 = vpop.f32.mrf.mxu0
      %v1084 = vadd.f32 %v811, %v1083
      %v1085 = vpop.f32.mrf.mxu0
      %1086 = vdwg.mxu0
      %1087 = vmatpush.bf16.msra.mxu0 0
      %1088 = vmatpush.bf16.msra.mxu0 0
      %1089 = vmatpush.bf16.msra.mxu0 0
      %1090 = vmatpush.bf16.msra.mxu0 %v1014
      %1091 = vmatpush.bf16.msra.mxu0 %v950
      %1092 = vmatpush.bf16.msra.mxu0 %v942
      %1093 = vmatpush.bf16.msra.mxu0 %v934
      %1094 = vmatpush.bf16.msra.mxu0 %v926
      %1095 = vmatmul.bf16.gmra.mxu0 %v995
      %v1096 = vpop.f32.mrf.mxu0
      %v1097 = vadd.f32 %v811, %v1096
      %v1098 = vpop.f32.mrf.mxu0
      %1099 = vdwg.mxu0
      %1100 = vmatpush.bf16.msra.mxu0 0
      %1101 = vmatpush.bf16.msra.mxu0 0
      %1102 = vmatpush.bf16.msra.mxu0 0
      %1103 = vmatpush.bf16.msra.mxu0 %v1017
      %1104 = vmatpush.bf16.msra.mxu0 %v951
      %1105 = vmatpush.bf16.msra.mxu0 %v943
      %1106 = vmatpush.bf16.msra.mxu0 %v935
      %1107 = vmatpush.bf16.msra.mxu0 %v927
      %1108 = vmatmul.bf16.gmra.mxu0 %v995
      %v1109 = vpop.f32.mrf.mxu0
      %v1110 = vadd.f32 %v811, %v1109
      %v1111 = vpop.f32.mrf.mxu0
      %1112 = vdwg.mxu0
      %1113 = vmatpush.bf16.msra.mxu0 0
      %1114 = vmatpush.bf16.msra.mxu0 0
      %1115 = vmatpush.bf16.msra.mxu0 0
      %1116 = vmatpush.bf16.msra.mxu0 %v1020
      %1117 = vmatpush.bf16.msra.mxu0 %v952
      %1118 = vmatpush.bf16.msra.mxu0 %v944
      %1119 = vmatpush.bf16.msra.mxu0 %v936
      %1120 = vmatpush.bf16.msra.mxu0 %v928
      %1121 = vmatmul.bf16.gmra.mxu0 %v995
      %v1122 = vpop.f32.mrf.mxu0
      %v1123 = vadd.f32 %v811, %v1122
      %v1124 = vpop.f32.mrf.mxu0
      %1125 = vdwg.mxu0
      %v1126 = vld [vmem:[%s266] sm:$0xff]
      %v1127 = vld [vmem:[%s266 + $0x8] sm:$0xff]
      %v1128 = vld [vmem:[%s266 + $0x10] sm:$0xff]
      %v1129 = vld [vmem:[%s266 + $0x18] sm:$0xff]
      %v1130 = vld [vmem:[%s266 + $0x20] sm:$0xff]
      %v1131 = vld [vmem:[%s266 + $0x28] sm:$0xff]
      %v1132 = vld [vmem:[%s266 + $0x30] sm:$0xff]
      %v1133 = vld [vmem:[%s266 + $0x38] sm:$0xff]
      %v1134 = vadd.f32 %v1032, %v1126
      %v1135 = vadd.f32 %v1045, %v1127
      %v1136 = vadd.f32 %v1058, %v1128
      %v1137 = vadd.f32 %v1071, %v1129
      %v1138 = vadd.f32 %v1084, %v1130
      %v1139 = vadd.f32 %v1097, %v1131
      %v1140 = vadd.f32 %v1110, %v1132
      %v1141 = vadd.f32 %v1123, %v1133
      %1142 = vst [vmem:[%s271] sm:$0xff] %v1134
      %1143 = vst [vmem:[%s271 + $0x8] sm:$0xff] %v1135
      %1144 = vst [vmem:[%s271 + $0x10] sm:$0xff] %v1136
      %1145 = vst [vmem:[%s271 + $0x18] sm:$0xff] %v1137
      %1146 = vst [vmem:[%s271 + $0x20] sm:$0xff] %v1138
      %1147 = vst [vmem:[%s271 + $0x28] sm:$0xff] %v1139
      %1148 = vst [vmem:[%s271 + $0x30] sm:$0xff] %v1140
      %1149 = vst [vmem:[%s271 + $0x38] sm:$0xff] %v1141
      %p1150 = scmp.lt.s32.totalorder %s17, 1
      %s1151 = scalar_select %p1150, %s17, 1
      %s1152 = smul.addr %s1151, 8
      %s1153 = smul.addr %s1152, 8
      %s1154 = scalar_lea.vmem %s6, %s1153
      // Predicated region
      $region45: #{up_s_forward.3} parent=43 // pred_check
        %p1155 = pneg %p171
      $region46: #{up_s_forward.3} parent=43 // pred_check_branch
        %1157 = sbr.rel (%p1155) target = $region48
      $region47: #{up_s_forward.3} parent=43 // pred_region
        _
      $region48: #{up_s_forward.3} parent=43 // pred_fallthru
        _
    $region44: #{up_s_forward.3} parent=5 // pred_fallthru
      _
    %p1158 = scmp.le.s32.totalorder 2, %s12
    // Predicated region
    $region49: #{up_s_forward.3} parent=5 // pred_check
      %p1159 = pneg %p1158
    $region50: #{up_s_forward.3} parent=5 // pred_check_branch
      %1161 = sbr.rel (%p1159) target = $region52
    $region51: #{up_s_forward.3} parent=5 // pred_region
      %s1162 = ssub.s32 %s12, 2
      // Predicated region
      $region53: #{up_s_forward.3} parent=51 // pred_check
        %p1163 = pneg %p177
      $region54: #{up_s_forward.3} parent=51 // pred_check_branch
        %1165 = sbr.rel (%p1163) target = $region56
      $region55: #{up_s_forward.3} parent=51 // pred_region
        %p1166 = scmp.lt.s32.totalorder %s18, 1
        %s1167 = scalar_select %p1166, %s18, 1
        %s1168 = smul.addr %s1167, 8
        %s1169 = smul.addr %s1168, 8
        %s1170 = scalar_lea.vmem %s6, %s1169
      $region56: #{up_s_forward.3} parent=51 // pred_fallthru
        _
    $region52: #{up_s_forward.3} parent=5 // pred_fallthru
      _
  $region6: #{up_s_forward.3} parent=0 // loop_footer
    %s16 = sadd.s32 1, %s12
  $region7: #{up_s_forward.3} parent=0 // loop_footer_branch
    %11 = sbr.rel target = $region3
  $region8: #{up_s_forward.3} parent=0 // loop_exit
    _

// kernel: up_s_forward.2
$region0: #{up_s_forward.2}
  #allocation0 [shape = 'u32[]', space=smem, size = 0x4, offset = 0x4, fixed_abs, tag = 'smem constant byte address 0x4 - core index']
  #allocation1 [shape = 'u32[72,128]{1,0:T(1,128)}', space=vmem, size = 0x9000, scoped, tag = 'internal scratch']
  #allocation2 [shape = 'bf16[72,1024]{1,0:T(8,128)(2,1)}', space=vmem, size = 0x24000, scoped, tag = 'scratch operand']
  #allocation3 [shape = 'bf16[72,1024]{1,0:T(8,128)(2,1)}', space=vmem, size = 0x24000, scoped, tag = 'scratch operand']
  %s0 = inlined_call_operand.vmem [shape: f32[2,8,256], index: 0, kind: input, shape index: {}]
  %s1 = inlined_call_operand.vmem [shape: f32[256,1024], index: 1, kind: input, shape index: {}]
  %s2 = inlined_call_operand.vmem [shape: f32[8,1], index: 2, kind: input, shape index: {}]
  %s3 = inlined_call_operand.vmem [shape: f32[8,1], index: 3, kind: input, shape index: {}]
  %s4 = inlined_call_operand.vmem [shape: f32[8,1], index: 4, kind: input, shape index: {}]
  %s5 = inlined_call_operand.vmem [shape: f32[8,1], index: 5, kind: input, shape index: {}]
  %s6 = inlined_call_operand.vmem [shape: bf16[8,72], index: 6, kind: input, shape index: {}]
  %s7 = inlined_call_operand.vmem [shape: f32[8,1], index: 7, kind: input, shape index: {}]
  %s8 = inlined_call_operand.vmem [shape: bf16[8,72], index: 8, kind: input, shape index: {}]
  %s9 = inlined_call_operand.vmem [shape: f32[8,1], index: 9, kind: input, shape index: {}]
  %s10 = inlined_call_operand.vmem [shape: bf16[2,8,1024], index: 10, kind: output, shape index: {0}]
  %s11 = inlined_call_operand.vmem [shape: f32[2,8,2], index: 11, kind: output, shape index: {1}]
  %s12 = inlined_call_operand.vmem [shape: f32[2,8,1024], index: 12, kind: output, shape index: {2}]
  %13 = xla_tuple %s10, %s11, %s12
  %s14 = sld [smem:[#allocation0]]
  $region89: #{up_s_forward.2} parent=0
    _
  %s16 = ssub.s32 1, %s14
  %s17 = scalar_select 0, %s16, %s14
  loop: start=0, step=1, limit=4
  $region2: #{up_s_forward.2} parent=0 // loop_pre_header
    _
  $region3: #{up_s_forward.2} parent=0 // loop_header
    %s19 = sphi 0, %s23
    %p20 = scmp.ge.s32.totalorder %s19, 4
    %s29 = sphi 0, %s31
    %s32 = sphi 0, %s29
    %s33 = sphi 0, %s32
    %s49 = sphi 0, %s33
    %s53 = sphi 0, %s53
    %s55 = sphi 0, %s53
    %s56 = sphi 0, %s55
    %s70 = sphi 0, %s56
    %s74 = sphi 0, %s74
    %s76 = sphi 0, %s74
    %s77 = sphi 0, %s76
    %s91 = sphi 0, %s77
    %s95 = sphi 0, %s95
    %s97 = sphi 0, %s95
    %s98 = sphi 0, %s97
    %s112 = sphi 0, %s98
    %s116 = sphi 0, %s116
    %s118 = sphi 0, %s116
    %s119 = sphi 0, %s118
    %s133 = sphi 0, %s119
    %s137 = sphi 0, %s137
    %s139 = sphi 0, %s137
    %s140 = sphi 0, %s139
    %s154 = sphi 0, %s140
    %s158 = sphi 0, %s158
    %s160 = sphi 0, %s158
    %s161 = sphi 0, %s160
    %s175 = sphi 0, %s161
    %s179 = sphi 0, %s179
    %s181 = sphi 0, %s179
    %s182 = sphi 0, %s181
    %s196 = sphi 0, %s182
    %s200 = sphi 0, %s200
    %s202 = sphi 0, %s200
    %s203 = sphi 0, %s202
    %s217 = sphi 0, %s203
    %s221 = sphi 0, %s221
    %s223 = sphi 0, %s221
    %s224 = sphi 0, %s223
    %s238 = sphi 0, %s224
    %s244 = sphi 0, %s246
    %s247 = sphi 0, %s244
    %s248 = sphi 0, %s247
    %s264 = sphi 0, %s248
    %s270 = sphi 0, %s272
    %s273 = sphi 0, %s270
    %s274 = sphi 0, %s273
    %s290 = sphi 0, %s274
    %s296 = sphi 0, %s298
    %s299 = sphi 0, %s296
    %s300 = sphi 0, %s299
    %s316 = sphi 0, %s300
  $region4: #{up_s_forward.2} parent=0 // loop_header_branch
    %22 = sbr.rel (%p20) target = $region8
  $region5: #{up_s_forward.2} parent=0 // loop_body
    %s24 = ssub.s32 %s19, 1
    %s25 = ssub.s32 %s19, 2
    %s26 = sadd.s32 %s19, 1
    %s27 = ssub.s32 %s19, %s26
    %p28 = scmp.eq.s32.totalorder %s27, 0
    %s30 = sadd.s32 %s29, 1
    %s31 = scalar_select %p28, %s29, %s30
    %p34 = pneg %p28
    %p35 = scmp.eq.s32.totalorder %s19, 1
    %p36 = por %p34, %p35
    %p37 = scmp.ne.s32.totalorder %s29, %s32
    %p38 = scmp.eq.s32.totalorder %s19, 0
    %p39 = por %p37, %p38
    %p40 = scmp.ne.s32.totalorder %s29, %s32
    %p41 = scmp.eq.s32.totalorder %s24, 1
    %p42 = por %p40, %p41
    %p43 = scmp.ne.s32.totalorder %s32, %s33
    %p44 = scmp.eq.s32.totalorder %s24, 0
    %p45 = por %p43, %p44
    %p46 = scmp.ne.s32.totalorder %s32, %s33
    %p47 = scmp.eq.s32.totalorder %s25, 1
    %p48 = por %p46, %p47
    %p50 = scmp.ne.s32.totalorder %s33, %s49
    %p51 = scmp.eq.s32.totalorder %s25, 0
    %p52 = por %p50, %p51
    %s54 = sadd.s32 %s53, 1
    %p57 = scmp.eq.s32.totalorder %s19, 1
    %p58 = scmp.ne.s32.totalorder %s53, %s55
    %p59 = scmp.eq.s32.totalorder %s19, 0
    %p60 = por %p58, %p59
    %p61 = scmp.ne.s32.totalorder %s53, %s55
    %p62 = scmp.eq.s32.totalorder %s24, 1
    %p63 = por %p61, %p62
    %p64 = scmp.ne.s32.totalorder %s55, %s56
    %p65 = scmp.eq.s32.totalorder %s24, 0
    %p66 = por %p64, %p65
    %p67 = scmp.ne.s32.totalorder %s55, %s56
    %p68 = scmp.eq.s32.totalorder %s25, 1
    %p69 = por %p67, %p68
    %p71 = scmp.ne.s32.totalorder %s56, %s70
    %p72 = scmp.eq.s32.totalorder %s25, 0
    %p73 = por %p71, %p72
    %s75 = sadd.s32 %s74, 1
    %p78 = scmp.eq.s32.totalorder %s19, 1
    %p79 = scmp.ne.s32.totalorder %s74, %s76
    %p80 = scmp.eq.s32.totalorder %s19, 0
    %p81 = por %p79, %p80
    %p82 = scmp.ne.s32.totalorder %s74, %s76
    %p83 = scmp.eq.s32.totalorder %s24, 1
    %p84 = por %p82, %p83
    %p85 = scmp.ne.s32.totalorder %s76, %s77
    %p86 = scmp.eq.s32.totalorder %s24, 0
    %p87 = por %p85, %p86
    %p88 = scmp.ne.s32.totalorder %s76, %s77
    %p89 = scmp.eq.s32.totalorder %s25, 1
    %p90 = por %p88, %p89
    %p92 = scmp.ne.s32.totalorder %s77, %s91
    %p93 = scmp.eq.s32.totalorder %s25, 0
    %p94 = por %p92, %p93
    %s96 = sadd.s32 %s95, 1
    %p99 = scmp.eq.s32.totalorder %s19, 1
    %p100 = scmp.ne.s32.totalorder %s95, %s97
    %p101 = scmp.eq.s32.totalorder %s19, 0
    %p102 = por %p100, %p101
    %p103 = scmp.ne.s32.totalorder %s95, %s97
    %p104 = scmp.eq.s32.totalorder %s24, 1
    %p105 = por %p103, %p104
    %p106 = scmp.ne.s32.totalorder %s97, %s98
    %p107 = scmp.eq.s32.totalorder %s24, 0
    %p108 = por %p106, %p107
    %p109 = scmp.ne.s32.totalorder %s97, %s98
    %p110 = scmp.eq.s32.totalorder %s25, 1
    %p111 = por %p109, %p110
    %p113 = scmp.ne.s32.totalorder %s98, %s112
    %p114 = scmp.eq.s32.totalorder %s25, 0
    %p115 = por %p113, %p114
    %s117 = sadd.s32 %s116, 1
    %p120 = scmp.eq.s32.totalorder %s19, 1
    %p121 = scmp.ne.s32.totalorder %s116, %s118
    %p122 = scmp.eq.s32.totalorder %s19, 0
    %p123 = por %p121, %p122
    %p124 = scmp.ne.s32.totalorder %s116, %s118
    %p125 = scmp.eq.s32.totalorder %s24, 1
    %p126 = por %p124, %p125
    %p127 = scmp.ne.s32.totalorder %s118, %s119
    %p128 = scmp.eq.s32.totalorder %s24, 0
    %p129 = por %p127, %p128
    %p130 = scmp.ne.s32.totalorder %s118, %s119
    %p131 = scmp.eq.s32.totalorder %s25, 1
    %p132 = por %p130, %p131
    %p134 = scmp.ne.s32.totalorder %s119, %s133
    %p135 = scmp.eq.s32.totalorder %s25, 0
    %p136 = por %p134, %p135
    %s138 = sadd.s32 %s137, 1
    %p141 = scmp.eq.s32.totalorder %s19, 1
    %p142 = scmp.ne.s32.totalorder %s137, %s139
    %p143 = scmp.eq.s32.totalorder %s19, 0
    %p144 = por %p142, %p143
    %p145 = scmp.ne.s32.totalorder %s137, %s139
    %p146 = scmp.eq.s32.totalorder %s24, 1
    %p147 = por %p145, %p146
    %p148 = scmp.ne.s32.totalorder %s139, %s140
    %p149 = scmp.eq.s32.totalorder %s24, 0
    %p150 = por %p148, %p149
    %p151 = scmp.ne.s32.totalorder %s139, %s140
    %p152 = scmp.eq.s32.totalorder %s25, 1
    %p153 = por %p151, %p152
    %p155 = scmp.ne.s32.totalorder %s140, %s154
    %p156 = scmp.eq.s32.totalorder %s25, 0
    %p157 = por %p155, %p156
    %s159 = sadd.s32 %s158, 1
    %p162 = scmp.eq.s32.totalorder %s19, 1
    %p163 = scmp.ne.s32.totalorder %s158, %s160
    %p164 = scmp.eq.s32.totalorder %s19, 0
    %p165 = por %p163, %p164
    %p166 = scmp.ne.s32.totalorder %s158, %s160
    %p167 = scmp.eq.s32.totalorder %s24, 1
    %p168 = por %p166, %p167
    %p169 = scmp.ne.s32.totalorder %s160, %s161
    %p170 = scmp.eq.s32.totalorder %s24, 0
    %p171 = por %p169, %p170
    %p172 = scmp.ne.s32.totalorder %s160, %s161
    %p173 = scmp.eq.s32.totalorder %s25, 1
    %p174 = por %p172, %p173
    %p176 = scmp.ne.s32.totalorder %s161, %s175
    %p177 = scmp.eq.s32.totalorder %s25, 0
    %p178 = por %p176, %p177
    %s180 = sadd.s32 %s179, 1
    %p183 = scmp.eq.s32.totalorder %s19, 1
    %p184 = scmp.ne.s32.totalorder %s179, %s181
    %p185 = scmp.eq.s32.totalorder %s19, 0
    %p186 = por %p184, %p185
    %p187 = scmp.ne.s32.totalorder %s179, %s181
    %p188 = scmp.eq.s32.totalorder %s24, 1
    %p189 = por %p187, %p188
    %p190 = scmp.ne.s32.totalorder %s181, %s182
    %p191 = scmp.eq.s32.totalorder %s24, 0
    %p192 = por %p190, %p191
    %p193 = scmp.ne.s32.totalorder %s181, %s182
    %p194 = scmp.eq.s32.totalorder %s25, 1
    %p195 = por %p193, %p194
    %p197 = scmp.ne.s32.totalorder %s182, %s196
    %p198 = scmp.eq.s32.totalorder %s25, 0
    %p199 = por %p197, %p198
    %s201 = sadd.s32 %s200, 1
    %p204 = scmp.eq.s32.totalorder %s19, 1
    %p205 = scmp.ne.s32.totalorder %s200, %s202
    %p206 = scmp.eq.s32.totalorder %s19, 0
    %p207 = por %p205, %p206
    %p208 = scmp.ne.s32.totalorder %s200, %s202
    %p209 = scmp.eq.s32.totalorder %s24, 1
    %p210 = por %p208, %p209
    %p211 = scmp.ne.s32.totalorder %s202, %s203
    %p212 = scmp.eq.s32.totalorder %s24, 0
    %p213 = por %p211, %p212
    %p214 = scmp.ne.s32.totalorder %s202, %s203
    %p215 = scmp.eq.s32.totalorder %s25, 1
    %p216 = por %p214, %p215
    %p218 = scmp.ne.s32.totalorder %s203, %s217
    %p219 = scmp.eq.s32.totalorder %s25, 0
    %p220 = por %p218, %p219
    %s222 = sadd.s32 %s221, 1
    %p225 = scmp.eq.s32.totalorder %s19, 1
    %p226 = scmp.ne.s32.totalorder %s221, %s223
    %p227 = scmp.eq.s32.totalorder %s19, 0
    %p228 = por %p226, %p227
    %p229 = scmp.ne.s32.totalorder %s221, %s223
    %p230 = scmp.eq.s32.totalorder %s24, 1
    %p231 = por %p229, %p230
    %p232 = scmp.ne.s32.totalorder %s223, %s224
    %p233 = scmp.eq.s32.totalorder %s24, 0
    %p234 = por %p232, %p233
    %p235 = scmp.ne.s32.totalorder %s223, %s224
    %p236 = scmp.eq.s32.totalorder %s25, 1
    %p237 = por %p235, %p236
    %p239 = scmp.ne.s32.totalorder %s224, %s238
    %p240 = scmp.eq.s32.totalorder %s25, 0
    %p241 = por %p239, %p240
    %s242 = ssub.s32 %s19, %s26
    %p243 = scmp.eq.s32.totalorder %s242, 0
    %s245 = sadd.s32 %s244, 1
    %s246 = scalar_select %p243, %s244, %s245
    %p249 = pneg %p243
    %p250 = scmp.eq.s32.totalorder %s19, 1
    %p251 = por %p249, %p250
    %p252 = scmp.ne.s32.totalorder %s244, %s247
    %p253 = scmp.eq.s32.totalorder %s19, 0
    %p254 = por %p252, %p253
    %p255 = scmp.ne.s32.totalorder %s244, %s247
    %p256 = scmp.eq.s32.totalorder %s24, 1
    %p257 = por %p255, %p256
    %p258 = scmp.ne.s32.totalorder %s247, %s248
    %p259 = scmp.eq.s32.totalorder %s24, 0
    %p260 = por %p258, %p259
    %p261 = scmp.ne.s32.totalorder %s247, %s248
    %p262 = scmp.eq.s32.totalorder %s25, 1
    %p263 = por %p261, %p262
    %p265 = scmp.ne.s32.totalorder %s248, %s264
    %p266 = scmp.eq.s32.totalorder %s25, 0
    %p267 = por %p265, %p266
    %s268 = ssub.s32 %s19, %s26
    %p269 = scmp.eq.s32.totalorder %s268, 0
    %s271 = sadd.s32 %s270, 1
    %s272 = scalar_select %p269, %s270, %s271
    %p275 = pneg %p269
    %p276 = scmp.eq.s32.totalorder %s19, 1
    %p277 = por %p275, %p276
    %p278 = scmp.ne.s32.totalorder %s270, %s273
    %p279 = scmp.eq.s32.totalorder %s19, 0
    %p280 = por %p278, %p279
    %p281 = scmp.ne.s32.totalorder %s270, %s273
    %p282 = scmp.eq.s32.totalorder %s24, 1
    %p283 = por %p281, %p282
    %p284 = scmp.ne.s32.totalorder %s273, %s274
    %p285 = scmp.eq.s32.totalorder %s24, 0
    %p286 = por %p284, %p285
    %p287 = scmp.ne.s32.totalorder %s273, %s274
    %p288 = scmp.eq.s32.totalorder %s25, 1
    %p289 = por %p287, %p288
    %p291 = scmp.ne.s32.totalorder %s274, %s290
    %p292 = scmp.eq.s32.totalorder %s25, 0
    %p293 = por %p291, %p292
    %s294 = ssub.s32 %s19, %s26
    %p295 = scmp.eq.s32.totalorder %s294, 0
    %s297 = sadd.s32 %s296, 1
    %s298 = scalar_select %p295, %s296, %s297
    %p301 = pneg %p295
    %p302 = scmp.eq.s32.totalorder %s19, 1
    %p303 = por %p301, %p302
    %p304 = scmp.ne.s32.totalorder %s296, %s299
    %p305 = scmp.eq.s32.totalorder %s19, 0
    %p306 = por %p304, %p305
    %p307 = scmp.ne.s32.totalorder %s296, %s299
    %p308 = scmp.eq.s32.totalorder %s24, 1
    %p309 = por %p307, %p308
    %p310 = scmp.ne.s32.totalorder %s299, %s300
    %p311 = scmp.eq.s32.totalorder %s24, 0
    %p312 = por %p310, %p311
    %p313 = scmp.ne.s32.totalorder %s299, %s300
    %p314 = scmp.eq.s32.totalorder %s25, 1
    %p315 = por %p313, %p314
    %p317 = scmp.ne.s32.totalorder %s300, %s316
    %p318 = scmp.eq.s32.totalorder %s25, 0
    %p319 = por %p317, %p318
    %p320 = scmp.le.s32.totalorder 1, %s19
    %p321 = scmp.lt.s32.totalorder %s19, 3
    %p322 = pnand %p320, %p321
    %p323 = pneg %p322
    // Predicated region
    $region9: #{up_s_forward.2} parent=5 // pred_check
      _
    $region10: #{up_s_forward.2} parent=5 // pred_check_branch
      %325 = sbr.rel (%p322) target = $region12
    $region11: #{up_s_forward.2} parent=5 // pred_region
      %s326 = ssub.s32 %s19, 1
      // Predicated region
      $region13: #{up_s_forward.2} parent=11 // pred_check
        %p327 = pneg %p66
      $region14: #{up_s_forward.2} parent=11 // pred_check_branch
        %329 = sbr.rel (%p327) target = $region16
      $region15: #{up_s_forward.2} parent=11 // pred_region
        _
      $region16: #{up_s_forward.2} parent=11 // pred_fallthru
        _
      // Predicated region
      $region17: #{up_s_forward.2} parent=11 // pred_check
        %p330 = pneg %p87
      $region18: #{up_s_forward.2} parent=11 // pred_check_branch
        %332 = sbr.rel (%p330) target = $region20
      $region19: #{up_s_forward.2} parent=11 // pred_region
        _
      $region20: #{up_s_forward.2} parent=11 // pred_fallthru
        _
      // Predicated region
      $region21: #{up_s_forward.2} parent=11 // pred_check
        %p333 = pneg %p108
      $region22: #{up_s_forward.2} parent=11 // pred_check_branch
        %335 = sbr.rel (%p333) target = $region24
      $region23: #{up_s_forward.2} parent=11 // pred_region
        _
      $region24: #{up_s_forward.2} parent=11 // pred_fallthru
        _
      // Predicated region
      $region25: #{up_s_forward.2} parent=11 // pred_check
        %p336 = pneg %p129
      $region26: #{up_s_forward.2} parent=11 // pred_check_branch
        %338 = sbr.rel (%p336) target = $region28
      $region27: #{up_s_forward.2} parent=11 // pred_region
        _
      $region28: #{up_s_forward.2} parent=11 // pred_fallthru
        _
      // Predicated region
      $region29: #{up_s_forward.2} parent=11 // pred_check
        %p339 = pneg %p150
      $region30: #{up_s_forward.2} parent=11 // pred_check_branch
        %341 = sbr.rel (%p339) target = $region32
      $region31: #{up_s_forward.2} parent=11 // pred_region
        _
      $region32: #{up_s_forward.2} parent=11 // pred_fallthru
        _
      // Predicated region
      $region33: #{up_s_forward.2} parent=11 // pred_check
        %p342 = pneg %p171
      $region34: #{up_s_forward.2} parent=11 // pred_check_branch
        %344 = sbr.rel (%p342) target = $region36
      $region35: #{up_s_forward.2} parent=11 // pred_region
        _
      $region36: #{up_s_forward.2} parent=11 // pred_fallthru
        _
      // Predicated region
      $region37: #{up_s_forward.2} parent=11 // pred_check
        %p345 = pneg %p192
      $region38: #{up_s_forward.2} parent=11 // pred_check_branch
        %347 = sbr.rel (%p345) target = $region40
      $region39: #{up_s_forward.2} parent=11 // pred_region
        _
      $region40: #{up_s_forward.2} parent=11 // pred_fallthru
        _
      // Predicated region
      $region41: #{up_s_forward.2} parent=11 // pred_check
        %p348 = pneg %p213
      $region42: #{up_s_forward.2} parent=11 // pred_check_branch
        %350 = sbr.rel (%p348) target = $region44
      $region43: #{up_s_forward.2} parent=11 // pred_region
        _
      $region44: #{up_s_forward.2} parent=11 // pred_fallthru
        _
      // Predicated region
      $region45: #{up_s_forward.2} parent=11 // pred_check
        %p351 = pneg %p234
      $region46: #{up_s_forward.2} parent=11 // pred_check_branch
        %353 = sbr.rel (%p351) target = $region48
      $region47: #{up_s_forward.2} parent=11 // pred_region
        _
      $region48: #{up_s_forward.2} parent=11 // pred_fallthru
        _
    $region12: #{up_s_forward.2} parent=5 // pred_fallthru
      _
    %p354 = scmp.lt.s32.totalorder %s19, 2
    // Predicated region
    $region49: #{up_s_forward.2} parent=5 // pred_check
      %p355 = pneg %p354
    $region50: #{up_s_forward.2} parent=5 // pred_check_branch
      %357 = sbr.rel (%p355) target = $region52
    $region51: #{up_s_forward.2} parent=5 // pred_region
      // Predicated region
      $region53: #{up_s_forward.2} parent=51 // pred_check
        %p358 = pneg %p39
      $region54: #{up_s_forward.2} parent=51 // pred_check_branch
        %360 = sbr.rel (%p358) target = $region56
      $region55: #{up_s_forward.2} parent=51 // pred_region
        %p361 = scmp.lt.s32.totalorder %s19, 1
        %s362 = scalar_select %p361, %s19, 1
        %s363 = smul.addr %s362, 2
        %s364 = smul.addr %s363, 8
        %s365 = scalar_lea.vmem %s0, %s364
      $region56: #{up_s_forward.2} parent=51 // pred_fallthru
        _
    $region52: #{up_s_forward.2} parent=5 // pred_fallthru
      _
    %p366 = scmp.le.s32.totalorder 1, %s19
    %p367 = scmp.lt.s32.totalorder %s19, 3
    %p368 = pnand %p366, %p367
    %p369 = pneg %p368
    // Predicated region
    $region57: #{up_s_forward.2} parent=5 // pred_check
      _
    $region58: #{up_s_forward.2} parent=5 // pred_check_branch
      %371 = sbr.rel (%p368) target = $region60
    $region59: #{up_s_forward.2} parent=5 // pred_region
      %s372 = ssub.s32 %s19, 1
      %p373 = scmp.lt.s32.totalorder %s24, 1
      %s374 = scalar_select %p373, %s24, 1
      %s375 = smul.addr %s374, 2
      %s376 = smul.addr %s375, 8
      %s377 = scalar_lea.vmem %s0, %s376
      %p378 = pneg %p45
      %p379 = pneg %p42
      %p380 = pneg %p66
      %p381 = pneg %p63
      %p382 = pneg %p87
      %p383 = pneg %p84
      %p384 = pneg %p108
      %p385 = pneg %p105
      %p386 = pneg %p129
      %p387 = pneg %p126
      %p388 = pneg %p150
      %p389 = pneg %p147
      %p390 = pneg %p171
      %p391 = pneg %p168
      %p392 = pneg %p192
      %p393 = pneg %p189
      %p394 = pneg %p213
      %p395 = pneg %p210
      %p396 = pneg %p234
      %p397 = pneg %p231
      %p398 = pneg %p260
      %p399 = pneg %p257
      %p400 = scmp.lt.s32.totalorder %s24, 1
      %s401 = scalar_select %p400, %s24, 1
      %s402 = smul.addr %s401, 8
      %s403 = smul.addr %s402, 4
      %s404 = scalar_lea.vmem %s10, %s403
      %p405 = pneg %p286
      %p406 = pneg %p283
      %p407 = scmp.lt.s32.totalorder %s24, 1
      %s408 = scalar_select %p407, %s24, 1
      %s409 = smul.addr %s408, 8
      %s410 = scalar_lea.vmem %s11, %s409
      %p411 = pneg %p312
      %p412 = pneg %p309
      %p413 = scmp.lt.s32.totalorder %s24, 1
      %s414 = scalar_select %p413, %s24, 1
      %s415 = smul.addr %s414, 8
      %s416 = smul.addr %s415, 8
      %s417 = scalar_lea.vmem %s12, %s416
      %p418 = scmp.lt.s32.totalorder %s24, 1
      %s419 = scalar_select %p418, %s24, 1
      %s420 = smul.addr %s419, 2
      %s421 = smul.addr %s420, 8
      %s422 = scalar_lea.vmem %s0, %s421
      %p423 = scmp.lt.s32.totalorder %s24, 1
      %s424 = scalar_select %p423, %s24, 1
      %s425 = smul.addr %s424, 8
      %s426 = smul.addr %s425, 4
      %s427 = scalar_lea.vmem %s10, %s426
      %p428 = scmp.lt.s32.totalorder %s24, 1
      %s429 = scalar_select %p428, %s24, 1
      %s430 = smul.addr %s429, 8
      %s431 = scalar_lea.vmem %s11, %s430
      %p432 = scmp.lt.s32.totalorder %s24, 1
      %s433 = scalar_select %p432, %s24, 1
      %s434 = smul.addr %s433, 8
      %s435 = smul.addr %s434, 8
      %s436 = scalar_lea.vmem %s12, %s435
      %v438 = vld [vmem:[%s422] sm:$0xff]
      %v439 = vld [vmem:[%s422 + $0x8] sm:$0xff]
      %v440 = vld [vmem:[%s1] sm:$0xff]
      %v441 = vld [vmem:[%s1 + $0x8] sm:$0xff]
      %v442 = vld [vmem:[%s1 + $0x10] sm:$0xff]
      %v443 = vld [vmem:[%s1 + $0x18] sm:$0xff]
      %v444 = vld [vmem:[%s1 + $0x20] sm:$0xff]
      %v445 = vld [vmem:[%s1 + $0x28] sm:$0xff]
      %v446 = vld [vmem:[%s1 + $0x30] sm:$0xff]
      %v447 = vld [vmem:[%s1 + $0x38] sm:$0xff]
      %v448 = vld [vmem:[%s1 + $0x40] sm:$0xff]
      %v449 = vld [vmem:[%s1 + $0x48] sm:$0xff]
      %v450 = vld [vmem:[%s1 + $0x50] sm:$0xff]
      %v451 = vld [vmem:[%s1 + $0x58] sm:$0xff]
      %v452 = vld [vmem:[%s1 + $0x60] sm:$0xff]
      %v453 = vld [vmem:[%s1 + $0x68] sm:$0xff]
      %v454 = vld [vmem:[%s1 + $0x70] sm:$0xff]
      %v455 = vld [vmem:[%s1 + $0x78] sm:$0xff]
      %v456 = vld [vmem:[%s1 + $0x80] sm:$0xff]
      %v457 = vld [vmem:[%s1 + $0x88] sm:$0xff]
      %v458 = vld [vmem:[%s1 + $0x90] sm:$0xff]
      %v459 = vld [vmem:[%s1 + $0x98] sm:$0xff]
      %v460 = vld [vmem:[%s1 + $0xa0] sm:$0xff]
      %v461 = vld [vmem:[%s1 + $0xa8] sm:$0xff]
      %v462 = vld [vmem:[%s1 + $0xb0] sm:$0xff]
      %v463 = vld [vmem:[%s1 + $0xb8] sm:$0xff]
      %v464 = vld [vmem:[%s1 + $0xc0] sm:$0xff]
      %v465 = vld [vmem:[%s1 + $0xc8] sm:$0xff]
      %v466 = vld [vmem:[%s1 + $0xd0] sm:$0xff]
      %v467 = vld [vmem:[%s1 + $0xd8] sm:$0xff]
      %v468 = vld [vmem:[%s1 + $0xe0] sm:$0xff]
      %v469 = vld [vmem:[%s1 + $0xe8] sm:$0xff]
      %v470 = vld [vmem:[%s1 + $0xf0] sm:$0xff]
      %v471 = vld [vmem:[%s1 + $0xf8] sm:$0xff]
      %v472 = vld [vmem:[%s1 + $0x100] sm:$0xff]
      %v473 = vld [vmem:[%s1 + $0x108] sm:$0xff]
      %v474 = vld [vmem:[%s1 + $0x110] sm:$0xff]
      %v475 = vld [vmem:[%s1 + $0x118] sm:$0xff]
      %v476 = vld [vmem:[%s1 + $0x120] sm:$0xff]
      %v477 = vld [vmem:[%s1 + $0x128] sm:$0xff]
      %v478 = vld [vmem:[%s1 + $0x130] sm:$0xff]
      %v479 = vld [vmem:[%s1 + $0x138] sm:$0xff]
      %v480 = vld [vmem:[%s1 + $0x140] sm:$0xff]
      %v481 = vld [vmem:[%s1 + $0x148] sm:$0xff]
      %v482 = vld [vmem:[%s1 + $0x150] sm:$0xff]
      %v483 = vld [vmem:[%s1 + $0x158] sm:$0xff]
      %v484 = vld [vmem:[%s1 + $0x160] sm:$0xff]
      %v485 = vld [vmem:[%s1 + $0x168] sm:$0xff]
      %v486 = vld [vmem:[%s1 + $0x170] sm:$0xff]
      %v487 = vld [vmem:[%s1 + $0x178] sm:$0xff]
      %v488 = vld [vmem:[%s1 + $0x180] sm:$0xff]
      %v489 = vld [vmem:[%s1 + $0x188] sm:$0xff]
      %v490 = vld [vmem:[%s1 + $0x190] sm:$0xff]
      %v491 = vld [vmem:[%s1 + $0x198] sm:$0xff]
      %v492 = vld [vmem:[%s1 + $0x1a0] sm:$0xff]
      %v493 = vld [vmem:[%s1 + $0x1a8] sm:$0xff]
      %v494 = vld [vmem:[%s1 + $0x1b0] sm:$0xff]
      %v495 = vld [vmem:[%s1 + $0x1b8] sm:$0xff]
      %v496 = vld [vmem:[%s1 + $0x1c0] sm:$0xff]
      %v497 = vld [vmem:[%s1 + $0x1c8] sm:$0xff]
      %v498 = vld [vmem:[%s1 + $0x1d0] sm:$0xff]
      %v499 = vld [vmem:[%s1 + $0x1d8] sm:$0xff]
      %v500 = vld [vmem:[%s1 + $0x1e0] sm:$0xff]
      %v501 = vld [vmem:[%s1 + $0x1e8] sm:$0xff]
      %v502 = vld [vmem:[%s1 + $0x1f0] sm:$0xff]
      %v503 = vld [vmem:[%s1 + $0x1f8] sm:$0xff]
      %v504 = vld [vmem:[%s1 + $0x200] sm:$0xff]
      %v505 = vld [vmem:[%s1 + $0x208] sm:$0xff]
      %v506 = vld [vmem:[%s1 + $0x210] sm:$0xff]
      %v507 = vld [vmem:[%s1 + $0x218] sm:$0xff]
      %v508 = vld [vmem:[%s1 + $0x220] sm:$0xff]
      %v509 = vld [vmem:[%s1 + $0x228] sm:$0xff]
      %v510 = vld [vmem:[%s1 + $0x230] sm:$0xff]
      %v511 = vld [vmem:[%s1 + $0x238] sm:$0xff]
      %v512 = vld [vmem:[%s1 + $0x240] sm:$0xff]
      %v513 = vld [vmem:[%s1 + $0x248] sm:$0xff]
      %v514 = vld [vmem:[%s1 + $0x250] sm:$0xff]
      %v515 = vld [vmem:[%s1 + $0x258] sm:$0xff]
      %v516 = vld [vmem:[%s1 + $0x260] sm:$0xff]
      %v517 = vld [vmem:[%s1 + $0x268] sm:$0xff]
      %v518 = vld [vmem:[%s1 + $0x270] sm:$0xff]
      %v519 = vld [vmem:[%s1 + $0x278] sm:$0xff]
      %v520 = vld [vmem:[%s1 + $0x280] sm:$0xff]
      %v521 = vld [vmem:[%s1 + $0x288] sm:$0xff]
      %v522 = vld [vmem:[%s1 + $0x290] sm:$0xff]
      %v523 = vld [vmem:[%s1 + $0x298] sm:$0xff]
      %v524 = vld [vmem:[%s1 + $0x2a0] sm:$0xff]
      %v525 = vld [vmem:[%s1 + $0x2a8] sm:$0xff]
      %v526 = vld [vmem:[%s1 + $0x2b0] sm:$0xff]
      %v527 = vld [vmem:[%s1 + $0x2b8] sm:$0xff]
      %v528 = vld [vmem:[%s1 + $0x2c0] sm:$0xff]
      %v529 = vld [vmem:[%s1 + $0x2c8] sm:$0xff]
      %v530 = vld [vmem:[%s1 + $0x2d0] sm:$0xff]
      %v531 = vld [vmem:[%s1 + $0x2d8] sm:$0xff]
      %v532 = vld [vmem:[%s1 + $0x2e0] sm:$0xff]
      %v533 = vld [vmem:[%s1 + $0x2e8] sm:$0xff]
      %v534 = vld [vmem:[%s1 + $0x2f0] sm:$0xff]
      %v535 = vld [vmem:[%s1 + $0x2f8] sm:$0xff]
      %v536 = vld [vmem:[%s1 + $0x300] sm:$0xff]
      %v537 = vld [vmem:[%s1 + $0x308] sm:$0xff]
      %v538 = vld [vmem:[%s1 + $0x310] sm:$0xff]
      %v539 = vld [vmem:[%s1 + $0x318] sm:$0xff]
      %v540 = vld [vmem:[%s1 + $0x320] sm:$0xff]
      %v541 = vld [vmem:[%s1 + $0x328] sm:$0xff]
      %v542 = vld [vmem:[%s1 + $0x330] sm:$0xff]
      %v543 = vld [vmem:[%s1 + $0x338] sm:$0xff]
      %v544 = vld [vmem:[%s1 + $0x340] sm:$0xff]
      %v545 = vld [vmem:[%s1 + $0x348] sm:$0xff]
      %v546 = vld [vmem:[%s1 + $0x350] sm:$0xff]
      %v547 = vld [vmem:[%s1 + $0x358] sm:$0xff]
      %v548 = vld [vmem:[%s1 + $0x360] sm:$0xff]
      %v549 = vld [vmem:[%s1 + $0x368] sm:$0xff]
      %v550 = vld [vmem:[%s1 + $0x370] sm:$0xff]
      %v551 = vld [vmem:[%s1 + $0x378] sm:$0xff]
      %v552 = vld [vmem:[%s1 + $0x380] sm:$0xff]
      %v553 = vld [vmem:[%s1 + $0x388] sm:$0xff]
      %v554 = vld [vmem:[%s1 + $0x390] sm:$0xff]
      %v555 = vld [vmem:[%s1 + $0x398] sm:$0xff]
      %v556 = vld [vmem:[%s1 + $0x3a0] sm:$0xff]
      %v557 = vld [vmem:[%s1 + $0x3a8] sm:$0xff]
      %v558 = vld [vmem:[%s1 + $0x3b0] sm:$0xff]
      %v559 = vld [vmem:[%s1 + $0x3b8] sm:$0xff]
      %v560 = vld [vmem:[%s1 + $0x3c0] sm:$0xff]
      %v561 = vld [vmem:[%s1 + $0x3c8] sm:$0xff]
      %v562 = vld [vmem:[%s1 + $0x3d0] sm:$0xff]
      %v563 = vld [vmem:[%s1 + $0x3d8] sm:$0xff]
      %v564 = vld [vmem:[%s1 + $0x3e0] sm:$0xff]
      %v565 = vld [vmem:[%s1 + $0x3e8] sm:$0xff]
      %v566 = vld [vmem:[%s1 + $0x3f0] sm:$0xff]
      %v567 = vld [vmem:[%s1 + $0x3f8] sm:$0xff]
      %v568 = vld [vmem:[%s1 + $0x400] sm:$0xff]
      %v569 = vld [vmem:[%s1 + $0x408] sm:$0xff]
      %v570 = vld [vmem:[%s1 + $0x410] sm:$0xff]
      %v571 = vld [vmem:[%s1 + $0x418] sm:$0xff]
      %v572 = vld [vmem:[%s1 + $0x420] sm:$0xff]
      %v573 = vld [vmem:[%s1 + $0x428] sm:$0xff]
      %v574 = vld [vmem:[%s1 + $0x430] sm:$0xff]
      %v575 = vld [vmem:[%s1 + $0x438] sm:$0xff]
      %v576 = vld [vmem:[%s1 + $0x440] sm:$0xff]
      %v577 = vld [vmem:[%s1 + $0x448] sm:$0xff]
      %v578 = vld [vmem:[%s1 + $0x450] sm:$0xff]
      %v579 = vld [vmem:[%s1 + $0x458] sm:$0xff]
      %v580 = vld [vmem:[%s1 + $0x460] sm:$0xff]
      %v581 = vld [vmem:[%s1 + $0x468] sm:$0xff]
      %v582 = vld [vmem:[%s1 + $0x470] sm:$0xff]
      %v583 = vld [vmem:[%s1 + $0x478] sm:$0xff]
      %v584 = vld [vmem:[%s1 + $0x480] sm:$0xff]
      %v585 = vld [vmem:[%s1 + $0x488] sm:$0xff]
      %v586 = vld [vmem:[%s1 + $0x490] sm:$0xff]
      %v587 = vld [vmem:[%s1 + $0x498] sm:$0xff]
      %v588 = vld [vmem:[%s1 + $0x4a0] sm:$0xff]
      %v589 = vld [vmem:[%s1 + $0x4a8] sm:$0xff]
      %v590 = vld [vmem:[%s1 + $0x4b0] sm:$0xff]
      %v591 = vld [vmem:[%s1 + $0x4b8] sm:$0xff]
      %v592 = vld [vmem:[%s1 + $0x4c0] sm:$0xff]
      %v593 = vld [vmem:[%s1 + $0x4c8] sm:$0xff]
      %v594 = vld [vmem:[%s1 + $0x4d0] sm:$0xff]
      %v595 = vld [vmem:[%s1 + $0x4d8] sm:$0xff]
      %v596 = vld [vmem:[%s1 + $0x4e0] sm:$0xff]
      %v597 = vld [vmem:[%s1 + $0x4e8] sm:$0xff]
      %v598 = vld [vmem:[%s1 + $0x4f0] sm:$0xff]
      %v599 = vld [vmem:[%s1 + $0x4f8] sm:$0xff]
      %v600 = vld [vmem:[%s1 + $0x500] sm:$0xff]
      %v601 = vld [vmem:[%s1 + $0x508] sm:$0xff]
      %v602 = vld [vmem:[%s1 + $0x510] sm:$0xff]
      %v603 = vld [vmem:[%s1 + $0x518] sm:$0xff]
      %v604 = vld [vmem:[%s1 + $0x520] sm:$0xff]
      %v605 = vld [vmem:[%s1 + $0x528] sm:$0xff]
      %v606 = vld [vmem:[%s1 + $0x530] sm:$0xff]
      %v607 = vld [vmem:[%s1 + $0x538] sm:$0xff]
      %v608 = vld [vmem:[%s1 + $0x540] sm:$0xff]
      %v609 = vld [vmem:[%s1 + $0x548] sm:$0xff]
      %v610 = vld [vmem:[%s1 + $0x550] sm:$0xff]
      %v611 = vld [vmem:[%s1 + $0x558] sm:$0xff]
      %v612 = vld [vmem:[%s1 + $0x560] sm:$0xff]
      %v613 = vld [vmem:[%s1 + $0x568] sm:$0xff]
      %v614 = vld [vmem:[%s1 + $0x570] sm:$0xff]
      %v615 = vld [vmem:[%s1 + $0x578] sm:$0xff]
      %v616 = vld [vmem:[%s1 + $0x580] sm:$0xff]
      %v617 = vld [vmem:[%s1 + $0x588] sm:$0xff]
      %v618 = vld [vmem:[%s1 + $0x590] sm:$0xff]
      %v619 = vld [vmem:[%s1 + $0x598] sm:$0xff]
      %v620 = vld [vmem:[%s1 + $0x5a0] sm:$0xff]
      %v621 = vld [vmem:[%s1 + $0x5a8] sm:$0xff]
      %v622 = vld [vmem:[%s1 + $0x5b0] sm:$0xff]
      %v623 = vld [vmem:[%s1 + $0x5b8] sm:$0xff]
      %v624 = vld [vmem:[%s1 + $0x5c0] sm:$0xff]
      %v625 = vld [vmem:[%s1 + $0x5c8] sm:$0xff]
      %v626 = vld [vmem:[%s1 + $0x5d0] sm:$0xff]
      %v627 = vld [vmem:[%s1 + $0x5d8] sm:$0xff]
      %v628 = vld [vmem:[%s1 + $0x5e0] sm:$0xff]
      %v629 = vld [vmem:[%s1 + $0x5e8] sm:$0xff]
      %v630 = vld [vmem:[%s1 + $0x5f0] sm:$0xff]
      %v631 = vld [vmem:[%s1 + $0x5f8] sm:$0xff]
      %v632 = vld [vmem:[%s1 + $0x600] sm:$0xff]
      %v633 = vld [vmem:[%s1 + $0x608] sm:$0xff]
      %v634 = vld [vmem:[%s1 + $0x610] sm:$0xff]
      %v635 = vld [vmem:[%s1 + $0x618] sm:$0xff]
      %v636 = vld [vmem:[%s1 + $0x620] sm:$0xff]
      %v637 = vld [vmem:[%s1 + $0x628] sm:$0xff]
      %v638 = vld [vmem:[%s1 + $0x630] sm:$0xff]
      %v639 = vld [vmem:[%s1 + $0x638] sm:$0xff]
      %v640 = vld [vmem:[%s1 + $0x640] sm:$0xff]
      %v641 = vld [vmem:[%s1 + $0x648] sm:$0xff]
      %v642 = vld [vmem:[%s1 + $0x650] sm:$0xff]
      %v643 = vld [vmem:[%s1 + $0x658] sm:$0xff]
      %v644 = vld [vmem:[%s1 + $0x660] sm:$0xff]
      %v645 = vld [vmem:[%s1 + $0x668] sm:$0xff]
      %v646 = vld [vmem:[%s1 + $0x670] sm:$0xff]
      %v647 = vld [vmem:[%s1 + $0x678] sm:$0xff]
      %v648 = vld [vmem:[%s1 + $0x680] sm:$0xff]
      %v649 = vld [vmem:[%s1 + $0x688] sm:$0xff]
      %v650 = vld [vmem:[%s1 + $0x690] sm:$0xff]
      %v651 = vld [vmem:[%s1 + $0x698] sm:$0xff]
      %v652 = vld [vmem:[%s1 + $0x6a0] sm:$0xff]
      %v653 = vld [vmem:[%s1 + $0x6a8] sm:$0xff]
      %v654 = vld [vmem:[%s1 + $0x6b0] sm:$0xff]
      %v655 = vld [vmem:[%s1 + $0x6b8] sm:$0xff]
      %v656 = vld [vmem:[%s1 + $0x6c0] sm:$0xff]
      %v657 = vld [vmem:[%s1 + $0x6c8] sm:$0xff]
      %v658 = vld [vmem:[%s1 + $0x6d0] sm:$0xff]
      %v659 = vld [vmem:[%s1 + $0x6d8] sm:$0xff]
      %v660 = vld [vmem:[%s1 + $0x6e0] sm:$0xff]
      %v661 = vld [vmem:[%s1 + $0x6e8] sm:$0xff]
      %v662 = vld [vmem:[%s1 + $0x6f0] sm:$0xff]
      %v663 = vld [vmem:[%s1 + $0x6f8] sm:$0xff]
      %v664 = vld [vmem:[%s1 + $0x700] sm:$0xff]
      %v665 = vld [vmem:[%s1 + $0x708] sm:$0xff]
      %v666 = vld [vmem:[%s1 + $0x710] sm:$0xff]
      %v667 = vld [vmem:[%s1 + $0x718] sm:$0xff]
      %v668 = vld [vmem:[%s1 + $0x720] sm:$0xff]
      %v669 = vld [vmem:[%s1 + $0x728] sm:$0xff]
      %v670 = vld [vmem:[%s1 + $0x730] sm:$0xff]
      %v671 = vld [vmem:[%s1 + $0x738] sm:$0xff]
      %v672 = vld [vmem:[%s1 + $0x740] sm:$0xff]
      %v673 = vld [vmem:[%s1 + $0x748] sm:$0xff]
      %v674 = vld [vmem:[%s1 + $0x750] sm:$0xff]
      %v675 = vld [vmem:[%s1 + $0x758] sm:$0xff]
      %v676 = vld [vmem:[%s1 + $0x760] sm:$0xff]
      %v677 = vld [vmem:[%s1 + $0x768] sm:$0xff]
      %v678 = vld [vmem:[%s1 + $0x770] sm:$0xff]
      %v679 = vld [vmem:[%s1 + $0x778] sm:$0xff]
      %v680 = vld [vmem:[%s1 + $0x780] sm:$0xff]
      %v681 = vld [vmem:[%s1 + $0x788] sm:$0xff]
      %v682 = vld [vmem:[%s1 + $0x790] sm:$0xff]
      %v683 = vld [vmem:[%s1 + $0x798] sm:$0xff]
      %v684 = vld [vmem:[%s1 + $0x7a0] sm:$0xff]
      %v685 = vld [vmem:[%s1 + $0x7a8] sm:$0xff]
      %v686 = vld [vmem:[%s1 + $0x7b0] sm:$0xff]
      %v687 = vld [vmem:[%s1 + $0x7b8] sm:$0xff]
      %v688 = vld [vmem:[%s1 + $0x7c0] sm:$0xff]
      %v689 = vld [vmem:[%s1 + $0x7c8] sm:$0xff]
      %v690 = vld [vmem:[%s1 + $0x7d0] sm:$0xff]
      %v691 = vld [vmem:[%s1 + $0x7d8] sm:$0xff]
      %v692 = vld [vmem:[%s1 + $0x7e0] sm:$0xff]
      %v693 = vld [vmem:[%s1 + $0x7e8] sm:$0xff]
      %v694 = vld [vmem:[%s1 + $0x7f0] sm:$0xff]
      %v695 = vld [vmem:[%s1 + $0x7f8] sm:$0xff]
      %696 = vmatpush.msra.mxu0 %v560
      %697 = vmatpush.msra.mxu0 %v552
      %698 = vmatpush.msra.mxu0 %v544
      %699 = vmatpush.msra.mxu0 %v536
      %700 = vmatpush.msra.mxu0 %v528
      %701 = vmatpush.msra.mxu0 %v520
      %702 = vmatpush.msra.mxu0 %v512
      %703 = vmatpush.msra.mxu0 %v504
      %704 = vmatpush.msra.mxu0 %v496
      %705 = vmatpush.msra.mxu0 %v488
      %706 = vmatpush.msra.mxu0 %v480
      %707 = vmatpush.msra.mxu0 %v472
      %708 = vmatpush.msra.mxu0 %v464
      %709 = vmatpush.msra.mxu0 %v456
      %710 = vmatpush.msra.mxu0 %v448
      %711 = vmatpush.msra.mxu0 %v440
      %712 = vmatmul.f32.gmra.mxu0 %v438
      %v713 = vpop.f32.mrf.mxu0
      %v714 = vadd.f32 0.0, %v713
      %715 = vdwg.mxu0
      %716 = vmatpush.msra.mxu0 %v688
      %717 = vmatpush.msra.mxu0 %v680
      %718 = vmatpush.msra.mxu0 %v672
      %719 = vmatpush.msra.mxu0 %v664
      %720 = vmatpush.msra.mxu0 %v656
      %721 = vmatpush.msra.mxu0 %v648
      %722 = vmatpush.msra.mxu0 %v640
      %723 = vmatpush.msra.mxu0 %v632
      %724 = vmatpush.msra.mxu0 %v624
      %725 = vmatpush.msra.mxu0 %v616
      %726 = vmatpush.msra.mxu0 %v608
      %727 = vmatpush.msra.mxu0 %v600
      %728 = vmatpush.msra.mxu0 %v592
      %729 = vmatpush.msra.mxu0 %v584
      %730 = vmatpush.msra.mxu0 %v576
      %731 = vmatpush.msra.mxu0 %v568
      %732 = vmatmul.f32.gmra.mxu0 %v439
      %v733 = vpop.f32.mrf.mxu0
      %v734 = vadd.f32 %v714, %v733
      %735 = vdwg.mxu0
      %736 = vmatpush.msra.mxu0 %v561
      %737 = vmatpush.msra.mxu0 %v553
      %738 = vmatpush.msra.mxu0 %v545
      %739 = vmatpush.msra.mxu0 %v537
      %740 = vmatpush.msra.mxu0 %v529
      %741 = vmatpush.msra.mxu0 %v521
      %742 = vmatpush.msra.mxu0 %v513
      %743 = vmatpush.msra.mxu0 %v505
      %744 = vmatpush.msra.mxu0 %v497
      %745 = vmatpush.msra.mxu0 %v489
      %746 = vmatpush.msra.mxu0 %v481
      %747 = vmatpush.msra.mxu0 %v473
      %748 = vmatpush.msra.mxu0 %v465
      %749 = vmatpush.msra.mxu0 %v457
      %750 = vmatpush.msra.mxu0 %v449
      %751 = vmatpush.msra.mxu0 %v441
      %752 = vmatmul.f32.gmra.mxu0 %v438
      %v753 = vpop.f32.mrf.mxu0
      %v754 = vadd.f32 0.0, %v753
      %755 = vdwg.mxu0
      %756 = vmatpush.msra.mxu0 %v689
      %757 = vmatpush.msra.mxu0 %v681
      %758 = vmatpush.msra.mxu0 %v673
      %759 = vmatpush.msra.mxu0 %v665
      %760 = vmatpush.msra.mxu0 %v657
      %761 = vmatpush.msra.mxu0 %v649
      %762 = vmatpush.msra.mxu0 %v641
      %763 = vmatpush.msra.mxu0 %v633
      %764 = vmatpush.msra.mxu0 %v625
      %765 = vmatpush.msra.mxu0 %v617
      %766 = vmatpush.msra.mxu0 %v609
      %767 = vmatpush.msra.mxu0 %v601
      %768 = vmatpush.msra.mxu0 %v593
      %769 = vmatpush.msra.mxu0 %v585
      %770 = vmatpush.msra.mxu0 %v577
      %771 = vmatpush.msra.mxu0 %v569
      %772 = vmatmul.f32.gmra.mxu0 %v439
      %v773 = vpop.f32.mrf.mxu0
      %v774 = vadd.f32 %v754, %v773
      %775 = vdwg.mxu0
      %776 = vmatpush.msra.mxu0 %v562
      %777 = vmatpush.msra.mxu0 %v554
      %778 = vmatpush.msra.mxu0 %v546
      %779 = vmatpush.msra.mxu0 %v538
      %780 = vmatpush.msra.mxu0 %v530
      %781 = vmatpush.msra.mxu0 %v522
      %782 = vmatpush.msra.mxu0 %v514
      %783 = vmatpush.msra.mxu0 %v506
      %784 = vmatpush.msra.mxu0 %v498
      %785 = vmatpush.msra.mxu0 %v490
      %786 = vmatpush.msra.mxu0 %v482
      %787 = vmatpush.msra.mxu0 %v474
      %788 = vmatpush.msra.mxu0 %v466
      %789 = vmatpush.msra.mxu0 %v458
      %790 = vmatpush.msra.mxu0 %v450
      %791 = vmatpush.msra.mxu0 %v442
      %792 = vmatmul.f32.gmra.mxu0 %v438
      %v793 = vpop.f32.mrf.mxu0
      %v794 = vadd.f32 0.0, %v793
      %795 = vdwg.mxu0
      %796 = vmatpush.msra.mxu0 %v690
      %797 = vmatpush.msra.mxu0 %v682
      %798 = vmatpush.msra.mxu0 %v674
      %799 = vmatpush.msra.mxu0 %v666
      %800 = vmatpush.msra.mxu0 %v658
      %801 = vmatpush.msra.mxu0 %v650
      %802 = vmatpush.msra.mxu0 %v642
      %803 = vmatpush.msra.mxu0 %v634
      %804 = vmatpush.msra.mxu0 %v626
      %805 = vmatpush.msra.mxu0 %v618
      %806 = vmatpush.msra.mxu0 %v610
      %807 = vmatpush.msra.mxu0 %v602
      %808 = vmatpush.msra.mxu0 %v594
      %809 = vmatpush.msra.mxu0 %v586
      %810 = vmatpush.msra.mxu0 %v578
      %811 = vmatpush.msra.mxu0 %v570
      %812 = vmatmul.f32.gmra.mxu0 %v439
      %v813 = vpop.f32.mrf.mxu0
      %v814 = vadd.f32 %v794, %v813
      %815 = vdwg.mxu0
      %816 = vmatpush.msra.mxu0 %v563
      %817 = vmatpush.msra.mxu0 %v555
      %818 = vmatpush.msra.mxu0 %v547
      %819 = vmatpush.msra.mxu0 %v539
      %820 = vmatpush.msra.mxu0 %v531
      %821 = vmatpush.msra.mxu0 %v523
      %822 = vmatpush.msra.mxu0 %v515
      %823 = vmatpush.msra.mxu0 %v507
      %824 = vmatpush.msra.mxu0 %v499
      %825 = vmatpush.msra.mxu0 %v491
      %826 = vmatpush.msra.mxu0 %v483
      %827 = vmatpush.msra.mxu0 %v475
      %828 = vmatpush.msra.mxu0 %v467
      %829 = vmatpush.msra.mxu0 %v459
      %830 = vmatpush.msra.mxu0 %v451
      %831 = vmatpush.msra.mxu0 %v443
      %832 = vmatmul.f32.gmra.mxu0 %v438
      %v833 = vpop.f32.mrf.mxu0
      %v834 = vadd.f32 0.0, %v833
      %835 = vdwg.mxu0
      %836 = vmatpush.msra.mxu0 %v691
      %837 = vmatpush.msra.mxu0 %v683
      %838 = vmatpush.msra.mxu0 %v675
      %839 = vmatpush.msra.mxu0 %v667
      %840 = vmatpush.msra.mxu0 %v659
      %841 = vmatpush.msra.mxu0 %v651
      %842 = vmatpush.msra.mxu0 %v643
      %843 = vmatpush.msra.mxu0 %v635
      %844 = vmatpush.msra.mxu0 %v627
      %845 = vmatpush.msra.mxu0 %v619
      %846 = vmatpush.msra.mxu0 %v611
      %847 = vmatpush.msra.mxu0 %v603
      %848 = vmatpush.msra.mxu0 %v595
      %849 = vmatpush.msra.mxu0 %v587
      %850 = vmatpush.msra.mxu0 %v579
      %851 = vmatpush.msra.mxu0 %v571
      %852 = vmatmul.f32.gmra.mxu0 %v439
      %v853 = vpop.f32.mrf.mxu0
      %v854 = vadd.f32 %v834, %v853
      %855 = vdwg.mxu0
      %856 = vmatpush.msra.mxu0 %v564
      %857 = vmatpush.msra.mxu0 %v556
      %858 = vmatpush.msra.mxu0 %v548
      %859 = vmatpush.msra.mxu0 %v540
      %860 = vmatpush.msra.mxu0 %v532
      %861 = vmatpush.msra.mxu0 %v524
      %862 = vmatpush.msra.mxu0 %v516
      %863 = vmatpush.msra.mxu0 %v508
      %864 = vmatpush.msra.mxu0 %v500
      %865 = vmatpush.msra.mxu0 %v492
      %866 = vmatpush.msra.mxu0 %v484
      %867 = vmatpush.msra.mxu0 %v476
      %868 = vmatpush.msra.mxu0 %v468
      %869 = vmatpush.msra.mxu0 %v460
      %870 = vmatpush.msra.mxu0 %v452
      %871 = vmatpush.msra.mxu0 %v444
      %872 = vmatmul.f32.gmra.mxu0 %v438
      %v873 = vpop.f32.mrf.mxu0
      %v874 = vadd.f32 0.0, %v873
      %875 = vdwg.mxu0
      %876 = vmatpush.msra.mxu0 %v692
      %877 = vmatpush.msra.mxu0 %v684
      %878 = vmatpush.msra.mxu0 %v676
      %879 = vmatpush.msra.mxu0 %v668
      %880 = vmatpush.msra.mxu0 %v660
      %881 = vmatpush.msra.mxu0 %v652
      %882 = vmatpush.msra.mxu0 %v644
      %883 = vmatpush.msra.mxu0 %v636
      %884 = vmatpush.msra.mxu0 %v628
      %885 = vmatpush.msra.mxu0 %v620
      %886 = vmatpush.msra.mxu0 %v612
      %887 = vmatpush.msra.mxu0 %v604
      %888 = vmatpush.msra.mxu0 %v596
      %889 = vmatpush.msra.mxu0 %v588
      %890 = vmatpush.msra.mxu0 %v580
      %891 = vmatpush.msra.mxu0 %v572
      %892 = vmatmul.f32.gmra.mxu0 %v439
      %v893 = vpop.f32.mrf.mxu0
      %v894 = vadd.f32 %v874, %v893
      %895 = vdwg.mxu0
      %896 = vmatpush.msra.mxu0 %v565
      %897 = vmatpush.msra.mxu0 %v557
      %898 = vmatpush.msra.mxu0 %v549
      %899 = vmatpush.msra.mxu0 %v541
      %900 = vmatpush.msra.mxu0 %v533
      %901 = vmatpush.msra.mxu0 %v525
      %902 = vmatpush.msra.mxu0 %v517
      %903 = vmatpush.msra.mxu0 %v509
      %904 = vmatpush.msra.mxu0 %v501
      %905 = vmatpush.msra.mxu0 %v493
      %906 = vmatpush.msra.mxu0 %v485
      %907 = vmatpush.msra.mxu0 %v477
      %908 = vmatpush.msra.mxu0 %v469
      %909 = vmatpush.msra.mxu0 %v461
      %910 = vmatpush.msra.mxu0 %v453
      %911 = vmatpush.msra.mxu0 %v445
      %912 = vmatmul.f32.gmra.mxu0 %v438
      %v913 = vpop.f32.mrf.mxu0
      %v914 = vadd.f32 0.0, %v913
      %915 = vdwg.mxu0
      %916 = vmatpush.msra.mxu0 %v693
      %917 = vmatpush.msra.mxu0 %v685
      %918 = vmatpush.msra.mxu0 %v677
      %919 = vmatpush.msra.mxu0 %v669
      %920 = vmatpush.msra.mxu0 %v661
      %921 = vmatpush.msra.mxu0 %v653
      %922 = vmatpush.msra.mxu0 %v645
      %923 = vmatpush.msra.mxu0 %v637
      %924 = vmatpush.msra.mxu0 %v629
      %925 = vmatpush.msra.mxu0 %v621
      %926 = vmatpush.msra.mxu0 %v613
      %927 = vmatpush.msra.mxu0 %v605
      %928 = vmatpush.msra.mxu0 %v597
      %929 = vmatpush.msra.mxu0 %v589
      %930 = vmatpush.msra.mxu0 %v581
      %931 = vmatpush.msra.mxu0 %v573
      %932 = vmatmul.f32.gmra.mxu0 %v439
      %v933 = vpop.f32.mrf.mxu0
      %v934 = vadd.f32 %v914, %v933
      %935 = vdwg.mxu0
      %936 = vmatpush.msra.mxu0 %v566
      %937 = vmatpush.msra.mxu0 %v558
      %938 = vmatpush.msra.mxu0 %v550
      %939 = vmatpush.msra.mxu0 %v542
      %940 = vmatpush.msra.mxu0 %v534
      %941 = vmatpush.msra.mxu0 %v526
      %942 = vmatpush.msra.mxu0 %v518
      %943 = vmatpush.msra.mxu0 %v510
      %944 = vmatpush.msra.mxu0 %v502
      %945 = vmatpush.msra.mxu0 %v494
      %946 = vmatpush.msra.mxu0 %v486
      %947 = vmatpush.msra.mxu0 %v478
      %948 = vmatpush.msra.mxu0 %v470
      %949 = vmatpush.msra.mxu0 %v462
      %950 = vmatpush.msra.mxu0 %v454
      %951 = vmatpush.msra.mxu0 %v446
      %952 = vmatmul.f32.gmra.mxu0 %v438
      %v953 = vpop.f32.mrf.mxu0
      %v954 = vadd.f32 0.0, %v953
      %955 = vdwg.mxu0
      %956 = vmatpush.msra.mxu0 %v694
      %957 = vmatpush.msra.mxu0 %v686
      %958 = vmatpush.msra.mxu0 %v678
      %959 = vmatpush.msra.mxu0 %v670
      %960 = vmatpush.msra.mxu0 %v662
      %961 = vmatpush.msra.mxu0 %v654
      %962 = vmatpush.msra.mxu0 %v646
      %963 = vmatpush.msra.mxu0 %v638
      %964 = vmatpush.msra.mxu0 %v630
      %965 = vmatpush.msra.mxu0 %v622
      %966 = vmatpush.msra.mxu0 %v614
      %967 = vmatpush.msra.mxu0 %v606
      %968 = vmatpush.msra.mxu0 %v598
      %969 = vmatpush.msra.mxu0 %v590
      %970 = vmatpush.msra.mxu0 %v582
      %971 = vmatpush.msra.mxu0 %v574
      %972 = vmatmul.f32.gmra.mxu0 %v439
      %v973 = vpop.f32.mrf.mxu0
      %v974 = vadd.f32 %v954, %v973
      %975 = vdwg.mxu0
      %976 = vmatpush.msra.mxu0 %v567
      %977 = vmatpush.msra.mxu0 %v559
      %978 = vmatpush.msra.mxu0 %v551
      %979 = vmatpush.msra.mxu0 %v543
      %980 = vmatpush.msra.mxu0 %v535
      %981 = vmatpush.msra.mxu0 %v527
      %982 = vmatpush.msra.mxu0 %v519
      %983 = vmatpush.msra.mxu0 %v511
      %984 = vmatpush.msra.mxu0 %v503
      %985 = vmatpush.msra.mxu0 %v495
      %986 = vmatpush.msra.mxu0 %v487
      %987 = vmatpush.msra.mxu0 %v479
      %988 = vmatpush.msra.mxu0 %v471
      %989 = vmatpush.msra.mxu0 %v463
      %990 = vmatpush.msra.mxu0 %v455
      %991 = vmatpush.msra.mxu0 %v447
      %992 = vmatmul.f32.gmra.mxu0 %v438
      %v993 = vpop.f32.mrf.mxu0
      %v994 = vadd.f32 0.0, %v993
      %995 = vdwg.mxu0
      %996 = vmatpush.msra.mxu0 %v695
      %997 = vmatpush.msra.mxu0 %v687
      %998 = vmatpush.msra.mxu0 %v679
      %999 = vmatpush.msra.mxu0 %v671
      %1000 = vmatpush.msra.mxu0 %v663
      %1001 = vmatpush.msra.mxu0 %v655
      %1002 = vmatpush.msra.mxu0 %v647
      %1003 = vmatpush.msra.mxu0 %v639
      %1004 = vmatpush.msra.mxu0 %v631
      %1005 = vmatpush.msra.mxu0 %v623
      %1006 = vmatpush.msra.mxu0 %v615
      %1007 = vmatpush.msra.mxu0 %v607
      %1008 = vmatpush.msra.mxu0 %v599
      %1009 = vmatpush.msra.mxu0 %v591
      %1010 = vmatpush.msra.mxu0 %v583
      %1011 = vmatpush.msra.mxu0 %v575
      %1012 = vmatmul.f32.gmra.mxu0 %v439
      %v1013 = vpop.f32.mrf.mxu0
      %v1014 = vadd.f32 %v994, %v1013
      %1015 = vdwg.mxu0
      %v1016 = vlaneseq
      %v1017 = vand.u32 %v1016, 127
      %v1018 = vadd.s32 %v1017, 128
      %v1019 = vadd.s32 %v1017, 256
      %v1020 = vadd.s32 %v1017, 384
      %v1021 = vadd.s32 %v1017, 512
      %v1022 = vadd.s32 %v1017, 640
      %v1023 = vadd.s32 %v1017, 768
      %v1024 = vadd.s32 %v1017, 896
      %vm1025 = vcmp.lt.s32.totalorder %v1017, 0
      %v1026 = vsub.s32 0, %v1017
      %v1027 = vsel %vm1025, %v1026, %v1017
      %v1028 = vshrl.u32 %v1027, 5
      %v1029 = vand.u32 %v1027, 31
      %v1030 = vsub.s32 0, %v1029
      %v1031 = vsel %vm1025, %v1030, %v1029
      %vm1032 = vcmp.lt.s32.totalorder %v1018, 0
      %v1033 = vsub.s32 0, %v1018
      %v1034 = vsel %vm1032, %v1033, %v1018
      %v1035 = vshrl.u32 %v1034, 5
      %v1036 = vand.u32 %v1034, 31
      %v1037 = vsub.s32 0, %v1036
      %v1038 = vsel %vm1032, %v1037, %v1036
      %vm1039 = vcmp.lt.s32.totalorder %v1019, 0
      %v1040 = vsub.s32 0, %v1019
      %v1041 = vsel %vm1039, %v1040, %v1019
      %v1042 = vshrl.u32 %v1041, 5
      %v1043 = vand.u32 %v1041, 31
      %v1044 = vsub.s32 0, %v1043
      %v1045 = vsel %vm1039, %v1044, %v1043
      %vm1046 = vcmp.lt.s32.totalorder %v1020, 0
      %v1047 = vsub.s32 0, %v1020
      %v1048 = vsel %vm1046, %v1047, %v1020
      %v1049 = vshrl.u32 %v1048, 5
      %v1050 = vand.u32 %v1048, 31
      %v1051 = vsub.s32 0, %v1050
      %v1052 = vsel %vm1046, %v1051, %v1050
      %vm1053 = vcmp.lt.s32.totalorder %v1021, 0
      %v1054 = vsub.s32 0, %v1021
      %v1055 = vsel %vm1053, %v1054, %v1021
      %v1056 = vshrl.u32 %v1055, 5
      %v1057 = vand.u32 %v1055, 31
      %v1058 = vsub.s32 0, %v1057
      %v1059 = vsel %vm1053, %v1058, %v1057
      %vm1060 = vcmp.lt.s32.totalorder %v1022, 0
      %v1061 = vsub.s32 0, %v1022
      %v1062 = vsel %vm1060, %v1061, %v1022
      %v1063 = vshrl.u32 %v1062, 5
      %v1064 = vand.u32 %v1062, 31
      %v1065 = vsub.s32 0, %v1064
      %v1066 = vsel %vm1060, %v1065, %v1064
      %vm1067 = vcmp.lt.s32.totalorder %v1023, 0
      %v1068 = vsub.s32 0, %v1023
      %v1069 = vsel %vm1067, %v1068, %v1023
      %v1070 = vshrl.u32 %v1069, 5
      %v1071 = vand.u32 %v1069, 31
      %v1072 = vsub.s32 0, %v1071
      %v1073 = vsel %vm1067, %v1072, %v1071
      %vm1074 = vcmp.lt.s32.totalorder %v1024, 0
      %v1075 = vsub.s32 0, %v1024
      %v1076 = vsel %vm1074, %v1075, %v1024
      %v1077 = vshrl.u32 %v1076, 5
      %v1078 = vand.u32 %v1076, 31
      %v1079 = vsub.s32 0, %v1078
      %v1080 = vsel %vm1074, %v1079, %v1078
      %vm1081 = vcmp.ne.s32.totalorder %v1031, 0
      %vm1082 = vcmp.ne.s32.totalorder %v1038, 0
      %vm1083 = vcmp.ne.s32.totalorder %v1045, 0
      %vm1084 = vcmp.ne.s32.totalorder %v1052, 0
      %vm1085 = vcmp.ne.s32.totalorder %v1059, 0
      %vm1086 = vcmp.ne.s32.totalorder %v1066, 0
      %vm1087 = vcmp.ne.s32.totalorder %v1073, 0
      %vm1088 = vcmp.ne.s32.totalorder %v1080, 0
      %vm1089 = vcmp.lt.s32.totalorder %v1031, 0
      %vm1090 = vcmp.lt.s32.totalorder %v1038, 0
      %vm1091 = vcmp.lt.s32.totalorder %v1045, 0
      %vm1092 = vcmp.lt.s32.totalorder %v1052, 0
      %vm1093 = vcmp.lt.s32.totalorder %v1059, 0
      %vm1094 = vcmp.lt.s32.totalorder %v1066, 0
      %vm1095 = vcmp.lt.s32.totalorder %v1073, 0
      %vm1096 = vcmp.lt.s32.totalorder %v1080, 0
      %vm1097 = vmand %vm1089, %vm1081
      %vm1098 = vmand %vm1090, %vm1082
      %vm1099 = vmand %vm1091, %vm1083
      %vm1100 = vmand %vm1092, %vm1084
      %vm1101 = vmand %vm1093, %vm1085
      %vm1102 = vmand %vm1094, %vm1086
      %vm1103 = vmand %vm1095, %vm1087
      %vm1104 = vmand %vm1096, %vm1088
      %v1105 = vadd.s32 %v1031, 32
      %v1106 = vadd.s32 %v1038, 32
      %v1107 = vadd.s32 %v1045, 32
      %v1108 = vadd.s32 %v1052, 32
      %v1109 = vadd.s32 %v1059, 32
      %v1110 = vadd.s32 %v1066, 32
      %v1111 = vadd.s32 %v1073, 32
      %v1112 = vadd.s32 %v1080, 32
      %v1113 = vsel %vm1097, %v1105, %v1031
      %v1114 = vsel %vm1098, %v1106, %v1038
      %v1115 = vsel %vm1099, %v1107, %v1045
      %v1116 = vsel %vm1100, %v1108, %v1052
      %v1117 = vsel %vm1101, %v1109, %v1059
      %v1118 = vsel %vm1102, %v1110, %v1066
      %v1119 = vsel %vm1103, %v1111, %v1073
      %v1120 = vsel %vm1104, %v1112, %v1080
      %vm1121 = vcmp.eq.s32.totalorder %v1113, 0
      %vm1122 = vcmp.eq.s32.totalorder %v1114, 0
      %vm1123 = vcmp.eq.s32.totalorder %v1115, 0
      %vm1124 = vcmp.eq.s32.totalorder %v1116, 0
      %vm1125 = vcmp.eq.s32.totalorder %v1117, 0
      %vm1126 = vcmp.eq.s32.totalorder %v1118, 0
      %vm1127 = vcmp.eq.s32.totalorder %v1119, 0
      %vm1128 = vcmp.eq.s32.totalorder %v1120, 0
      %vm1129 = vcmp.eq.s32.totalorder %v1113, 31
      %vm1130 = vcmp.eq.s32.totalorder %v1114, 31
      %vm1131 = vcmp.eq.s32.totalorder %v1115, 31
      %vm1132 = vcmp.eq.s32.totalorder %v1116, 31
      %vm1133 = vcmp.eq.s32.totalorder %v1117, 31
      %vm1134 = vcmp.eq.s32.totalorder %v1118, 31
      %vm1135 = vcmp.eq.s32.totalorder %v1119, 31
      %vm1136 = vcmp.eq.s32.totalorder %v1120, 31
      %v1137 = vld [vmem:[%s2] sm:$0xff]
      %1139 = vset.pattern.permute.xlu0 0
      %1140 = vperm.xlu0 %1139, %v1137
      %v1141 = vpop.permute.xlu0 %1140
      %v1143 = vmul.f32 %v734, %v1141
      %v1144 = vmul.f32 %v774, %v1141
      %v1145 = vmul.f32 %v814, %v1141
      %v1146 = vmul.f32 %v854, %v1141
      %v1147 = vmul.f32 %v894, %v1141
      %v1148 = vmul.f32 %v934, %v1141
      %v1149 = vmul.f32 %v974, %v1141
      %v1150 = vmul.f32 %v1014, %v1141
      %v1151 = vld [vmem:[%s3] sm:$0xff]
      %1153 = vset.pattern.permute.xlu0 0
      %1154 = vperm.xlu0 %1153, %v1151
      %v1155 = vpop.permute.xlu0 %1154
      %v1157 = vadd.f32 %v1143, %v1155
      %v1158 = vadd.f32 %v1144, %v1155
      %v1159 = vadd.f32 %v1145, %v1155
      %v1160 = vadd.f32 %v1146, %v1155
      %v1161 = vadd.f32 %v1147, %v1155
      %v1162 = vadd.f32 %v1148, %v1155
      %v1163 = vadd.f32 %v1149, %v1155
      %v1164 = vadd.f32 %v1150, %v1155
      %v1165 = vmax.f32 %v1157, 0.0
      %v1166 = vmax.f32 %v1158, 0.0
      %v1167 = vmax.f32 %v1159, 0.0
      %v1168 = vmax.f32 %v1160, 0.0
      %v1169 = vmax.f32 %v1161, 0.0
      %v1170 = vmax.f32 %v1162, 0.0
      %v1171 = vmax.f32 %v1163, 0.0
      %v1172 = vmax.f32 %v1164, 0.0
      %v1173 = vsel %vm1129, 1, 0
      %v1174 = vsel %vm1130, 1, 0
      %v1175 = vsel %vm1131, 1, 0
      %v1176 = vsel %vm1132, 1, 0
      %v1177 = vsel %vm1133, 1, 0
      %v1178 = vsel %vm1134, 1, 0
      %v1179 = vsel %vm1135, 1, 0
      %v1180 = vsel %vm1136, 1, 0
      %vm1181 = vcmp.eq.s32.totalorder %v1173, 1
      %vm1182 = vcmp.eq.s32.totalorder %v1174, 1
      %vm1183 = vcmp.eq.s32.totalorder %v1175, 1
      %vm1184 = vcmp.eq.s32.totalorder %v1176, 1
      %vm1185 = vcmp.eq.s32.totalorder %v1177, 1
      %vm1186 = vcmp.eq.s32.totalorder %v1178, 1
      %vm1187 = vcmp.eq.s32.totalorder %v1179, 1
      %vm1188 = vcmp.eq.s32.totalorder %v1180, 1
      %v1189 = vsel %vm1181, 0.0, %v1165
      %v1190 = vsel %vm1182, 0.0, %v1166
      %v1191 = vsel %vm1183, 0.0, %v1167
      %v1192 = vsel %vm1184, 0.0, %v1168
      %v1193 = vsel %vm1185, 0.0, %v1169
      %v1194 = vsel %vm1186, 0.0, %v1170
      %v1195 = vsel %vm1187, 0.0, %v1171
      %v1196 = vsel %vm1188, 0.0, %v1172
      %v1197 = vsel %vm1121, 1, 0
      %v1198 = vsel %vm1122, 1, 0
      %v1199 = vsel %vm1123, 1, 0
      %v1200 = vsel %vm1124, 1, 0
      %v1201 = vsel %vm1125, 1, 0
      %v1202 = vsel %vm1126, 1, 0
      %v1203 = vsel %vm1127, 1, 0
      %v1204 = vsel %vm1128, 1, 0
      %vm1205 = vcmp.eq.s32.totalorder %v1197, 1
      %vm1206 = vcmp.eq.s32.totalorder %v1198, 1
      %vm1207 = vcmp.eq.s32.totalorder %v1199, 1
      %vm1208 = vcmp.eq.s32.totalorder %v1200, 1
      %vm1209 = vcmp.eq.s32.totalorder %v1201, 1
      %vm1210 = vcmp.eq.s32.totalorder %v1202, 1
      %vm1211 = vcmp.eq.s32.totalorder %v1203, 1
      %vm1212 = vcmp.eq.s32.totalorder %v1204, 1
      %v1213 = vsel %vm1205, 0.0, %v1165
      %v1214 = vsel %vm1206, 0.0, %v1166
      %v1215 = vsel %vm1207, 0.0, %v1167
      %v1216 = vsel %vm1208, 0.0, %v1168
      %v1217 = vsel %vm1209, 0.0, %v1169
      %v1218 = vsel %vm1210, 0.0, %v1170
      %v1219 = vsel %vm1211, 0.0, %v1171
      %v1220 = vsel %vm1212, 0.0, %v1172
      %1221 = vrot.lane.b32.xlu0 %v1189, 33
      %v1222 = vpop.permute.xlu0 %1221
      %1223 = vrot.lane.b32.xlu0 %v1190, 33
      %v1224 = vpop.permute.xlu0 %1223
      %1225 = vrot.lane.b32.xlu0 %v1191, 33
      %v1226 = vpop.permute.xlu0 %1225
      %1227 = vrot.lane.b32.xlu0 %v1192, 33
      %v1228 = vpop.permute.xlu0 %1227
      %1229 = vrot.lane.b32.xlu0 %v1193, 33
      %v1230 = vpop.permute.xlu0 %1229
      %1231 = vrot.lane.b32.xlu0 %v1194, 33
      %v1232 = vpop.permute.xlu0 %1231
      %1233 = vrot.lane.b32.xlu0 %v1195, 33
      %v1234 = vpop.permute.xlu0 %1233
      %1235 = vrot.lane.b32.xlu0 %v1196, 33
      %v1236 = vpop.permute.xlu0 %1235
      %vm1237 = vcmp.lt.s32.totalorder %v1017, 33
      %v1238 = vsel %vm1237, %v1234, %v1236
      %v1239 = vsel %vm1237, %v1232, %v1234
      %v1240 = vsel %vm1237, %v1230, %v1232
      %v1241 = vsel %vm1237, %v1228, %v1230
      %v1242 = vsel %vm1237, %v1226, %v1228
      %v1243 = vsel %vm1237, %v1224, %v1226
      %v1244 = vsel %vm1237, %v1222, %v1224
      %v1245 = vsel %vm1237, %v1236, %v1222
      %1246 = vrot.lane.b32.xlu0 %v1165, 32
      %v1247 = vpop.permute.xlu0 %1246
      %1248 = vrot.lane.b32.xlu0 %v1166, 32
      %v1249 = vpop.permute.xlu0 %1248
      %1250 = vrot.lane.b32.xlu0 %v1167, 32
      %v1251 = vpop.permute.xlu0 %1250
      %1252 = vrot.lane.b32.xlu0 %v1168, 32
      %v1253 = vpop.permute.xlu0 %1252
      %1254 = vrot.lane.b32.xlu0 %v1169, 32
      %v1255 = vpop.permute.xlu0 %1254
      %1256 = vrot.lane.b32.xlu0 %v1170, 32
      %v1257 = vpop.permute.xlu0 %1256
      %1258 = vrot.lane.b32.xlu0 %v1171, 32
      %v1259 = vpop.permute.xlu0 %1258
      %1260 = vrot.lane.b32.xlu0 %v1172, 32
      %v1261 = vpop.permute.xlu0 %1260
      %vm1262 = vcmp.lt.s32.totalorder %v1017, 32
      %v1263 = vsel %vm1262, %v1259, %v1261
      %v1264 = vsel %vm1262, %v1257, %v1259
      %v1265 = vsel %vm1262, %v1255, %v1257
      %v1266 = vsel %vm1262, %v1253, %v1255
      %v1267 = vsel %vm1262, %v1251, %v1253
      %v1268 = vsel %vm1262, %v1249, %v1251
      %v1269 = vsel %vm1262, %v1247, %v1249
      %v1270 = vsel %vm1262, %v1261, %v1247
      %1271 = vrot.lane.b32.xlu0 %v1213, 31
      %v1272 = vpop.permute.xlu0 %1271
      %1273 = vrot.lane.b32.xlu0 %v1214, 31
      %v1274 = vpop.permute.xlu0 %1273
      %1275 = vrot.lane.b32.xlu0 %v1215, 31
      %v1276 = vpop.permute.xlu0 %1275
      %1277 = vrot.lane.b32.xlu0 %v1216, 31
      %v1278 = vpop.permute.xlu0 %1277
      %1279 = vrot.lane.b32.xlu0 %v1217, 31
      %v1280 = vpop.permute.xlu0 %1279
      %1281 = vrot.lane.b32.xlu0 %v1218, 31
      %v1282 = vpop.permute.xlu0 %1281
      %1283 = vrot.lane.b32.xlu0 %v1219, 31
      %v1284 = vpop.permute.xlu0 %1283
      %1285 = vrot.lane.b32.xlu0 %v1220, 31
      %v1286 = vpop.permute.xlu0 %1285
      %vm1287 = vcmp.lt.s32.totalorder %v1017, 31
      %v1288 = vsel %vm1287, %v1284, %v1286
      %v1289 = vsel %vm1287, %v1282, %v1284
      %v1290 = vsel %vm1287, %v1280, %v1282
      %v1291 = vsel %vm1287, %v1278, %v1280
      %v1292 = vsel %vm1287, %v1276, %v1278
      %v1293 = vsel %vm1287, %v1274, %v1276
      %v1294 = vsel %vm1287, %v1272, %v1274
      %v1295 = vsel %vm1287, %v1286, %v1272
      %1296 = vrot.lane.b32.xlu0 %v1189, 1
      %v1297 = vpop.permute.xlu0 %1296
      %1298 = vrot.lane.b32.xlu0 %v1190, 1
      %v1299 = vpop.permute.xlu0 %1298
      %1300 = vrot.lane.b32.xlu0 %v1191, 1
      %v1301 = vpop.permute.xlu0 %1300
      %1302 = vrot.lane.b32.xlu0 %v1192, 1
      %v1303 = vpop.permute.xlu0 %1302
      %1304 = vrot.lane.b32.xlu0 %v1193, 1
      %v1305 = vpop.permute.xlu0 %1304
      %1306 = vrot.lane.b32.xlu0 %v1194, 1
      %v1307 = vpop.permute.xlu0 %1306
      %1308 = vrot.lane.b32.xlu0 %v1195, 1
      %v1309 = vpop.permute.xlu0 %1308
      %1310 = vrot.lane.b32.xlu0 %v1196, 1
      %v1311 = vpop.permute.xlu0 %1310
      %vm1312 = vcmp.lt.s32.totalorder %v1017, 1
      %v1313 = vsel %vm1312, %v1309, %v1311
      %v1314 = vsel %vm1312, %v1307, %v1309
      %v1315 = vsel %vm1312, %v1305, %v1307
      %v1316 = vsel %vm1312, %v1303, %v1305
      %v1317 = vsel %vm1312, %v1301, %v1303
      %v1318 = vsel %vm1312, %v1299, %v1301
      %v1319 = vsel %vm1312, %v1297, %v1299
      %v1320 = vsel %vm1312, %v1311, %v1297
      %1321 = vrot.lane.b32.xlu0 %v1213, 127
      %v1322 = vpop.permute.xlu0 %1321
      %1323 = vrot.lane.b32.xlu0 %v1214, 127
      %v1324 = vpop.permute.xlu0 %1323
      %1325 = vrot.lane.b32.xlu0 %v1215, 127
      %v1326 = vpop.permute.xlu0 %1325
      %1327 = vrot.lane.b32.xlu0 %v1216, 127
      %v1328 = vpop.permute.xlu0 %1327
      %1329 = vrot.lane.b32.xlu0 %v1217, 127
      %v1330 = vpop.permute.xlu0 %1329
      %1331 = vrot.lane.b32.xlu0 %v1218, 127
      %v1332 = vpop.permute.xlu0 %1331
      %1333 = vrot.lane.b32.xlu0 %v1219, 127
      %v1334 = vpop.permute.xlu0 %1333
      %1335 = vrot.lane.b32.xlu0 %v1220, 127
      %v1336 = vpop.permute.xlu0 %1335
      %vm1337 = vcmp.lt.s32.totalorder %v1017, 127
      %v1338 = vsel %vm1337, %v1334, %v1336
      %v1339 = vsel %vm1337, %v1332, %v1334
      %v1340 = vsel %vm1337, %v1330, %v1332
      %v1341 = vsel %vm1337, %v1328, %v1330
      %v1342 = vsel %vm1337, %v1326, %v1328
      %v1343 = vsel %vm1337, %v1324, %v1326
      %v1344 = vsel %vm1337, %v1322, %v1324
      %v1345 = vsel %vm1337, %v1336, %v1322
      %1346 = vrot.lane.b32.xlu0 %v1189, 97
      %v1347 = vpop.permute.xlu0 %1346
      %1348 = vrot.lane.b32.xlu0 %v1190, 97
      %v1349 = vpop.permute.xlu0 %1348
      %1350 = vrot.lane.b32.xlu0 %v1191, 97
      %v1351 = vpop.permute.xlu0 %1350
      %1352 = vrot.lane.b32.xlu0 %v1192, 97
      %v1353 = vpop.permute.xlu0 %1352
      %1354 = vrot.lane.b32.xlu0 %v1193, 97
      %v1355 = vpop.permute.xlu0 %1354
      %1356 = vrot.lane.b32.xlu0 %v1194, 97
      %v1357 = vpop.permute.xlu0 %1356
      %1358 = vrot.lane.b32.xlu0 %v1195, 97
      %v1359 = vpop.permute.xlu0 %1358
      %1360 = vrot.lane.b32.xlu0 %v1196, 97
      %v1361 = vpop.permute.xlu0 %1360
      %vm1362 = vcmp.lt.s32.totalorder %v1017, 97
      %v1363 = vsel %vm1362, %v1359, %v1361
      %v1364 = vsel %vm1362, %v1357, %v1359
      %v1365 = vsel %vm1362, %v1355, %v1357
      %v1366 = vsel %vm1362, %v1353, %v1355
      %v1367 = vsel %vm1362, %v1351, %v1353
      %v1368 = vsel %vm1362, %v1349, %v1351
      %v1369 = vsel %vm1362, %v1347, %v1349
      %v1370 = vsel %vm1362, %v1361, %v1347
      %1371 = vrot.lane.b32.xlu0 %v1165, 96
      %v1372 = vpop.permute.xlu0 %1371
      %1373 = vrot.lane.b32.xlu0 %v1166, 96
      %v1374 = vpop.permute.xlu0 %1373
      %1375 = vrot.lane.b32.xlu0 %v1167, 96
      %v1376 = vpop.permute.xlu0 %1375
      %1377 = vrot.lane.b32.xlu0 %v1168, 96
      %v1378 = vpop.permute.xlu0 %1377
      %1379 = vrot.lane.b32.xlu0 %v1169, 96
      %v1380 = vpop.permute.xlu0 %1379
      %1381 = vrot.lane.b32.xlu0 %v1170, 96
      %v1382 = vpop.permute.xlu0 %1381
      %1383 = vrot.lane.b32.xlu0 %v1171, 96
      %v1384 = vpop.permute.xlu0 %1383
      %1385 = vrot.lane.b32.xlu0 %v1172, 96
      %v1386 = vpop.permute.xlu0 %1385
      %vm1387 = vcmp.lt.s32.totalorder %v1017, 96
      %v1388 = vsel %vm1387, %v1384, %v1386
      %v1389 = vsel %vm1387, %v1382, %v1384
      %v1390 = vsel %vm1387, %v1380, %v1382
      %v1391 = vsel %vm1387, %v1378, %v1380
      %v1392 = vsel %vm1387, %v1376, %v1378
      %v1393 = vsel %vm1387, %v1374, %v1376
      %v1394 = vsel %vm1387, %v1372, %v1374
      %v1395 = vsel %vm1387, %v1386, %v1372
      %1396 = vrot.lane.b32.xlu0 %v1213, 95
      %v1397 = vpop.permute.xlu0 %1396
      %1398 = vrot.lane.b32.xlu0 %v1214, 95
      %v1399 = vpop.permute.xlu0 %1398
      %1400 = vrot.lane.b32.xlu0 %v1215, 95
      %v1401 = vpop.permute.xlu0 %1400
      %1402 = vrot.lane.b32.xlu0 %v1216, 95
      %v1403 = vpop.permute.xlu0 %1402
      %1404 = vrot.lane.b32.xlu0 %v1217, 95
      %v1405 = vpop.permute.xlu0 %1404
      %1406 = vrot.lane.b32.xlu0 %v1218, 95
      %v1407 = vpop.permute.xlu0 %1406
      %1408 = vrot.lane.b32.xlu0 %v1219, 95
      %v1409 = vpop.permute.xlu0 %1408
      %1410 = vrot.lane.b32.xlu0 %v1220, 95
      %v1411 = vpop.permute.xlu0 %1410
      %vm1412 = vcmp.lt.s32.totalorder %v1017, 95
      %v1413 = vsel %vm1412, %v1409, %v1411
      %v1414 = vsel %vm1412, %v1407, %v1409
      %v1415 = vsel %vm1412, %v1405, %v1407
      %v1416 = vsel %vm1412, %v1403, %v1405
      %v1417 = vsel %vm1412, %v1401, %v1403
      %v1418 = vsel %vm1412, %v1399, %v1401
      %v1419 = vsel %vm1412, %v1397, %v1399
      %v1420 = vsel %vm1412, %v1411, %v1397
      %v1421 = vpack.c.bf16 %v1244, %v1245
      %v1422 = vpack.c.bf16 %v1242, %v1243
      %v1423 = vpack.c.bf16 %v1240, %v1241
      %v1424 = vpack.c.bf16 %v1238, %v1239
      %v1425 = vpack.c.bf16 %v1269, %v1270
      %v1426 = vpack.c.bf16 %v1267, %v1268
      %v1427 = vpack.c.bf16 %v1265, %v1266
      %v1428 = vpack.c.bf16 %v1263, %v1264
      %1429 = vst [vmem:[#allocation2] sm:$0xff] %v1421
      %1430 = vst [vmem:[#allocation2 + $0x8] sm:$0xff] %v1422
      %1431 = vst [vmem:[#allocation2 + $0x10] sm:$0xff] %v1423
      %1432 = vst [vmem:[#allocation2 + $0x18] sm:$0xff] %v1424
      %1433 = vst [vmem:[#allocation2 + $0x20] sm:$0xff] %v1425
      %1434 = vst [vmem:[#allocation2 + $0x28] sm:$0xff] %v1426
      %1435 = vst [vmem:[#allocation2 + $0x30] sm:$0xff] %v1427
      %1436 = vst [vmem:[#allocation2 + $0x38] sm:$0xff] %v1428
      %v1437 = vpack.c.bf16 %v1294, %v1295
      %v1438 = vpack.c.bf16 %v1292, %v1293
      %v1439 = vpack.c.bf16 %v1290, %v1291
      %v1440 = vpack.c.bf16 %v1288, %v1289
      %v1441 = vpack.c.bf16 %v1319, %v1320
      %v1442 = vpack.c.bf16 %v1317, %v1318
      %v1443 = vpack.c.bf16 %v1315, %v1316
      %v1444 = vpack.c.bf16 %v1313, %v1314
      %1445 = vst [vmem:[#allocation2 + $0x40] sm:$0xff] %v1437
      %1446 = vst [vmem:[#allocation2 + $0x48] sm:$0xff] %v1438
      %1447 = vst [vmem:[#allocation2 + $0x50] sm:$0xff] %v1439
      %1448 = vst [vmem:[#allocation2 + $0x58] sm:$0xff] %v1440
      %1449 = vst [vmem:[#allocation2 + $0x60] sm:$0xff] %v1441
      %1450 = vst [vmem:[#allocation2 + $0x68] sm:$0xff] %v1442
      %1451 = vst [vmem:[#allocation2 + $0x70] sm:$0xff] %v1443
      %1452 = vst [vmem:[#allocation2 + $0x78] sm:$0xff] %v1444
      %v1453 = vpack.c.bf16 %v1166, %v1165
      %v1454 = vpack.c.bf16 %v1168, %v1167
      %v1455 = vpack.c.bf16 %v1170, %v1169
      %v1456 = vpack.c.bf16 %v1172, %v1171
      %v1457 = vpack.c.bf16 %v1343, %v1344
      %v1458 = vpack.c.bf16 %v1341, %v1342
      %v1459 = vpack.c.bf16 %v1339, %v1340
      %v1460 = vpack.c.bf16 %v1345, %v1338
      %1461 = vst [vmem:[#allocation2 + $0x80] sm:$0xff] %v1453
      %1462 = vst [vmem:[#allocation2 + $0x88] sm:$0xff] %v1454
      %1463 = vst [vmem:[#allocation2 + $0x90] sm:$0xff] %v1455
      %1464 = vst [vmem:[#allocation2 + $0x98] sm:$0xff] %v1456
      %1465 = vst [vmem:[#allocation2 + $0xa0] sm:$0xff] %v1457
      %1466 = vst [vmem:[#allocation2 + $0xa8] sm:$0xff] %v1458
      %1467 = vst [vmem:[#allocation2 + $0xb0] sm:$0xff] %v1459
      %1468 = vst [vmem:[#allocation2 + $0xb8] sm:$0xff] %v1460
      %v1469 = vpack.c.bf16 %v1368, %v1369
      %v1470 = vpack.c.bf16 %v1366, %v1367
      %v1471 = vpack.c.bf16 %v1364, %v1365
      %v1472 = vpack.c.bf16 %v1370, %v1363
      %v1473 = vpack.c.bf16 %v1393, %v1394
      %v1474 = vpack.c.bf16 %v1391, %v1392
      %v1475 = vpack.c.bf16 %v1389, %v1390
      %v1476 = vpack.c.bf16 %v1395, %v1388
      %1477 = vst [vmem:[#allocation2 + $0xc0] sm:$0xff] %v1469
      %1478 = vst [vmem:[#allocation2 + $0xc8] sm:$0xff] %v1470
      %1479 = vst [vmem:[#allocation2 + $0xd0] sm:$0xff] %v1471
      %1480 = vst [vmem:[#allocation2 + $0xd8] sm:$0xff] %v1472
      %1481 = vst [vmem:[#allocation2 + $0xe0] sm:$0xff] %v1473
      %1482 = vst [vmem:[#allocation2 + $0xe8] sm:$0xff] %v1474
      %1483 = vst [vmem:[#allocation2 + $0xf0] sm:$0xff] %v1475
      %1484 = vst [vmem:[#allocation2 + $0xf8] sm:$0xff] %v1476
      %v1485 = vpack.c.bf16 %v1418, %v1419
      %v1486 = vpack.c.bf16 %v1416, %v1417
      %v1487 = vpack.c.bf16 %v1414, %v1415
      %v1488 = vpack.c.bf16 %v1420, %v1413
      %1489 = vst [vmem:[#allocation2 + $0x100] sm:$0xff] %v1485
      %1490 = vst [vmem:[#allocation2 + $0x108] sm:$0xff] %v1486
      %1491 = vst [vmem:[#allocation2 + $0x110] sm:$0xff] %v1487
      %1492 = vst [vmem:[#allocation2 + $0x118] sm:$0xff] %v1488
      %vm1493 = vcmask 257024
      %1494 = vst.msk [vmem:[#allocation2] sm:$0xf] %vm1493, 0
      %1495 = vst.msk [vmem:[#allocation2 + $0x20] sm:$0xf] %vm1493, 0
      %1496 = vst.msk [vmem:[#allocation2 + $0x40] sm:$0xf] %vm1493, 0
      %vm1497 = vcmask 1044224
      %1498 = vst.msk [vmem:[#allocation2 + $0xdc] sm:$0xf] %vm1497, 0
      %1499 = vst.msk [vmem:[#allocation2 + $0xfc] sm:$0xf] %vm1497, 0
      %1500 = vst.msk [vmem:[#allocation2 + $0x11c] sm:$0xf] %vm1497, 0
      %v1501 = vld [vmem:[%s6] sm:$0xf]
      %v1502 = vld [vmem:[#allocation2] sm:$0xff]
      %v1503 = vld [vmem:[#allocation2 + $0x8] sm:$0xff]
      %v1504 = vld [vmem:[#allocation2 + $0x10] sm:$0xff]
      %v1505 = vld [vmem:[#allocation2 + $0x18] sm:$0xff]
      %v1506 = vld [vmem:[#allocation2 + $0x20] sm:$0xff]
      %v1507 = vld [vmem:[#allocation2 + $0x28] sm:$0xff]
      %v1508 = vld [vmem:[#allocation2 + $0x30] sm:$0xff]
      %v1509 = vld [vmem:[#allocation2 + $0x38] sm:$0xff]
      %v1510 = vld [vmem:[#allocation2 + $0x40] sm:$0xff]
      %v1511 = vld [vmem:[#allocation2 + $0x48] sm:$0xff]
      %v1512 = vld [vmem:[#allocation2 + $0x50] sm:$0xff]
      %v1513 = vld [vmem:[#allocation2 + $0x58] sm:$0xff]
      %v1514 = vld [vmem:[#allocation2 + $0x60] sm:$0xff]
      %v1515 = vld [vmem:[#allocation2 + $0x68] sm:$0xff]
      %v1516 = vld [vmem:[#allocation2 + $0x70] sm:$0xff]
      %v1517 = vld [vmem:[#allocation2 + $0x78] sm:$0xff]
      %v1518 = vld [vmem:[#allocation2 + $0x80] sm:$0xff]
      %v1519 = vld [vmem:[#allocation2 + $0x88] sm:$0xff]
      %v1520 = vld [vmem:[#allocation2 + $0x90] sm:$0xff]
      %v1521 = vld [vmem:[#allocation2 + $0x98] sm:$0xff]
      %v1522 = vld [vmem:[#allocation2 + $0xa0] sm:$0xff]
      %v1523 = vld [vmem:[#allocation2 + $0xa8] sm:$0xff]
      %v1524 = vld [vmem:[#allocation2 + $0xb0] sm:$0xff]
      %v1525 = vld [vmem:[#allocation2 + $0xb8] sm:$0xff]
      %v1526 = vld [vmem:[#allocation2 + $0xc0] sm:$0xff]
      %v1527 = vld [vmem:[#allocation2 + $0xc8] sm:$0xff]
      %v1528 = vld [vmem:[#allocation2 + $0xd0] sm:$0xff]
      %v1529 = vld [vmem:[#allocation2 + $0xd8] sm:$0xff]
      %v1530 = vld [vmem:[#allocation2 + $0xe0] sm:$0xff]
      %v1531 = vld [vmem:[#allocation2 + $0xe8] sm:$0xff]
      %v1532 = vld [vmem:[#allocation2 + $0xf0] sm:$0xff]
      %v1533 = vld [vmem:[#allocation2 + $0xf8] sm:$0xff]
      %v1534 = vld [vmem:[#allocation2 + $0x100] sm:$0xff]
      %v1535 = vld [vmem:[#allocation2 + $0x108] sm:$0xff]
      %v1536 = vld [vmem:[#allocation2 + $0x110] sm:$0xff]
      %v1537 = vld [vmem:[#allocation2 + $0x118] sm:$0xff]
      %v1538 = vld [vmem:[%s7] sm:$0xff]
      %1540 = vset.pattern.permute.xlu0 0
      %1541 = vperm.xlu0 %1540, %v1538
      %v1542 = vpop.permute.xlu0 %1541
      %v1580 = vunpack.c.l.b16 %v1502
      %v1581 = vunpack.c.h.b16 %v1502
      %v1582 = vunpack.c.l.b16 %v1503
      %v1583 = vunpack.c.h.b16 %v1503
      %v1584 = vunpack.c.l.b16 %v1504
      %v1585 = vunpack.c.h.b16 %v1504
      %v1586 = vunpack.c.l.b16 %v1505
      %v1587 = vunpack.c.h.b16 %v1505
      %v1588 = vunpack.c.l.b16 %v1506
      %v1589 = vunpack.c.h.b16 %v1506
      %v1590 = vunpack.c.l.b16 %v1507
      %v1591 = vunpack.c.h.b16 %v1507
      %v1592 = vunpack.c.l.b16 %v1508
      %v1593 = vunpack.c.h.b16 %v1508
      %v1594 = vunpack.c.l.b16 %v1509
      %v1595 = vunpack.c.h.b16 %v1509
      %v1596 = vunpack.c.l.b16 %v1510
      %v1597 = vunpack.c.h.b16 %v1510
      %v1598 = vunpack.c.l.b16 %v1511
      %v1599 = vunpack.c.h.b16 %v1511
      %v1600 = vunpack.c.l.b16 %v1512
      %v1601 = vunpack.c.h.b16 %v1512
      %v1602 = vunpack.c.l.b16 %v1513
      %v1603 = vunpack.c.h.b16 %v1513
      %v1604 = vunpack.c.l.b16 %v1514
      %v1605 = vunpack.c.h.b16 %v1514
      %v1606 = vunpack.c.l.b16 %v1515
      %v1607 = vunpack.c.h.b16 %v1515
      %v1608 = vunpack.c.l.b16 %v1516
      %v1609 = vunpack.c.h.b16 %v1516
      %v1610 = vunpack.c.l.b16 %v1517
      %v1611 = vunpack.c.h.b16 %v1517
      %v1612 = vunpack.c.l.b16 %v1518
      %v1613 = vunpack.c.h.b16 %v1518
      %v1614 = vunpack.c.l.b16 %v1519
      %v1615 = vunpack.c.h.b16 %v1519
      %v1616 = vunpack.c.l.b16 %v1520
      %v1617 = vunpack.c.h.b16 %v1520
      %v1618 = vunpack.c.l.b16 %v1521
      %v1619 = vunpack.c.h.b16 %v1521
      %v1620 = vunpack.c.l.b16 %v1522
      %v1621 = vunpack.c.h.b16 %v1522
      %v1622 = vunpack.c.l.b16 %v1523
      %v1623 = vunpack.c.h.b16 %v1523
      %v1624 = vunpack.c.l.b16 %v1524
      %v1625 = vunpack.c.h.b16 %v1524
      %v1626 = vunpack.c.l.b16 %v1525
      %v1627 = vunpack.c.h.b16 %v1525
      %v1628 = vunpack.c.l.b16 %v1526
      %v1629 = vunpack.c.h.b16 %v1526
      %v1630 = vunpack.c.l.b16 %v1527
      %v1631 = vunpack.c.h.b16 %v1527
      %v1632 = vunpack.c.l.b16 %v1528
      %v1633 = vunpack.c.h.b16 %v1528
      %v1634 = vunpack.c.l.b16 %v1529
      %v1635 = vunpack.c.h.b16 %v1529
      %v1636 = vunpack.c.l.b16 %v1530
      %v1637 = vunpack.c.h.b16 %v1530
      %v1638 = vunpack.c.l.b16 %v1531
      %v1639 = vunpack.c.h.b16 %v1531
      %v1640 = vunpack.c.l.b16 %v1532
      %v1641 = vunpack.c.h.b16 %v1532
      %v1642 = vunpack.c.l.b16 %v1533
      %v1643 = vunpack.c.h.b16 %v1533
      %v1644 = vunpack.c.l.b16 %v1534
      %v1645 = vunpack.c.h.b16 %v1534
      %v1646 = vunpack.c.l.b16 %v1535
      %v1647 = vunpack.c.h.b16 %v1535
      %v1648 = vunpack.c.l.b16 %v1536
      %v1649 = vunpack.c.h.b16 %v1536
      %v1650 = vunpack.c.l.b16 %v1537
      %v1651 = vunpack.c.h.b16 %v1537
      %v1652 = vpack.c.b16 %v1588, %v1580
      %v1653 = vpack.c.b16 %v1589, %v1581
      %v1654 = vpack.c.b16 %v1590, %v1582
      %v1655 = vpack.c.b16 %v1591, %v1583
      %v1656 = vpack.c.b16 %v1592, %v1584
      %v1657 = vpack.c.b16 %v1593, %v1585
      %v1658 = vpack.c.b16 %v1594, %v1586
      %v1659 = vpack.c.b16 %v1595, %v1587
      %v1660 = vpack.c.b16 %v1604, %v1596
      %v1661 = vpack.c.b16 %v1605, %v1597
      %v1662 = vpack.c.b16 %v1606, %v1598
      %v1663 = vpack.c.b16 %v1607, %v1599
      %v1664 = vpack.c.b16 %v1608, %v1600
      %v1665 = vpack.c.b16 %v1609, %v1601
      %v1666 = vpack.c.b16 %v1610, %v1602
      %v1667 = vpack.c.b16 %v1611, %v1603
      %v1668 = vpack.c.b16 %v1620, %v1612
      %v1669 = vpack.c.b16 %v1621, %v1613
      %v1670 = vpack.c.b16 %v1622, %v1614
      %v1671 = vpack.c.b16 %v1623, %v1615
      %v1672 = vpack.c.b16 %v1624, %v1616
      %v1673 = vpack.c.b16 %v1625, %v1617
      %v1674 = vpack.c.b16 %v1626, %v1618
      %v1675 = vpack.c.b16 %v1627, %v1619
      %v1676 = vpack.c.b16 %v1636, %v1628
      %v1677 = vpack.c.b16 %v1637, %v1629
      %v1678 = vpack.c.b16 %v1638, %v1630
      %v1679 = vpack.c.b16 %v1639, %v1631
      %v1680 = vpack.c.b16 %v1640, %v1632
      %v1681 = vpack.c.b16 %v1641, %v1633
      %v1682 = vpack.c.b16 %v1642, %v1634
      %v1683 = vpack.c.b16 %v1643, %v1635
      %v1684 = vpack.c.b16 %v1644, %v1644
      %v1685 = vpack.c.b16 %v1645, %v1645
      %v1686 = vpack.c.b16 %v1646, %v1646
      %v1687 = vpack.c.b16 %v1647, %v1647
      %v1688 = vpack.c.b16 %v1648, %v1648
      %v1689 = vpack.c.b16 %v1649, %v1649
      %v1690 = vpack.c.b16 %v1650, %v1650
      %v1691 = vpack.c.b16 %v1651, %v1651
      %vm1724 = vcmask 588800
      %v1726 = vsel %vm1724, %v1501, 0
      %vm1728 = vcmask 1043456
      %v1730 = vsel %vm1728, %v1684, 0
      %v1733 = vsel %vm1728, %v1685, 0
      %v1736 = vsel %vm1728, %v1686, 0
      %v1739 = vsel %vm1728, %v1687, 0
      %v1742 = vsel %vm1728, %v1688, 0
      %v1745 = vsel %vm1728, %v1689, 0
      %v1748 = vsel %vm1728, %v1690, 0
      %v1751 = vsel %vm1728, %v1691, 0
      %1753 = vmatpush.bf16.msra.mxu0 0
      %1754 = vmatpush.bf16.msra.mxu0 0
      %1755 = vmatpush.bf16.msra.mxu0 0
      %1756 = vmatpush.bf16.msra.mxu0 %v1730
      %1757 = vmatpush.bf16.msra.mxu0 %v1676
      %1758 = vmatpush.bf16.msra.mxu0 %v1668
      %1759 = vmatpush.bf16.msra.mxu0 %v1660
      %1760 = vmatpush.bf16.msra.mxu0 %v1652
      %1761 = vmatmul.bf16.gmra.mxu0 %v1726
      %v1762 = vpop.f32.mrf.mxu0
      %v1763 = vadd.f32 %v1542, %v1762
      %v1764 = vpop.f32.mrf.mxu0
      %1765 = vdwg.mxu0
      %1766 = vmatpush.bf16.msra.mxu0 0
      %1767 = vmatpush.bf16.msra.mxu0 0
      %1768 = vmatpush.bf16.msra.mxu0 0
      %1769 = vmatpush.bf16.msra.mxu0 %v1733
      %1770 = vmatpush.bf16.msra.mxu0 %v1677
      %1771 = vmatpush.bf16.msra.mxu0 %v1669
      %1772 = vmatpush.bf16.msra.mxu0 %v1661
      %1773 = vmatpush.bf16.msra.mxu0 %v1653
      %1774 = vmatmul.bf16.gmra.mxu0 %v1726
      %v1775 = vpop.f32.mrf.mxu0
      %v1776 = vadd.f32 %v1542, %v1775
      %v1777 = vpop.f32.mrf.mxu0
      %1778 = vdwg.mxu0
      %1779 = vmatpush.bf16.msra.mxu0 0
      %1780 = vmatpush.bf16.msra.mxu0 0
      %1781 = vmatpush.bf16.msra.mxu0 0
      %1782 = vmatpush.bf16.msra.mxu0 %v1736
      %1783 = vmatpush.bf16.msra.mxu0 %v1678
      %1784 = vmatpush.bf16.msra.mxu0 %v1670
      %1785 = vmatpush.bf16.msra.mxu0 %v1662
      %1786 = vmatpush.bf16.msra.mxu0 %v1654
      %1787 = vmatmul.bf16.gmra.mxu0 %v1726
      %v1788 = vpop.f32.mrf.mxu0
      %v1789 = vadd.f32 %v1542, %v1788
      %v1790 = vpop.f32.mrf.mxu0
      %1791 = vdwg.mxu0
      %1792 = vmatpush.bf16.msra.mxu0 0
      %1793 = vmatpush.bf16.msra.mxu0 0
      %1794 = vmatpush.bf16.msra.mxu0 0
      %1795 = vmatpush.bf16.msra.mxu0 %v1739
      %1796 = vmatpush.bf16.msra.mxu0 %v1679
      %1797 = vmatpush.bf16.msra.mxu0 %v1671
      %1798 = vmatpush.bf16.msra.mxu0 %v1663
      %1799 = vmatpush.bf16.msra.mxu0 %v1655
      %1800 = vmatmul.bf16.gmra.mxu0 %v1726
      %v1801 = vpop.f32.mrf.mxu0
      %v1802 = vadd.f32 %v1542, %v1801
      %v1803 = vpop.f32.mrf.mxu0
      %1804 = vdwg.mxu0
      %1805 = vmatpush.bf16.msra.mxu0 0
      %1806 = vmatpush.bf16.msra.mxu0 0
      %1807 = vmatpush.bf16.msra.mxu0 0
      %1808 = vmatpush.bf16.msra.mxu0 %v1742
      %1809 = vmatpush.bf16.msra.mxu0 %v1680
      %1810 = vmatpush.bf16.msra.mxu0 %v1672
      %1811 = vmatpush.bf16.msra.mxu0 %v1664
      %1812 = vmatpush.bf16.msra.mxu0 %v1656
      %1813 = vmatmul.bf16.gmra.mxu0 %v1726
      %v1814 = vpop.f32.mrf.mxu0
      %v1815 = vadd.f32 %v1542, %v1814
      %v1816 = vpop.f32.mrf.mxu0
      %1817 = vdwg.mxu0
      %1818 = vmatpush.bf16.msra.mxu0 0
      %1819 = vmatpush.bf16.msra.mxu0 0
      %1820 = vmatpush.bf16.msra.mxu0 0
      %1821 = vmatpush.bf16.msra.mxu0 %v1745
      %1822 = vmatpush.bf16.msra.mxu0 %v1681
      %1823 = vmatpush.bf16.msra.mxu0 %v1673
      %1824 = vmatpush.bf16.msra.mxu0 %v1665
      %1825 = vmatpush.bf16.msra.mxu0 %v1657
      %1826 = vmatmul.bf16.gmra.mxu0 %v1726
      %v1827 = vpop.f32.mrf.mxu0
      %v1828 = vadd.f32 %v1542, %v1827
      %v1829 = vpop.f32.mrf.mxu0
      %1830 = vdwg.mxu0
      %1831 = vmatpush.bf16.msra.mxu0 0
      %1832 = vmatpush.bf16.msra.mxu0 0
      %1833 = vmatpush.bf16.msra.mxu0 0
      %1834 = vmatpush.bf16.msra.mxu0 %v1748
      %1835 = vmatpush.bf16.msra.mxu0 %v1682
      %1836 = vmatpush.bf16.msra.mxu0 %v1674
      %1837 = vmatpush.bf16.msra.mxu0 %v1666
      %1838 = vmatpush.bf16.msra.mxu0 %v1658
      %1839 = vmatmul.bf16.gmra.mxu0 %v1726
      %v1840 = vpop.f32.mrf.mxu0
      %v1841 = vadd.f32 %v1542, %v1840
      %v1842 = vpop.f32.mrf.mxu0
      %1843 = vdwg.mxu0
      %1844 = vmatpush.bf16.msra.mxu0 0
      %1845 = vmatpush.bf16.msra.mxu0 0
      %1846 = vmatpush.bf16.msra.mxu0 0
      %1847 = vmatpush.bf16.msra.mxu0 %v1751
      %1848 = vmatpush.bf16.msra.mxu0 %v1683
      %1849 = vmatpush.bf16.msra.mxu0 %v1675
      %1850 = vmatpush.bf16.msra.mxu0 %v1667
      %1851 = vmatpush.bf16.msra.mxu0 %v1659
      %1852 = vmatmul.bf16.gmra.mxu0 %v1726
      %v1853 = vpop.f32.mrf.mxu0
      %v1854 = vadd.f32 %v1542, %v1853
      %v1855 = vpop.f32.mrf.mxu0
      %1856 = vdwg.mxu0
      %v1857 = vpack.c.bf16 %v1776, %v1763
      %v1858 = vpack.c.bf16 %v1802, %v1789
      %v1859 = vpack.c.bf16 %v1828, %v1815
      %v1860 = vpack.c.bf16 %v1854, %v1841
      %1861 = vst [vmem:[%s427] sm:$0xff] %v1857
      %1862 = vst [vmem:[%s427 + $0x8] sm:$0xff] %v1858
      %1863 = vst [vmem:[%s427 + $0x10] sm:$0xff] %v1859
      %1864 = vst [vmem:[%s427 + $0x18] sm:$0xff] %v1860
      %v1865 = vadd.f32 %v1763, %v1776
      %v1866 = vadd.f32 %v1865, %v1789
      %v1867 = vadd.f32 %v1866, %v1802
      %v1868 = vadd.f32 %v1867, %v1815
      %v1869 = vadd.f32 %v1868, %v1828
      %v1870 = vadd.f32 %v1869, %v1841
      %v1871 = vadd.f32 %v1870, %v1854
      %1872 = vadd.xlane.f32.xlu0 %v1871
      %v1873 = vpop.xlane.xlu0 %1872
      %v1874 = vmul.f32 %v1763, %v1763
      %v1875 = vmul.f32 %v1776, %v1776
      %v1876 = vmul.f32 %v1789, %v1789
      %v1877 = vmul.f32 %v1802, %v1802
      %v1878 = vmul.f32 %v1815, %v1815
      %v1879 = vmul.f32 %v1828, %v1828
      %v1880 = vmul.f32 %v1841, %v1841
      %v1881 = vmul.f32 %v1854, %v1854
      %v1882 = vadd.f32 %v1874, %v1875
      %v1883 = vadd.f32 %v1882, %v1876
      %v1884 = vadd.f32 %v1883, %v1877
      %v1885 = vadd.f32 %v1884, %v1878
      %v1886 = vadd.f32 %v1885, %v1879
      %v1887 = vadd.f32 %v1886, %v1880
      %v1888 = vadd.f32 %v1887, %v1881
      %1889 = vadd.xlane.f32.xlu0 %v1888
      %v1890 = vpop.xlane.xlu0 %1889
      %vm1891 = vcmask 7168
      %v1892 = vsel %vm1891, %v1873, %v1890
      %vm1893 = vcmask 15360
      %1894 = vst.msk [vmem:[%s431] sm:$0xff] %vm1893, %v1892
      %v1895 = vld [vmem:[%s4] sm:$0xff]
      %1897 = vset.pattern.permute.xlu0 0
      %1898 = vperm.xlu0 %1897, %v1895
      %v1899 = vpop.permute.xlu0 %1898
      %v1901 = vmul.f32 %v734, %v1899
      %v1902 = vmul.f32 %v774, %v1899
      %v1903 = vmul.f32 %v814, %v1899
      %v1904 = vmul.f32 %v854, %v1899
      %v1905 = vmul.f32 %v894, %v1899
      %v1906 = vmul.f32 %v934, %v1899
      %v1907 = vmul.f32 %v974, %v1899
      %v1908 = vmul.f32 %v1014, %v1899
      %v1909 = vld [vmem:[%s5] sm:$0xff]
      %1911 = vset.pattern.permute.xlu0 0
      %1912 = vperm.xlu0 %1911, %v1909
      %v1913 = vpop.permute.xlu0 %1912
      %v1915 = vadd.f32 %v1901, %v1913
      %v1916 = vadd.f32 %v1902, %v1913
      %v1917 = vadd.f32 %v1903, %v1913
      %v1918 = vadd.f32 %v1904, %v1913
      %v1919 = vadd.f32 %v1905, %v1913
      %v1920 = vadd.f32 %v1906, %v1913
      %v1921 = vadd.f32 %v1907, %v1913
      %v1922 = vadd.f32 %v1908, %v1913
      %v1923 = vsel %vm1181, 0.0, %v1915
      %v1924 = vsel %vm1182, 0.0, %v1916
      %v1925 = vsel %vm1183, 0.0, %v1917
      %v1926 = vsel %vm1184, 0.0, %v1918
      %v1927 = vsel %vm1185, 0.0, %v1919
      %v1928 = vsel %vm1186, 0.0, %v1920
      %v1929 = vsel %vm1187, 0.0, %v1921
      %v1930 = vsel %vm1188, 0.0, %v1922
      %v1931 = vsel %vm1205, 0.0, %v1915
      %v1932 = vsel %vm1206, 0.0, %v1916
      %v1933 = vsel %vm1207, 0.0, %v1917
      %v1934 = vsel %vm1208, 0.0, %v1918
      %v1935 = vsel %vm1209, 0.0, %v1919
      %v1936 = vsel %vm1210, 0.0, %v1920
      %v1937 = vsel %vm1211, 0.0, %v1921
      %v1938 = vsel %vm1212, 0.0, %v1922
      %1939 = vrot.lane.b32.xlu0 %v1923, 33
      %v1940 = vpop.permute.xlu0 %1939
      %1941 = vrot.lane.b32.xlu0 %v1924, 33
      %v1942 = vpop.permute.xlu0 %1941
      %1943 = vrot.lane.b32.xlu0 %v1925, 33
      %v1944 = vpop.permute.xlu0 %1943
      %1945 = vrot.lane.b32.xlu0 %v1926, 33
      %v1946 = vpop.permute.xlu0 %1945
      %1947 = vrot.lane.b32.xlu0 %v1927, 33
      %v1948 = vpop.permute.xlu0 %1947
      %1949 = vrot.lane.b32.xlu0 %v1928, 33
      %v1950 = vpop.permute.xlu0 %1949
      %1951 = vrot.lane.b32.xlu0 %v1929, 33
      %v1952 = vpop.permute.xlu0 %1951
      %1953 = vrot.lane.b32.xlu0 %v1930, 33
      %v1954 = vpop.permute.xlu0 %1953
      %v1955 = vsel %vm1237, %v1952, %v1954
      %v1956 = vsel %vm1237, %v1950, %v1952
      %v1957 = vsel %vm1237, %v1948, %v1950
      %v1958 = vsel %vm1237, %v1946, %v1948
      %v1959 = vsel %vm1237, %v1944, %v1946
      %v1960 = vsel %vm1237, %v1942, %v1944
      %v1961 = vsel %vm1237, %v1940, %v1942
      %v1962 = vsel %vm1237, %v1954, %v1940
      %1963 = vrot.lane.b32.xlu0 %v1915, 32
      %v1964 = vpop.permute.xlu0 %1963
      %1965 = vrot.lane.b32.xlu0 %v1916, 32
      %v1966 = vpop.permute.xlu0 %1965
      %1967 = vrot.lane.b32.xlu0 %v1917, 32
      %v1968 = vpop.permute.xlu0 %1967
      %1969 = vrot.lane.b32.xlu0 %v1918, 32
      %v1970 = vpop.permute.xlu0 %1969
      %1971 = vrot.lane.b32.xlu0 %v1919, 32
      %v1972 = vpop.permute.xlu0 %1971
      %1973 = vrot.lane.b32.xlu0 %v1920, 32
      %v1974 = vpop.permute.xlu0 %1973
      %1975 = vrot.lane.b32.xlu0 %v1921, 32
      %v1976 = vpop.permute.xlu0 %1975
      %1977 = vrot.lane.b32.xlu0 %v1922, 32
      %v1978 = vpop.permute.xlu0 %1977
      %v1979 = vsel %vm1262, %v1976, %v1978
      %v1980 = vsel %vm1262, %v1974, %v1976
      %v1981 = vsel %vm1262, %v1972, %v1974
      %v1982 = vsel %vm1262, %v1970, %v1972
      %v1983 = vsel %vm1262, %v1968, %v1970
      %v1984 = vsel %vm1262, %v1966, %v1968
      %v1985 = vsel %vm1262, %v1964, %v1966
      %v1986 = vsel %vm1262, %v1978, %v1964
      %1987 = vrot.lane.b32.xlu0 %v1931, 31
      %v1988 = vpop.permute.xlu0 %1987
      %1989 = vrot.lane.b32.xlu0 %v1932, 31
      %v1990 = vpop.permute.xlu0 %1989
      %1991 = vrot.lane.b32.xlu0 %v1933, 31
      %v1992 = vpop.permute.xlu0 %1991
      %1993 = vrot.lane.b32.xlu0 %v1934, 31
      %v1994 = vpop.permute.xlu0 %1993
      %1995 = vrot.lane.b32.xlu0 %v1935, 31
      %v1996 = vpop.permute.xlu0 %1995
      %1997 = vrot.lane.b32.xlu0 %v1936, 31
      %v1998 = vpop.permute.xlu0 %1997
      %1999 = vrot.lane.b32.xlu0 %v1937, 31
      %v2000 = vpop.permute.xlu0 %1999
      %2001 = vrot.lane.b32.xlu0 %v1938, 31
      %v2002 = vpop.permute.xlu0 %2001
      %v2003 = vsel %vm1287, %v2000, %v2002
      %v2004 = vsel %vm1287, %v1998, %v2000
      %v2005 = vsel %vm1287, %v1996, %v1998
      %v2006 = vsel %vm1287, %v1994, %v1996
      %v2007 = vsel %vm1287, %v1992, %v1994
      %v2008 = vsel %vm1287, %v1990, %v1992
      %v2009 = vsel %vm1287, %v1988, %v1990
      %v2010 = vsel %vm1287, %v2002, %v1988
      %2011 = vrot.lane.b32.xlu0 %v1923, 1
      %v2012 = vpop.permute.xlu0 %2011
      %2013 = vrot.lane.b32.xlu0 %v1924, 1
      %v2014 = vpop.permute.xlu0 %2013
      %2015 = vrot.lane.b32.xlu0 %v1925, 1
      %v2016 = vpop.permute.xlu0 %2015
      %2017 = vrot.lane.b32.xlu0 %v1926, 1
      %v2018 = vpop.permute.xlu0 %2017
      %2019 = vrot.lane.b32.xlu0 %v1927, 1
      %v2020 = vpop.permute.xlu0 %2019
      %2021 = vrot.lane.b32.xlu0 %v1928, 1
      %v2022 = vpop.permute.xlu0 %2021
      %2023 = vrot.lane.b32.xlu0 %v1929, 1
      %v2024 = vpop.permute.xlu0 %2023
      %2025 = vrot.lane.b32.xlu0 %v1930, 1
      %v2026 = vpop.permute.xlu0 %2025
      %v2027 = vsel %vm1312, %v2024, %v2026
      %v2028 = vsel %vm1312, %v2022, %v2024
      %v2029 = vsel %vm1312, %v2020, %v2022
      %v2030 = vsel %vm1312, %v2018, %v2020
      %v2031 = vsel %vm1312, %v2016, %v2018
      %v2032 = vsel %vm1312, %v2014, %v2016
      %v2033 = vsel %vm1312, %v2012, %v2014
      %v2034 = vsel %vm1312, %v2026, %v2012
      %2035 = vrot.lane.b32.xlu0 %v1931, 127
      %v2036 = vpop.permute.xlu0 %2035
      %2037 = vrot.lane.b32.xlu0 %v1932, 127
      %v2038 = vpop.permute.xlu0 %2037
      %2039 = vrot.lane.b32.xlu0 %v1933, 127
      %v2040 = vpop.permute.xlu0 %2039
      %2041 = vrot.lane.b32.xlu0 %v1934, 127
      %v2042 = vpop.permute.xlu0 %2041
      %2043 = vrot.lane.b32.xlu0 %v1935, 127
      %v2044 = vpop.permute.xlu0 %2043
      %2045 = vrot.lane.b32.xlu0 %v1936, 127
      %v2046 = vpop.permute.xlu0 %2045
      %2047 = vrot.lane.b32.xlu0 %v1937, 127
      %v2048 = vpop.permute.xlu0 %2047
      %2049 = vrot.lane.b32.xlu0 %v1938, 127
      %v2050 = vpop.permute.xlu0 %2049
      %v2051 = vsel %vm1337, %v2048, %v2050
      %v2052 = vsel %vm1337, %v2046, %v2048
      %v2053 = vsel %vm1337, %v2044, %v2046
      %v2054 = vsel %vm1337, %v2042, %v2044
      %v2055 = vsel %vm1337, %v2040, %v2042
      %v2056 = vsel %vm1337, %v2038, %v2040
      %v2057 = vsel %vm1337, %v2036, %v2038
      %v2058 = vsel %vm1337, %v2050, %v2036
      %2059 = vrot.lane.b32.xlu0 %v1923, 97
      %v2060 = vpop.permute.xlu0 %2059
      %2061 = vrot.lane.b32.xlu0 %v1924, 97
      %v2062 = vpop.permute.xlu0 %2061
      %2063 = vrot.lane.b32.xlu0 %v1925, 97
      %v2064 = vpop.permute.xlu0 %2063
      %2065 = vrot.lane.b32.xlu0 %v1926, 97
      %v2066 = vpop.permute.xlu0 %2065
      %2067 = vrot.lane.b32.xlu0 %v1927, 97
      %v2068 = vpop.permute.xlu0 %2067
      %2069 = vrot.lane.b32.xlu0 %v1928, 97
      %v2070 = vpop.permute.xlu0 %2069
      %2071 = vrot.lane.b32.xlu0 %v1929, 97
      %v2072 = vpop.permute.xlu0 %2071
      %2073 = vrot.lane.b32.xlu0 %v1930, 97
      %v2074 = vpop.permute.xlu0 %2073
      %v2075 = vsel %vm1362, %v2072, %v2074
      %v2076 = vsel %vm1362, %v2070, %v2072
      %v2077 = vsel %vm1362, %v2068, %v2070
      %v2078 = vsel %vm1362, %v2066, %v2068
      %v2079 = vsel %vm1362, %v2064, %v2066
      %v2080 = vsel %vm1362, %v2062, %v2064
      %v2081 = vsel %vm1362, %v2060, %v2062
      %v2082 = vsel %vm1362, %v2074, %v2060
      %2083 = vrot.lane.b32.xlu0 %v1915, 96
      %v2084 = vpop.permute.xlu0 %2083
      %2085 = vrot.lane.b32.xlu0 %v1916, 96
      %v2086 = vpop.permute.xlu0 %2085
      %2087 = vrot.lane.b32.xlu0 %v1917, 96
      %v2088 = vpop.permute.xlu0 %2087
      %2089 = vrot.lane.b32.xlu0 %v1918, 96
      %v2090 = vpop.permute.xlu0 %2089
      %2091 = vrot.lane.b32.xlu0 %v1919, 96
      %v2092 = vpop.permute.xlu0 %2091
      %2093 = vrot.lane.b32.xlu0 %v1920, 96
      %v2094 = vpop.permute.xlu0 %2093
      %2095 = vrot.lane.b32.xlu0 %v1921, 96
      %v2096 = vpop.permute.xlu0 %2095
      %2097 = vrot.lane.b32.xlu0 %v1922, 96
      %v2098 = vpop.permute.xlu0 %2097
      %v2099 = vsel %vm1387, %v2096, %v2098
      %v2100 = vsel %vm1387, %v2094, %v2096
      %v2101 = vsel %vm1387, %v2092, %v2094
      %v2102 = vsel %vm1387, %v2090, %v2092
      %v2103 = vsel %vm1387, %v2088, %v2090
      %v2104 = vsel %vm1387, %v2086, %v2088
      %v2105 = vsel %vm1387, %v2084, %v2086
      %v2106 = vsel %vm1387, %v2098, %v2084
      %2107 = vrot.lane.b32.xlu0 %v1931, 95
      %v2108 = vpop.permute.xlu0 %2107
      %2109 = vrot.lane.b32.xlu0 %v1932, 95
      %v2110 = vpop.permute.xlu0 %2109
      %2111 = vrot.lane.b32.xlu0 %v1933, 95
      %v2112 = vpop.permute.xlu0 %2111
      %2113 = vrot.lane.b32.xlu0 %v1934, 95
      %v2114 = vpop.permute.xlu0 %2113
      %2115 = vrot.lane.b32.xlu0 %v1935, 95
      %v2116 = vpop.permute.xlu0 %2115
      %2117 = vrot.lane.b32.xlu0 %v1936, 95
      %v2118 = vpop.permute.xlu0 %2117
      %2119 = vrot.lane.b32.xlu0 %v1937, 95
      %v2120 = vpop.permute.xlu0 %2119
      %2121 = vrot.lane.b32.xlu0 %v1938, 95
      %v2122 = vpop.permute.xlu0 %2121
      %v2123 = vsel %vm1412, %v2120, %v2122
      %v2124 = vsel %vm1412, %v2118, %v2120
      %v2125 = vsel %vm1412, %v2116, %v2118
      %v2126 = vsel %vm1412, %v2114, %v2116
      %v2127 = vsel %vm1412, %v2112, %v2114
      %v2128 = vsel %vm1412, %v2110, %v2112
      %v2129 = vsel %vm1412, %v2108, %v2110
      %v2130 = vsel %vm1412, %v2122, %v2108
      %v2131 = vpack.c.bf16 %v1961, %v1962
      %v2132 = vpack.c.bf16 %v1959, %v1960
      %v2133 = vpack.c.bf16 %v1957, %v1958
      %v2134 = vpack.c.bf16 %v1955, %v1956
      %v2135 = vpack.c.bf16 %v1985, %v1986
      %v2136 = vpack.c.bf16 %v1983, %v1984
      %v2137 = vpack.c.bf16 %v1981, %v1982
      %v2138 = vpack.c.bf16 %v1979, %v1980
      %2139 = vst [vmem:[#allocation3] sm:$0xff] %v2131
      %2140 = vst [vmem:[#allocation3 + $0x8] sm:$0xff] %v2132
      %2141 = vst [vmem:[#allocation3 + $0x10] sm:$0xff] %v2133
      %2142 = vst [vmem:[#allocation3 + $0x18] sm:$0xff] %v2134
      %2143 = vst [vmem:[#allocation3 + $0x20] sm:$0xff] %v2135
      %2144 = vst [vmem:[#allocation3 + $0x28] sm:$0xff] %v2136
      %2145 = vst [vmem:[#allocation3 + $0x30] sm:$0xff] %v2137
      %2146 = vst [vmem:[#allocation3 + $0x38] sm:$0xff] %v2138
      %v2147 = vpack.c.bf16 %v2009, %v2010
      %v2148 = vpack.c.bf16 %v2007, %v2008
      %v2149 = vpack.c.bf16 %v2005, %v2006
      %v2150 = vpack.c.bf16 %v2003, %v2004
      %v2151 = vpack.c.bf16 %v2033, %v2034
      %v2152 = vpack.c.bf16 %v2031, %v2032
      %v2153 = vpack.c.bf16 %v2029, %v2030
      %v2154 = vpack.c.bf16 %v2027, %v2028
      %2155 = vst [vmem:[#allocation3 + $0x40] sm:$0xff] %v2147
      %2156 = vst [vmem:[#allocation3 + $0x48] sm:$0xff] %v2148
      %2157 = vst [vmem:[#allocation3 + $0x50] sm:$0xff] %v2149
      %2158 = vst [vmem:[#allocation3 + $0x58] sm:$0xff] %v2150
      %2159 = vst [vmem:[#allocation3 + $0x60] sm:$0xff] %v2151
      %2160 = vst [vmem:[#allocation3 + $0x68] sm:$0xff] %v2152
      %2161 = vst [vmem:[#allocation3 + $0x70] sm:$0xff] %v2153
      %2162 = vst [vmem:[#allocation3 + $0x78] sm:$0xff] %v2154
      %v2163 = vpack.c.bf16 %v1916, %v1915
      %v2164 = vpack.c.bf16 %v1918, %v1917
      %v2165 = vpack.c.bf16 %v1920, %v1919
      %v2166 = vpack.c.bf16 %v1922, %v1921
      %v2167 = vpack.c.bf16 %v2056, %v2057
      %v2168 = vpack.c.bf16 %v2054, %v2055
      %v2169 = vpack.c.bf16 %v2052, %v2053
      %v2170 = vpack.c.bf16 %v2058, %v2051
      %2171 = vst [vmem:[#allocation3 + $0x80] sm:$0xff] %v2163
      %2172 = vst [vmem:[#allocation3 + $0x88] sm:$0xff] %v2164
      %2173 = vst [vmem:[#allocation3 + $0x90] sm:$0xff] %v2165
      %2174 = vst [vmem:[#allocation3 + $0x98] sm:$0xff] %v2166
      %2175 = vst [vmem:[#allocation3 + $0xa0] sm:$0xff] %v2167
      %2176 = vst [vmem:[#allocation3 + $0xa8] sm:$0xff] %v2168
      %2177 = vst [vmem:[#allocation3 + $0xb0] sm:$0xff] %v2169
      %2178 = vst [vmem:[#allocation3 + $0xb8] sm:$0xff] %v2170
      %v2179 = vpack.c.bf16 %v2080, %v2081
      %v2180 = vpack.c.bf16 %v2078, %v2079
      %v2181 = vpack.c.bf16 %v2076, %v2077
      %v2182 = vpack.c.bf16 %v2082, %v2075
      %v2183 = vpack.c.bf16 %v2104, %v2105
      %v2184 = vpack.c.bf16 %v2102, %v2103
      %v2185 = vpack.c.bf16 %v2100, %v2101
      %v2186 = vpack.c.bf16 %v2106, %v2099
      %2187 = vst [vmem:[#allocation3 + $0xc0] sm:$0xff] %v2179
      %2188 = vst [vmem:[#allocation3 + $0xc8] sm:$0xff] %v2180
      %2189 = vst [vmem:[#allocation3 + $0xd0] sm:$0xff] %v2181
      %2190 = vst [vmem:[#allocation3 + $0xd8] sm:$0xff] %v2182
      %2191 = vst [vmem:[#allocation3 + $0xe0] sm:$0xff] %v2183
      %2192 = vst [vmem:[#allocation3 + $0xe8] sm:$0xff] %v2184
      %2193 = vst [vmem:[#allocation3 + $0xf0] sm:$0xff] %v2185
      %2194 = vst [vmem:[#allocation3 + $0xf8] sm:$0xff] %v2186
      %v2195 = vpack.c.bf16 %v2128, %v2129
      %v2196 = vpack.c.bf16 %v2126, %v2127
      %v2197 = vpack.c.bf16 %v2124, %v2125
      %v2198 = vpack.c.bf16 %v2130, %v2123
      %2199 = vst [vmem:[#allocation3 + $0x100] sm:$0xff] %v2195
      %2200 = vst [vmem:[#allocation3 + $0x108] sm:$0xff] %v2196
      %2201 = vst [vmem:[#allocation3 + $0x110] sm:$0xff] %v2197
      %2202 = vst [vmem:[#allocation3 + $0x118] sm:$0xff] %v2198
      %2203 = vst.msk [vmem:[#allocation3] sm:$0xf] %vm1493, 0
      %2204 = vst.msk [vmem:[#allocation3 + $0x20] sm:$0xf] %vm1493, 0
      %2205 = vst.msk [vmem:[#allocation3 + $0x40] sm:$0xf] %vm1493, 0
      %2206 = vst.msk [vmem:[#allocation3 + $0xdc] sm:$0xf] %vm1497, 0
      %2207 = vst.msk [vmem:[#allocation3 + $0xfc] sm:$0xf] %vm1497, 0
      %2208 = vst.msk [vmem:[#allocation3 + $0x11c] sm:$0xf] %vm1497, 0
      %v2209 = vld [vmem:[%s8] sm:$0xf]
      %v2210 = vld [vmem:[#allocation3] sm:$0xff]
      %v2211 = vld [vmem:[#allocation3 + $0x8] sm:$0xff]
      %v2212 = vld [vmem:[#allocation3 + $0x10] sm:$0xff]
      %v2213 = vld [vmem:[#allocation3 + $0x18] sm:$0xff]
      %v2214 = vld [vmem:[#allocation3 + $0x20] sm:$0xff]
      %v2215 = vld [vmem:[#allocation3 + $0x28] sm:$0xff]
      %v2216 = vld [vmem:[#allocation3 + $0x30] sm:$0xff]
      %v2217 = vld [vmem:[#allocation3 + $0x38] sm:$0xff]
      %v2218 = vld [vmem:[#allocation3 + $0x40] sm:$0xff]
      %v2219 = vld [vmem:[#allocation3 + $0x48] sm:$0xff]
      %v2220 = vld [vmem:[#allocation3 + $0x50] sm:$0xff]
      %v2221 = vld [vmem:[#allocation3 + $0x58] sm:$0xff]
      %v2222 = vld [vmem:[#allocation3 + $0x60] sm:$0xff]
      %v2223 = vld [vmem:[#allocation3 + $0x68] sm:$0xff]
      %v2224 = vld [vmem:[#allocation3 + $0x70] sm:$0xff]
      %v2225 = vld [vmem:[#allocation3 + $0x78] sm:$0xff]
      %v2226 = vld [vmem:[#allocation3 + $0x80] sm:$0xff]
      %v2227 = vld [vmem:[#allocation3 + $0x88] sm:$0xff]
      %v2228 = vld [vmem:[#allocation3 + $0x90] sm:$0xff]
      %v2229 = vld [vmem:[#allocation3 + $0x98] sm:$0xff]
      %v2230 = vld [vmem:[#allocation3 + $0xa0] sm:$0xff]
      %v2231 = vld [vmem:[#allocation3 + $0xa8] sm:$0xff]
      %v2232 = vld [vmem:[#allocation3 + $0xb0] sm:$0xff]
      %v2233 = vld [vmem:[#allocation3 + $0xb8] sm:$0xff]
      %v2234 = vld [vmem:[#allocation3 + $0xc0] sm:$0xff]
      %v2235 = vld [vmem:[#allocation3 + $0xc8] sm:$0xff]
      %v2236 = vld [vmem:[#allocation3 + $0xd0] sm:$0xff]
      %v2237 = vld [vmem:[#allocation3 + $0xd8] sm:$0xff]
      %v2238 = vld [vmem:[#allocation3 + $0xe0] sm:$0xff]
      %v2239 = vld [vmem:[#allocation3 + $0xe8] sm:$0xff]
      %v2240 = vld [vmem:[#allocation3 + $0xf0] sm:$0xff]
      %v2241 = vld [vmem:[#allocation3 + $0xf8] sm:$0xff]
      %v2242 = vld [vmem:[#allocation3 + $0x100] sm:$0xff]
      %v2243 = vld [vmem:[#allocation3 + $0x108] sm:$0xff]
      %v2244 = vld [vmem:[#allocation3 + $0x110] sm:$0xff]
      %v2245 = vld [vmem:[#allocation3 + $0x118] sm:$0xff]
      %v2246 = vld [vmem:[%s9] sm:$0xff]
      %2248 = vset.pattern.permute.xlu0 0
      %2249 = vperm.xlu0 %2248, %v2246
      %v2250 = vpop.permute.xlu0 %2249
      %v2288 = vunpack.c.l.b16 %v2210
      %v2289 = vunpack.c.h.b16 %v2210
      %v2290 = vunpack.c.l.b16 %v2211
      %v2291 = vunpack.c.h.b16 %v2211
      %v2292 = vunpack.c.l.b16 %v2212
      %v2293 = vunpack.c.h.b16 %v2212
      %v2294 = vunpack.c.l.b16 %v2213
      %v2295 = vunpack.c.h.b16 %v2213
      %v2296 = vunpack.c.l.b16 %v2214
      %v2297 = vunpack.c.h.b16 %v2214
      %v2298 = vunpack.c.l.b16 %v2215
      %v2299 = vunpack.c.h.b16 %v2215
      %v2300 = vunpack.c.l.b16 %v2216
      %v2301 = vunpack.c.h.b16 %v2216
      %v2302 = vunpack.c.l.b16 %v2217
      %v2303 = vunpack.c.h.b16 %v2217
      %v2304 = vunpack.c.l.b16 %v2218
      %v2305 = vunpack.c.h.b16 %v2218
      %v2306 = vunpack.c.l.b16 %v2219
      %v2307 = vunpack.c.h.b16 %v2219
      %v2308 = vunpack.c.l.b16 %v2220
      %v2309 = vunpack.c.h.b16 %v2220
      %v2310 = vunpack.c.l.b16 %v2221
      %v2311 = vunpack.c.h.b16 %v2221
      %v2312 = vunpack.c.l.b16 %v2222
      %v2313 = vunpack.c.h.b16 %v2222
      %v2314 = vunpack.c.l.b16 %v2223
      %v2315 = vunpack.c.h.b16 %v2223
      %v2316 = vunpack.c.l.b16 %v2224
      %v2317 = vunpack.c.h.b16 %v2224
      %v2318 = vunpack.c.l.b16 %v2225
      %v2319 = vunpack.c.h.b16 %v2225
      %v2320 = vunpack.c.l.b16 %v2226
      %v2321 = vunpack.c.h.b16 %v2226
      %v2322 = vunpack.c.l.b16 %v2227
      %v2323 = vunpack.c.h.b16 %v2227
      %v2324 = vunpack.c.l.b16 %v2228
      %v2325 = vunpack.c.h.b16 %v2228
      %v2326 = vunpack.c.l.b16 %v2229
      %v2327 = vunpack.c.h.b16 %v2229
      %v2328 = vunpack.c.l.b16 %v2230
      %v2329 = vunpack.c.h.b16 %v2230
      %v2330 = vunpack.c.l.b16 %v2231
      %v2331 = vunpack.c.h.b16 %v2231
      %v2332 = vunpack.c.l.b16 %v2232
      %v2333 = vunpack.c.h.b16 %v2232
      %v2334 = vunpack.c.l.b16 %v2233
      %v2335 = vunpack.c.h.b16 %v2233
      %v2336 = vunpack.c.l.b16 %v2234
      %v2337 = vunpack.c.h.b16 %v2234
      %v2338 = vunpack.c.l.b16 %v2235
      %v2339 = vunpack.c.h.b16 %v2235
      %v2340 = vunpack.c.l.b16 %v2236
      %v2341 = vunpack.c.h.b16 %v2236
      %v2342 = vunpack.c.l.b16 %v2237
      %v2343 = vunpack.c.h.b16 %v2237
      %v2344 = vunpack.c.l.b16 %v2238
      %v2345 = vunpack.c.h.b16 %v2238
      %v2346 = vunpack.c.l.b16 %v2239
      %v2347 = vunpack.c.h.b16 %v2239
      %v2348 = vunpack.c.l.b16 %v2240
      %v2349 = vunpack.c.h.b16 %v2240
      %v2350 = vunpack.c.l.b16 %v2241
      %v2351 = vunpack.c.h.b16 %v2241
      %v2352 = vunpack.c.l.b16 %v2242
      %v2353 = vunpack.c.h.b16 %v2242
      %v2354 = vunpack.c.l.b16 %v2243
      %v2355 = vunpack.c.h.b16 %v2243
      %v2356 = vunpack.c.l.b16 %v2244
      %v2357 = vunpack.c.h.b16 %v2244
      %v2358 = vunpack.c.l.b16 %v2245
      %v2359 = vunpack.c.h.b16 %v2245
      %v2360 = vpack.c.b16 %v2296, %v2288
      %v2361 = vpack.c.b16 %v2297, %v2289
      %v2362 = vpack.c.b16 %v2298, %v2290
      %v2363 = vpack.c.b16 %v2299, %v2291
      %v2364 = vpack.c.b16 %v2300, %v2292
      %v2365 = vpack.c.b16 %v2301, %v2293
      %v2366 = vpack.c.b16 %v2302, %v2294
      %v2367 = vpack.c.b16 %v2303, %v2295
      %v2368 = vpack.c.b16 %v2312, %v2304
      %v2369 = vpack.c.b16 %v2313, %v2305
      %v2370 = vpack.c.b16 %v2314, %v2306
      %v2371 = vpack.c.b16 %v2315, %v2307
      %v2372 = vpack.c.b16 %v2316, %v2308
      %v2373 = vpack.c.b16 %v2317, %v2309
      %v2374 = vpack.c.b16 %v2318, %v2310
      %v2375 = vpack.c.b16 %v2319, %v2311
      %v2376 = vpack.c.b16 %v2328, %v2320
      %v2377 = vpack.c.b16 %v2329, %v2321
      %v2378 = vpack.c.b16 %v2330, %v2322
      %v2379 = vpack.c.b16 %v2331, %v2323
      %v2380 = vpack.c.b16 %v2332, %v2324
      %v2381 = vpack.c.b16 %v2333, %v2325
      %v2382 = vpack.c.b16 %v2334, %v2326
      %v2383 = vpack.c.b16 %v2335, %v2327
      %v2384 = vpack.c.b16 %v2344, %v2336
      %v2385 = vpack.c.b16 %v2345, %v2337
      %v2386 = vpack.c.b16 %v2346, %v2338
      %v2387 = vpack.c.b16 %v2347, %v2339
      %v2388 = vpack.c.b16 %v2348, %v2340
      %v2389 = vpack.c.b16 %v2349, %v2341
      %v2390 = vpack.c.b16 %v2350, %v2342
      %v2391 = vpack.c.b16 %v2351, %v2343
      %v2392 = vpack.c.b16 %v2352, %v2352
      %v2393 = vpack.c.b16 %v2353, %v2353
      %v2394 = vpack.c.b16 %v2354, %v2354
      %v2395 = vpack.c.b16 %v2355, %v2355
      %v2396 = vpack.c.b16 %v2356, %v2356
      %v2397 = vpack.c.b16 %v2357, %v2357
      %v2398 = vpack.c.b16 %v2358, %v2358
      %v2399 = vpack.c.b16 %v2359, %v2359
      %v2433 = vsel %vm1724, %v2209, 0
      %v2436 = vsel %vm1728, %v2392, 0
      %v2439 = vsel %vm1728, %v2393, 0
      %v2442 = vsel %vm1728, %v2394, 0
      %v2445 = vsel %vm1728, %v2395, 0
      %v2448 = vsel %vm1728, %v2396, 0
      %v2451 = vsel %vm1728, %v2397, 0
      %v2454 = vsel %vm1728, %v2398, 0
      %v2457 = vsel %vm1728, %v2399, 0
      %2459 = vmatpush.bf16.msra.mxu0 0
      %2460 = vmatpush.bf16.msra.mxu0 0
      %2461 = vmatpush.bf16.msra.mxu0 0
      %2462 = vmatpush.bf16.msra.mxu0 %v2436
      %2463 = vmatpush.bf16.msra.mxu0 %v2384
      %2464 = vmatpush.bf16.msra.mxu0 %v2376
      %2465 = vmatpush.bf16.msra.mxu0 %v2368
      %2466 = vmatpush.bf16.msra.mxu0 %v2360
      %2467 = vmatmul.bf16.gmra.mxu0 %v2433
      %v2468 = vpop.f32.mrf.mxu0
      %v2469 = vadd.f32 %v2250, %v2468
      %v2470 = vpop.f32.mrf.mxu0
      %2471 = vdwg.mxu0
      %2472 = vmatpush.bf16.msra.mxu0 0
      %2473 = vmatpush.bf16.msra.mxu0 0
      %2474 = vmatpush.bf16.msra.mxu0 0
      %2475 = vmatpush.bf16.msra.mxu0 %v2439
      %2476 = vmatpush.bf16.msra.mxu0 %v2385
      %2477 = vmatpush.bf16.msra.mxu0 %v2377
      %2478 = vmatpush.bf16.msra.mxu0 %v2369
      %2479 = vmatpush.bf16.msra.mxu0 %v2361
      %2480 = vmatmul.bf16.gmra.mxu0 %v2433
      %v2481 = vpop.f32.mrf.mxu0
      %v2482 = vadd.f32 %v2250, %v2481
      %v2483 = vpop.f32.mrf.mxu0
      %2484 = vdwg.mxu0
      %2485 = vmatpush.bf16.msra.mxu0 0
      %2486 = vmatpush.bf16.msra.mxu0 0
      %2487 = vmatpush.bf16.msra.mxu0 0
      %2488 = vmatpush.bf16.msra.mxu0 %v2442
      %2489 = vmatpush.bf16.msra.mxu0 %v2386
      %2490 = vmatpush.bf16.msra.mxu0 %v2378
      %2491 = vmatpush.bf16.msra.mxu0 %v2370
      %2492 = vmatpush.bf16.msra.mxu0 %v2362
      %2493 = vmatmul.bf16.gmra.mxu0 %v2433
      %v2494 = vpop.f32.mrf.mxu0
      %v2495 = vadd.f32 %v2250, %v2494
      %v2496 = vpop.f32.mrf.mxu0
      %2497 = vdwg.mxu0
      %2498 = vmatpush.bf16.msra.mxu0 0
      %2499 = vmatpush.bf16.msra.mxu0 0
      %2500 = vmatpush.bf16.msra.mxu0 0
      %2501 = vmatpush.bf16.msra.mxu0 %v2445
      %2502 = vmatpush.bf16.msra.mxu0 %v2387
      %2503 = vmatpush.bf16.msra.mxu0 %v2379
      %2504 = vmatpush.bf16.msra.mxu0 %v2371
      %2505 = vmatpush.bf16.msra.mxu0 %v2363
      %2506 = vmatmul.bf16.gmra.mxu0 %v2433
      %v2507 = vpop.f32.mrf.mxu0
      %v2508 = vadd.f32 %v2250, %v2507
      %v2509 = vpop.f32.mrf.mxu0
      %2510 = vdwg.mxu0
      %2511 = vmatpush.bf16.msra.mxu0 0
      %2512 = vmatpush.bf16.msra.mxu0 0
      %2513 = vmatpush.bf16.msra.mxu0 0
      %2514 = vmatpush.bf16.msra.mxu0 %v2448
      %2515 = vmatpush.bf16.msra.mxu0 %v2388
      %2516 = vmatpush.bf16.msra.mxu0 %v2380
      %2517 = vmatpush.bf16.msra.mxu0 %v2372
      %2518 = vmatpush.bf16.msra.mxu0 %v2364
      %2519 = vmatmul.bf16.gmra.mxu0 %v2433
      %v2520 = vpop.f32.mrf.mxu0
      %v2521 = vadd.f32 %v2250, %v2520
      %v2522 = vpop.f32.mrf.mxu0
      %2523 = vdwg.mxu0
      %2524 = vmatpush.bf16.msra.mxu0 0
      %2525 = vmatpush.bf16.msra.mxu0 0
      %2526 = vmatpush.bf16.msra.mxu0 0
      %2527 = vmatpush.bf16.msra.mxu0 %v2451
      %2528 = vmatpush.bf16.msra.mxu0 %v2389
      %2529 = vmatpush.bf16.msra.mxu0 %v2381
      %2530 = vmatpush.bf16.msra.mxu0 %v2373
      %2531 = vmatpush.bf16.msra.mxu0 %v2365
      %2532 = vmatmul.bf16.gmra.mxu0 %v2433
      %v2533 = vpop.f32.mrf.mxu0
      %v2534 = vadd.f32 %v2250, %v2533
      %v2535 = vpop.f32.mrf.mxu0
      %2536 = vdwg.mxu0
      %2537 = vmatpush.bf16.msra.mxu0 0
      %2538 = vmatpush.bf16.msra.mxu0 0
      %2539 = vmatpush.bf16.msra.mxu0 0
      %2540 = vmatpush.bf16.msra.mxu0 %v2454
      %2541 = vmatpush.bf16.msra.mxu0 %v2390
      %2542 = vmatpush.bf16.msra.mxu0 %v2382
      %2543 = vmatpush.bf16.msra.mxu0 %v2374
      %2544 = vmatpush.bf16.msra.mxu0 %v2366
      %2545 = vmatmul.bf16.gmra.mxu0 %v2433
      %v2546 = vpop.f32.mrf.mxu0
      %v2547 = vadd.f32 %v2250, %v2546
      %v2548 = vpop.f32.mrf.mxu0
      %2549 = vdwg.mxu0
      %2550 = vmatpush.bf16.msra.mxu0 0
      %2551 = vmatpush.bf16.msra.mxu0 0
      %2552 = vmatpush.bf16.msra.mxu0 0
      %2553 = vmatpush.bf16.msra.mxu0 %v2457
      %2554 = vmatpush.bf16.msra.mxu0 %v2391
      %2555 = vmatpush.bf16.msra.mxu0 %v2383
      %2556 = vmatpush.bf16.msra.mxu0 %v2375
      %2557 = vmatpush.bf16.msra.mxu0 %v2367
      %2558 = vmatmul.bf16.gmra.mxu0 %v2433
      %v2559 = vpop.f32.mrf.mxu0
      %v2560 = vadd.f32 %v2250, %v2559
      %v2561 = vpop.f32.mrf.mxu0
      %2562 = vdwg.mxu0
      %2563 = vst [vmem:[%s436] sm:$0xff] %v2469
      %2564 = vst [vmem:[%s436 + $0x8] sm:$0xff] %v2482
      %2565 = vst [vmem:[%s436 + $0x10] sm:$0xff] %v2495
      %2566 = vst [vmem:[%s436 + $0x18] sm:$0xff] %v2508
      %2567 = vst [vmem:[%s436 + $0x20] sm:$0xff] %v2521
      %2568 = vst [vmem:[%s436 + $0x28] sm:$0xff] %v2534
      %2569 = vst [vmem:[%s436 + $0x30] sm:$0xff] %v2547
      %2570 = vst [vmem:[%s436 + $0x38] sm:$0xff] %v2560
      %p2571 = scmp.lt.s32.totalorder %s24, 1
      %s2572 = scalar_select %p2571, %s24, 1
      %s2573 = smul.addr %s2572, 8
      %s2574 = smul.addr %s2573, 4
      %s2575 = scalar_lea.vmem %s10, %s2574
      %p2576 = scmp.lt.s32.totalorder %s24, 1
      %s2577 = scalar_select %p2576, %s24, 1
      %s2578 = smul.addr %s2577, 8
      %s2579 = scalar_lea.vmem %s11, %s2578
      %p2580 = scmp.lt.s32.totalorder %s24, 1
      %s2581 = scalar_select %p2580, %s24, 1
      %s2582 = smul.addr %s2581, 8
      %s2583 = smul.addr %s2582, 8
      %s2584 = scalar_lea.vmem %s12, %s2583
      // Predicated region
      $region61: #{up_s_forward.2} parent=59 // pred_check
        %p2585 = pneg %p257
      $region62: #{up_s_forward.2} parent=59 // pred_check_branch
        %2587 = sbr.rel (%p2585) target = $region64
      $region63: #{up_s_forward.2} parent=59 // pred_region
        _
      $region64: #{up_s_forward.2} parent=59 // pred_fallthru
        _
      // Predicated region
      $region65: #{up_s_forward.2} parent=59 // pred_check
        %p2588 = pneg %p283
      $region66: #{up_s_forward.2} parent=59 // pred_check_branch
        %2590 = sbr.rel (%p2588) target = $region68
      $region67: #{up_s_forward.2} parent=59 // pred_region
        _
      $region68: #{up_s_forward.2} parent=59 // pred_fallthru
        _
      // Predicated region
      $region69: #{up_s_forward.2} parent=59 // pred_check
        %p2591 = pneg %p309
      $region70: #{up_s_forward.2} parent=59 // pred_check_branch
        %2593 = sbr.rel (%p2591) target = $region72
      $region71: #{up_s_forward.2} parent=59 // pred_region
        _
      $region72: #{up_s_forward.2} parent=59 // pred_fallthru
        _
    $region60: #{up_s_forward.2} parent=5 // pred_fallthru
      _
    %p2594 = scmp.le.s32.totalorder 2, %s19
    // Predicated region
    $region73: #{up_s_forward.2} parent=5 // pred_check
      %p2595 = pneg %p2594
    $region74: #{up_s_forward.2} parent=5 // pred_check_branch
      %2597 = sbr.rel (%p2595) target = $region76
    $region75: #{up_s_forward.2} parent=5 // pred_region
      %s2598 = ssub.s32 %s19, 2
      // Predicated region
      $region77: #{up_s_forward.2} parent=75 // pred_check
        %p2599 = pneg %p263
      $region78: #{up_s_forward.2} parent=75 // pred_check_branch
        %2601 = sbr.rel (%p2599) target = $region80
      $region79: #{up_s_forward.2} parent=75 // pred_region
        %p2602 = scmp.lt.s32.totalorder %s25, 1
        %s2603 = scalar_select %p2602, %s25, 1
        %s2604 = smul.addr %s2603, 8
        %s2605 = smul.addr %s2604, 4
        %s2606 = scalar_lea.vmem %s10, %s2605
      $region80: #{up_s_forward.2} parent=75 // pred_fallthru
        _
      // Predicated region
      $region81: #{up_s_forward.2} parent=75 // pred_check
        %p2607 = pneg %p289
      $region82: #{up_s_forward.2} parent=75 // pred_check_branch
        %2609 = sbr.rel (%p2607) target = $region84
      $region83: #{up_s_forward.2} parent=75 // pred_region
        %p2610 = scmp.lt.s32.totalorder %s25, 1
        %s2611 = scalar_select %p2610, %s25, 1
        %s2612 = smul.addr %s2611, 8
        %s2613 = scalar_lea.vmem %s11, %s2612
      $region84: #{up_s_forward.2} parent=75 // pred_fallthru
        _
      // Predicated region
      $region85: #{up_s_forward.2} parent=75 // pred_check
        %p2614 = pneg %p315
      $region86: #{up_s_forward.2} parent=75 // pred_check_branch
        %2616 = sbr.rel (%p2614) target = $region88
      $region87: #{up_s_forward.2} parent=75 // pred_region
        %p2617 = scmp.lt.s32.totalorder %s25, 1
        %s2618 = scalar_select %p2617, %s25, 1
        %s2619 = smul.addr %s2618, 8
        %s2620 = smul.addr %s2619, 8
        %s2621 = scalar_lea.vmem %s12, %s2620
      $region88: #{up_s_forward.2} parent=75 // pred_fallthru
        _
    $region76: #{up_s_forward.2} parent=5 // pred_fallthru
      _
  $region6: #{up_s_forward.2} parent=0 // loop_footer
    %s23 = sadd.s32 1, %s19
  $region7: #{up_s_forward.2} parent=0 // loop_footer_branch
    %18 = sbr.rel target = $region3
  $region8: #{up_s_forward.2} parent=0 // loop_exit
    _

</llo_original>
